<compile_context>
chip_gen: v7x
topology: tpu7x:2x2x1
jax: 0.10.0
libtpu: 0.0.40
codegen_flags: <defaults>
</compile_context>

<pallas_src>
import functools

import jax
import jax.numpy as jnp
from jax.experimental import pallas as pl
from jax.experimental.pallas import tpu as pltpu

_EPS = 1e-5  # nn.InstanceNorm2d default eps


def _resblocks_kernel(x_ref, w_ref, o_ref, cur_ref, res_ref, xp_ref, xrow_ref,
                      *, num_blocks, H, W, C):
    """Fully fused ResBlocks forward for one batch element (channel-last).

    x_ref   : (1, H, W, C)             activation block for batch element n
    w_ref   : (num_blocks*2*3, 3C, C)  bf16 conv weights, [(conv*3 + di), dj*C + ci, co]
    o_ref   : (1, H, W, C)
    cur_ref : VMEM (H, W, C) f32       running activation
    res_ref : VMEM (H, W, C) f32       residual (block input)
    xp_ref  : VMEM (H+2, W+2, C) f32   reflect-padded activation
    xrow_ref: VMEM (H+2, W, 3C) f32    width-wise im2col (3 horizontal taps packed in lanes)
    """
    cur_ref[...] = x_ref[0].astype(jnp.float32)

    def conv_in_act(conv_idx, blk):
        cur = cur_ref[...]                                       # (H, W, C)

        # ---- reflection pad by 1, fused (interior, edges, corners) ----
        xp_ref[1:H + 1, 1:W + 1, :] = cur
        xp_ref[0:1, 1:W + 1, :] = cur[1:2, :, :]                 # top    <- row 1
        xp_ref[H + 1:H + 2, 1:W + 1, :] = cur[H - 2:H - 1, :, :]  # bottom <- row H-2
        xp_ref[:, 0:1, :] = xp_ref[:, 2:3, :]                    # left   (incl. corners)
        xp_ref[:, W + 1:W + 2, :] = xp_ref[:, W - 1:W, :]        # right  (incl. corners)

        # ---- width-wise im2col: xrow[i, j, dj*C:(dj+1)*C] = xp[i, j+dj, :] ----
        # (3 shifted copies instead of 9 strided patch materializations.)
        xrow_ref[:, :, 0:C] = xp_ref[:, 0:W, :]
        xrow_ref[:, :, C:2 * C] = xp_ref[:, 1:W + 1, :]
        xrow_ref[:, :, 2 * C:3 * C] = xp_ref[:, 2:W + 2, :]

        # ---- 3x3 'same' conv = 3 MXU matmuls (H*W, 3C) @ (3C, C), bf16 in / f32 acc ----
        widx = (blk * 2 + conv_idx) * 3
        patch0 = xrow_ref[0:H].reshape(H * W, 3 * C).astype(jnp.bfloat16)
        acc = jnp.dot(patch0, w_ref[widx], preferred_element_type=jnp.float32)
        for di in (1, 2):
            patch = xrow_ref[di:di + H].reshape(H * W, 3 * C).astype(jnp.bfloat16)
            acc = acc + jnp.dot(patch, w_ref[widx + di],
                                preferred_element_type=jnp.float32)
        # Conv bias intentionally omitted: a per-channel constant is exactly
        # cancelled by the affine=False InstanceNorm mean subtraction below.

        # ---- InstanceNorm2d (affine=False, biased variance, eps=1e-5), fused stats ----
        mean = jnp.mean(acc, axis=0, keepdims=True)               # (1, C)
        mean_sq = jnp.mean(acc * acc, axis=0, keepdims=True)      # (1, C)
        var = mean_sq - mean * mean
        y = (acc - mean) * jax.lax.rsqrt(var + _EPS)

        if conv_idx == 0:
            y = jnp.maximum(y, 0.0)                                # ReLU (first conv only)

        cur_ref[...] = y.reshape(H, W, C)

    def block_body(blk, carry):
        res_ref[...] = cur_ref[...]
        conv_in_act(0, blk)
        conv_in_act(1, blk)
        cur_ref[...] = cur_ref[...] + res_ref[...]                 # skip connection
        return carry

    jax.lax.fori_loop(0, num_blocks, block_body, 0)

    o_ref[0] = cur_ref[...].astype(o_ref.dtype)


def _round_up(v, m):
    return -(-v // m) * m


class ResBlocks:
    """JAX/Pallas port of the PyTorch ResBlocks module (NCHW in / NCHW out)."""

    def __init__(self, num_blocks, dim, norm='inst', activation='relu',
                 pad_type='reflect', nz=0, *, key=None):
        if norm != 'inst' or activation != 'relu' or pad_type != 'reflect' or nz != 0:
            # TODO(synk): batch/none norm, zero/replicate pad, lrelu/tanh, nz>0 not implemented.
            raise NotImplementedError("Pallas ResBlocks supports the default "
                                      "inst/relu/reflect/nz=0 configuration only.")
        self.num_blocks = num_blocks
        self.dim = dim
        if key is None:
            key = jax.random.PRNGKey(42)
        n_convs = num_blocks * 2
        kw, kb = jax.random.split(key)
        bound = (dim * 9) ** -0.5                      # ~ PyTorch Conv2d default init scale
        # Canonical (PyTorch-layout) parameters: (n_convs, C_out, C_in, 3, 3), (n_convs, C)
        self.weights = jax.random.uniform(kw, (n_convs, dim, dim, 3, 3),
                                          jnp.float32, -bound, bound)
        self.biases = jax.random.uniform(kb, (n_convs, dim), jnp.float32, -bound, bound)
        # Kernel layout: per (conv, row-tap di) a (3C, C) slab with K = dj*C + ci and
        # C_out in lanes; stored bf16 (native MXU dtype, halves weight VMEM/DMA).
        w_taps = jnp.transpose(self.weights, (0, 3, 4, 2, 1))   # (n_convs, di, dj, ci, co)
        self._w_stack = w_taps.reshape(n_convs * 3, 3 * dim, dim).astype(jnp.bfloat16)
        # (biases are NOT passed to the kernel: cancelled exactly by InstanceNorm.)

    def __call__(self, x):
        N, C, H, W = x.shape
        assert C == self.dim
        assert H >= 2 and W >= 2, "reflect pad of 1 needs spatial dims >= 2"
        # NOTE: best performance when W is a multiple of 8 and C a multiple of 128
        # (lane-dense stores, free (H,W,C)->(H*W,C) reshapes).
        n_convs = self.num_blocks * 2

        x_nhwc = jnp.transpose(x, (0, 2, 3, 1))   # lane-dense (channel-last) kernel layout

        # Explicit VMEM budget (padded-tile estimate + headroom), floor at 32 MiB.
        lanes_c = _round_up(C, 128)
        lanes_3c = _round_up(3 * C, 128)
        est = (
            2 * 2 * H * _round_up(W, 8) * lanes_c * 4                 # in/out act blocks (dbl-buf)
            + 2 * n_convs * 3 * _round_up(3 * C, 8) * lanes_c * 2     # bf16 weights (dbl-buf)
            + 2 * H * _round_up(W, 8) * lanes_c * 4                   # cur + residual scratch
            + (H + 2) * _round_up(W + 2, 8) * lanes_c * 4             # padded scratch
            + (H + 2) * _round_up(W, 8) * lanes_3c * 4                # im2col scratch
        )
        vmem_limit = int(min(max(2 * est, 32 * 1024 * 1024), 96 * 1024 * 1024))

        kernel = functools.partial(_resblocks_kernel, num_blocks=self.num_blocks,
                                   H=H, W=W, C=C)
        out_nhwc = pl.pallas_call(
            kernel,
            out_shape=jax.ShapeDtypeStruct((N, H, W, C), x.dtype),
            grid=(N,),
            in_specs=[
                pl.BlockSpec((1, H, W, C), lambda n: (n, 0, 0, 0)),
                # Constant index_map -> weights stay VMEM-resident across the grid.
                pl.BlockSpec((n_convs * 3, 3 * C, C), lambda n: (0, 0, 0)),
            ],
            out_specs=pl.BlockSpec((1, H, W, C), lambda n: (n, 0, 0, 0)),
            scratch_shapes=[
                pltpu.VMEM((H, W, C), jnp.float32),            # cur
                pltpu.VMEM((H, W, C), jnp.float32),            # residual
                pltpu.VMEM((H + 2, W + 2, C), jnp.float32),    # reflect-padded
                pltpu.VMEM((H + 2, W, 3 * C), jnp.float32),    # width im2col
            ],
            compiler_params=pltpu.CompilerParams(
                dimension_semantics=("parallel",),
                vmem_limit_bytes=vmem_limit),
        )(x_nhwc, self._w_stack)
        return jnp.transpose(out_nhwc, (0, 3, 1, 2))


# ----------------------------- pure-JAX reference -----------------------------

def _instance_norm_nchw(x, eps=_EPS):
    mean = x.mean(axis=(2, 3), keepdims=True)
    var = ((x - mean) ** 2).mean(axis=(2, 3), keepdims=True)
    return (x - mean) / jnp.sqrt(var + eps)


def _ref_resblocks(x, weights, biases, num_blocks):
    """Reference mirroring the intended PyTorch forward (NCHW, OIHW weights, f32)."""
    dn = jax.lax.conv_dimension_numbers(x.shape, weights[0].shape,
                                        ('NCHW', 'OIHW', 'NCHW'))
    cur = x.astype(jnp.float32)
    for blk in range(num_blocks):
        residual = cur
        for conv_idx in range(2):
            idx = blk * 2 + conv_idx
            xp = jnp.pad(cur, ((0, 0), (0, 0), (1, 1), (1, 1)), mode='reflect')
            y = jax.lax.conv_general_dilated(
                xp, weights[idx], window_strides=(1, 1), padding='VALID',
                dimension_numbers=dn, precision=jax.lax.Precision.HIGHEST)
            y = y + biases[idx][None, :, None, None]
            y = _instance_norm_nchw(y)
            if conv_idx == 0:
                y = jnp.maximum(y, 0.0)
            cur = y
        cur = cur + residual
    return cur.astype(x.dtype)


if __name__ == "__main__":
    key = jax.random.PRNGKey(0)
    kx, kp = jax.random.split(key)
    N, C, H, W = 2, 4, 16, 16
    num_blocks = 2

    x = jax.random.normal(kx, (N, C, H, W), dtype=jnp.float32)
    model = ResBlocks(num_blocks=num_blocks, dim=C, norm='inst', activation='relu',
                      pad_type='reflect', nz=0, key=kp)

    out = jax.block_until_ready(model(x))

    ref = _ref_resblocks(x, model.weights, model.biases, num_blocks)
    assert out.shape == x.shape, out.shape
    max_err = float(jnp.max(jnp.abs(out - ref)))
    # Kernel uses bf16 MXU operands with f32 accumulation; reference is f32-HIGHEST.
    assert jnp.allclose(out, ref, atol=5e-2, rtol=5e-2), max_err
    print("KERNEL_OK")
</pallas_src>

<mosaic_0001>
module attributes {stable_mosaic.version = 11 : i64} {
  func.func @_resblocks_kernel(%arg0: i32, %arg1: memref<1x16x16x4xf32, #tpu.memory_space<vmem>>, %arg2: memref<12x12x4xbf16, #tpu.memory_space<vmem>>, %arg3: memref<1x16x16x4xf32, #tpu.memory_space<vmem>>, %arg4: memref<16x16x4xf32, #tpu.memory_space<vmem>>, %arg5: memref<16x16x4xf32, #tpu.memory_space<vmem>>, %arg6: memref<18x18x4xf32, #tpu.memory_space<vmem>>, %arg7: memref<18x16x12xf32, #tpu.memory_space<vmem>>) attributes {dimension_semantics = [#tpu.dimension_semantics<parallel>], iteration_bounds = array<i64: 2>, scalar_prefetch = 0 : i64, scratch_operands = 4 : i64, tpu.core_type = #tpu.core_type<tc>, window_params = [{transform_indices = @transform_0, window_bounds = array<i64: 1, 16, 16, 4>}, {pipeline_mode = #tpu.pipeline_mode<synchronous>, transform_indices = @transform_1, window_bounds = array<i64: 12, 12, 4>}, {transform_indices = @transform_2, window_bounds = array<i64: 1, 16, 16, 4>}]} {
    %c0 = arith.constant 0 : index
    %c0_0 = arith.constant 0 : index
    %c0_1 = arith.constant 0 : index
    %c0_2 = arith.constant 0 : index
    %0 = vector.load %arg1[%c0, %c0_0, %c0_1, %c0_2] : memref<1x16x16x4xf32, #tpu.memory_space<vmem>>, vector<1x16x16x4xf32>
    %1 = vector.shape_cast %0 : vector<1x16x16x4xf32> to vector<16x16x4xf32>
    %c0_3 = arith.constant 0 : index
    %c0_4 = arith.constant 0 : index
    %c0_5 = arith.constant 0 : index
    %2 = vector.load %arg4[%c0_3, %c0_4, %c0_5] : memref<16x16x4xf32, #tpu.memory_space<vmem>>, vector<16x16x4xf32>
    tpu.vector_store %arg4[%c0_3, %c0_4, %c0_5], %1 {strides = array<i32>} : memref<16x16x4xf32, #tpu.memory_space<vmem>>, vector<16x16x4xf32>,
    %c0_i32 = arith.constant 0 : i32
    %c2_i32 = arith.constant 2 : i32
    %3 = arith.addi %c0_i32, %c2_i32 : i32
    %c1_i32 = arith.constant 1 : i32
    scf.for %arg8 = %c0_i32 to %3 step %c1_i32  : i32 {
      %c0_14 = arith.constant 0 : index
      %c0_15 = arith.constant 0 : index
      %c0_16 = arith.constant 0 : index
      %8 = vector.load %arg4[%c0_14, %c0_15, %c0_16] : memref<16x16x4xf32, #tpu.memory_space<vmem>>, vector<16x16x4xf32>
      %c0_17 = arith.constant 0 : index
      %c0_18 = arith.constant 0 : index
      %c0_19 = arith.constant 0 : index
      %9 = vector.load %arg5[%c0_17, %c0_18, %c0_19] : memref<16x16x4xf32, #tpu.memory_space<vmem>>, vector<16x16x4xf32>
      tpu.vector_store %arg5[%c0_17, %c0_18, %c0_19], %8 {strides = array<i32>} : memref<16x16x4xf32, #tpu.memory_space<vmem>>, vector<16x16x4xf32>,
      %c0_20 = arith.constant 0 : index
      %c0_21 = arith.constant 0 : index
      %c0_22 = arith.constant 0 : index
      %10 = vector.load %arg4[%c0_20, %c0_21, %c0_22] : memref<16x16x4xf32, #tpu.memory_space<vmem>>, vector<16x16x4xf32>
      %c1 = arith.constant 1 : index
      %c1_23 = arith.constant 1 : index
      %c0_24 = arith.constant 0 : index
      %11 = vector.load %arg6[%c1, %c1_23, %c0_24] : memref<18x18x4xf32, #tpu.memory_space<vmem>>, vector<16x16x4xf32>
      tpu.vector_store %arg6[%c1, %c1_23, %c0_24], %10 {strides = array<i32>} : memref<18x18x4xf32, #tpu.memory_space<vmem>>, vector<16x16x4xf32>,
      %12 = vector.extract_strided_slice %10 {offsets = [1, 0, 0], sizes = [1, 16, 4], strides = [1, 1, 1]} : vector<16x16x4xf32> to vector<1x16x4xf32>
      %c0_25 = arith.constant 0 : index
      %c1_26 = arith.constant 1 : index
      %c0_27 = arith.constant 0 : index
      %13 = vector.load %arg6[%c0_25, %c1_26, %c0_27] : memref<18x18x4xf32, #tpu.memory_space<vmem>>, vector<1x16x4xf32>
      tpu.vector_store %arg6[%c0_25, %c1_26, %c0_27], %12 {strides = array<i32>} : memref<18x18x4xf32, #tpu.memory_space<vmem>>, vector<1x16x4xf32>,
      %14 = vector.extract_strided_slice %10 {offsets = [14, 0, 0], sizes = [1, 16, 4], strides = [1, 1, 1]} : vector<16x16x4xf32> to vector<1x16x4xf32>
      %c17 = arith.constant 17 : index
      %c1_28 = arith.constant 1 : index
      %c0_29 = arith.constant 0 : index
      %15 = vector.load %arg6[%c17, %c1_28, %c0_29] : memref<18x18x4xf32, #tpu.memory_space<vmem>>, vector<1x16x4xf32>
      tpu.vector_store %arg6[%c17, %c1_28, %c0_29], %14 {strides = array<i32>} : memref<18x18x4xf32, #tpu.memory_space<vmem>>, vector<1x16x4xf32>,
      %c0_30 = arith.constant 0 : index
      %c2 = arith.constant 2 : index
      %c0_31 = arith.constant 0 : index
      %16 = vector.load %arg6[%c0_30, %c2, %c0_31] : memref<18x18x4xf32, #tpu.memory_space<vmem>>, vector<18x1x4xf32>
      %c0_32 = arith.constant 0 : index
      %c0_33 = arith.constant 0 : index
      %c0_34 = arith.constant 0 : index
      %17 = vector.load %arg6[%c0_32, %c0_33, %c0_34] : memref<18x18x4xf32, #tpu.memory_space<vmem>>, vector<18x1x4xf32>
      tpu.vector_store %arg6[%c0_32, %c0_33, %c0_34], %16 {strides = array<i32>} : memref<18x18x4xf32, #tpu.memory_space<vmem>>, vector<18x1x4xf32>,
      %c0_35 = arith.constant 0 : index
      %c15 = arith.constant 15 : index
      %c0_36 = arith.constant 0 : index
      %18 = vector.load %arg6[%c0_35, %c15, %c0_36] : memref<18x18x4xf32, #tpu.memory_space<vmem>>, vector<18x1x4xf32>
      %c0_37 = arith.constant 0 : index
      %c17_38 = arith.constant 17 : index
      %c0_39 = arith.constant 0 : index
      %19 = vector.load %arg6[%c0_37, %c17_38, %c0_39] : memref<18x18x4xf32, #tpu.memory_space<vmem>>, vector<18x1x4xf32>
      tpu.vector_store %arg6[%c0_37, %c17_38, %c0_39], %18 {strides = array<i32>} : memref<18x18x4xf32, #tpu.memory_space<vmem>>, vector<18x1x4xf32>,
      %c0_40 = arith.constant 0 : index
      %c0_41 = arith.constant 0 : index
      %c0_42 = arith.constant 0 : index
      %20 = vector.load %arg6[%c0_40, %c0_41, %c0_42] : memref<18x18x4xf32, #tpu.memory_space<vmem>>, vector<18x16x4xf32>
      %c0_43 = arith.constant 0 : index
      %c0_44 = arith.constant 0 : index
      %c0_45 = arith.constant 0 : index
      %21 = vector.load %arg7[%c0_43, %c0_44, %c0_45] : memref<18x16x12xf32, #tpu.memory_space<vmem>>, vector<18x16x4xf32>
      tpu.vector_store %arg7[%c0_43, %c0_44, %c0_45], %20 {strides = array<i32>} : memref<18x16x12xf32, #tpu.memory_space<vmem>>, vector<18x16x4xf32>,
      %c0_46 = arith.constant 0 : index
      %c1_47 = arith.constant 1 : index
      %c0_48 = arith.constant 0 : index
      %22 = vector.load %arg6[%c0_46, %c1_47, %c0_48] : memref<18x18x4xf32, #tpu.memory_space<vmem>>, vector<18x16x4xf32>
      %c0_49 = arith.constant 0 : index
      %c0_50 = arith.constant 0 : index
      %c4 = arith.constant 4 : index
      %23 = vector.load %arg7[%c0_49, %c0_50, %c4] : memref<18x16x12xf32, #tpu.memory_space<vmem>>, vector<18x16x4xf32>
      tpu.vector_store %arg7[%c0_49, %c0_50, %c4], %22 {strides = array<i32>} : memref<18x16x12xf32, #tpu.memory_space<vmem>>, vector<18x16x4xf32>,
      %c0_51 = arith.constant 0 : index
      %c2_52 = arith.constant 2 : index
      %c0_53 = arith.constant 0 : index
      %24 = vector.load %arg6[%c0_51, %c2_52, %c0_53] : memref<18x18x4xf32, #tpu.memory_space<vmem>>, vector<18x16x4xf32>
      %c0_54 = arith.constant 0 : index
      %c0_55 = arith.constant 0 : index
      %c8 = arith.constant 8 : index
      %25 = vector.load %arg7[%c0_54, %c0_55, %c8] : memref<18x16x12xf32, #tpu.memory_space<vmem>>, vector<18x16x4xf32>
      tpu.vector_store %arg7[%c0_54, %c0_55, %c8], %24 {strides = array<i32>} : memref<18x16x12xf32, #tpu.memory_space<vmem>>, vector<18x16x4xf32>,
      %c2_i32_56 = arith.constant 2 : i32
      %26 = arith.muli %arg8, %c2_i32_56 : i32
      %c0_i32_57 = arith.constant 0 : i32
      %27 = arith.addi %26, %c0_i32_57 : i32
      %c3_i32 = arith.constant 3 : i32
      %28 = arith.muli %27, %c3_i32 : i32
      %c0_58 = arith.constant 0 : index
      %c0_59 = arith.constant 0 : index
      %c0_60 = arith.constant 0 : index
      %29 = vector.load %arg7[%c0_58, %c0_59, %c0_60] : memref<18x16x12xf32, #tpu.memory_space<vmem>>, vector<16x16x12xf32>
      %30 = vector.shape_cast %29 : vector<16x16x12xf32> to vector<256x12xf32>
      %31 = arith.truncf %30 : vector<256x12xf32> to vector<256x12xbf16>
      %32 = arith.index_cast %28 : i32 to index
      %c0_61 = arith.constant 0 : index
      %c0_62 = arith.constant 0 : index
      %33 = vector.load %arg2[%32, %c0_61, %c0_62] : memref<12x12x4xbf16, #tpu.memory_space<vmem>>, vector<1x12x4xbf16>
      %34 = vector.shape_cast %33 : vector<1x12x4xbf16> to vector<12x4xbf16>
      %cst = arith.constant dense<0.000000e+00> : vector<256x4xf32>
      %35 = tpu.matmul %31, %34, %cst {dimension_numbers = #tpu.dot_dimension_numbers<[1], [0], [0], [1], [0, 0, 1, 1], [], []>} : vector<256x12xbf16>, vector<12x4xbf16>, vector<256x4xf32> -> vector<256x4xf32>
      %c1_63 = arith.constant 1 : index
      %c0_64 = arith.constant 0 : index
      %c0_65 = arith.constant 0 : index
      %36 = vector.load %arg7[%c1_63, %c0_64, %c0_65] : memref<18x16x12xf32, #tpu.memory_space<vmem>>, vector<16x16x12xf32>
      %37 = vector.shape_cast %36 : vector<16x16x12xf32> to vector<256x12xf32>
      %38 = arith.truncf %37 : vector<256x12xf32> to vector<256x12xbf16>
      %c1_i32_66 = arith.constant 1 : i32
      %39 = arith.addi %28, %c1_i32_66 : i32
      %40 = arith.index_cast %39 : i32 to index
      %c0_67 = arith.constant 0 : index
      %c0_68 = arith.constant 0 : index
      %41 = vector.load %arg2[%40, %c0_67, %c0_68] : memref<12x12x4xbf16, #tpu.memory_space<vmem>>, vector<1x12x4xbf16>
      %42 = vector.shape_cast %41 : vector<1x12x4xbf16> to vector<12x4xbf16>
      %cst_69 = arith.constant dense<0.000000e+00> : vector<256x4xf32>
      %43 = tpu.matmul %38, %42, %cst_69 {dimension_numbers = #tpu.dot_dimension_numbers<[1], [0], [0], [1], [0, 0, 1, 1], [], []>} : vector<256x12xbf16>, vector<12x4xbf16>, vector<256x4xf32> -> vector<256x4xf32>
      %44 = arith.addf %35, %43 : vector<256x4xf32>
      %c2_70 = arith.constant 2 : index
      %c0_71 = arith.constant 0 : index
      %c0_72 = arith.constant 0 : index
      %45 = vector.load %arg7[%c2_70, %c0_71, %c0_72] : memref<18x16x12xf32, #tpu.memory_space<vmem>>, vector<16x16x12xf32>
      %46 = vector.shape_cast %45 : vector<16x16x12xf32> to vector<256x12xf32>
      %47 = arith.truncf %46 : vector<256x12xf32> to vector<256x12xbf16>
      %c2_i32_73 = arith.constant 2 : i32
      %48 = arith.addi %28, %c2_i32_73 : i32
      %49 = arith.index_cast %48 : i32 to index
      %c0_74 = arith.constant 0 : index
      %c0_75 = arith.constant 0 : index
      %50 = vector.load %arg2[%49, %c0_74, %c0_75] : memref<12x12x4xbf16, #tpu.memory_space<vmem>>, vector<1x12x4xbf16>
      %51 = vector.shape_cast %50 : vector<1x12x4xbf16> to vector<12x4xbf16>
      %cst_76 = arith.constant dense<0.000000e+00> : vector<256x4xf32>
      %52 = tpu.matmul %47, %51, %cst_76 {dimension_numbers = #tpu.dot_dimension_numbers<[1], [0], [0], [1], [0, 0, 1, 1], [], []>} : vector<256x12xbf16>, vector<12x4xbf16>, vector<256x4xf32> -> vector<256x4xf32>
      %53 = arith.addf %44, %52 : vector<256x4xf32>
      %cst_77 = arith.constant dense<0.000000e+00> : vector<4xf32>
      %54 = vector.multi_reduction <add>, %53, %cst_77 [0] : vector<256x4xf32> to vector<4xf32>
      %55 = vector.shape_cast %54 : vector<4xf32> to vector<1x4xf32>
      %cst_78 = arith.constant 2.560000e+02 : f32
      %56 = vector.broadcast %cst_78 : f32 to vector<1x4xf32>
      %57 = arith.divf %55, %56 : vector<1x4xf32>
      %58 = arith.mulf %53, %53 : vector<256x4xf32>
      %cst_79 = arith.constant dense<0.000000e+00> : vector<4xf32>
      %59 = vector.multi_reduction <add>, %58, %cst_79 [0] : vector<256x4xf32> to vector<4xf32>
      %60 = vector.shape_cast %59 : vector<4xf32> to vector<1x4xf32>
      %cst_80 = arith.constant 2.560000e+02 : f32
      %61 = vector.broadcast %cst_80 : f32 to vector<1x4xf32>
      %62 = arith.divf %60, %61 : vector<1x4xf32>
      %63 = arith.mulf %57, %57 : vector<1x4xf32>
      %64 = arith.subf %62, %63 : vector<1x4xf32>
      %65 = vector.broadcast %57 : vector<1x4xf32> to vector<256x4xf32>
      %66 = arith.subf %53, %65 : vector<256x4xf32>
      %cst_81 = arith.constant 9.99999974E-6 : f32
      %67 = vector.broadcast %cst_81 : f32 to vector<1x4xf32>
      %68 = arith.addf %64, %67 : vector<1x4xf32>
      %69 = math.rsqrt %68 : vector<1x4xf32>
      %70 = vector.broadcast %69 : vector<1x4xf32> to vector<256x4xf32>
      %71 = arith.mulf %66, %70 : vector<256x4xf32>
      %cst_82 = arith.constant 0.000000e+00 : f32
      %72 = vector.broadcast %cst_82 : f32 to vector<256x4xf32>
      %73 = arith.maximumf %71, %72 : vector<256x4xf32>
      %74 = vector.shape_cast %73 : vector<256x4xf32> to vector<16x16x4xf32>
      %c0_83 = arith.constant 0 : index
      %c0_84 = arith.constant 0 : index
      %c0_85 = arith.constant 0 : index
      %75 = vector.load %arg4[%c0_83, %c0_84, %c0_85] : memref<16x16x4xf32, #tpu.memory_space<vmem>>, vector<16x16x4xf32>
      tpu.vector_store %arg4[%c0_83, %c0_84, %c0_85], %74 {strides = array<i32>} : memref<16x16x4xf32, #tpu.memory_space<vmem>>, vector<16x16x4xf32>,
      %c0_86 = arith.constant 0 : index
      %c0_87 = arith.constant 0 : index
      %c0_88 = arith.constant 0 : index
      %76 = vector.load %arg4[%c0_86, %c0_87, %c0_88] : memref<16x16x4xf32, #tpu.memory_space<vmem>>, vector<16x16x4xf32>
      %c1_89 = arith.constant 1 : index
      %c1_90 = arith.constant 1 : index
      %c0_91 = arith.constant 0 : index
      %77 = vector.load %arg6[%c1_89, %c1_90, %c0_91] : memref<18x18x4xf32, #tpu.memory_space<vmem>>, vector<16x16x4xf32>
      tpu.vector_store %arg6[%c1_89, %c1_90, %c0_91], %76 {strides = array<i32>} : memref<18x18x4xf32, #tpu.memory_space<vmem>>, vector<16x16x4xf32>,
      %78 = vector.extract_strided_slice %76 {offsets = [1, 0, 0], sizes = [1, 16, 4], strides = [1, 1, 1]} : vector<16x16x4xf32> to vector<1x16x4xf32>
      %c0_92 = arith.constant 0 : index
      %c1_93 = arith.constant 1 : index
      %c0_94 = arith.constant 0 : index
      %79 = vector.load %arg6[%c0_92, %c1_93, %c0_94] : memref<18x18x4xf32, #tpu.memory_space<vmem>>, vector<1x16x4xf32>
      tpu.vector_store %arg6[%c0_92, %c1_93, %c0_94], %78 {strides = array<i32>} : memref<18x18x4xf32, #tpu.memory_space<vmem>>, vector<1x16x4xf32>,
      %80 = vector.extract_strided_slice %76 {offsets = [14, 0, 0], sizes = [1, 16, 4], strides = [1, 1, 1]} : vector<16x16x4xf32> to vector<1x16x4xf32>
      %c17_95 = arith.constant 17 : index
      %c1_96 = arith.constant 1 : index
      %c0_97 = arith.constant 0 : index
      %81 = vector.load %arg6[%c17_95, %c1_96, %c0_97] : memref<18x18x4xf32, #tpu.memory_space<vmem>>, vector<1x16x4xf32>
      tpu.vector_store %arg6[%c17_95, %c1_96, %c0_97], %80 {strides = array<i32>} : memref<18x18x4xf32, #tpu.memory_space<vmem>>, vector<1x16x4xf32>,
      %c0_98 = arith.constant 0 : index
      %c2_99 = arith.constant 2 : index
      %c0_100 = arith.constant 0 : index
      %82 = vector.load %arg6[%c0_98, %c2_99, %c0_100] : memref<18x18x4xf32, #tpu.memory_space<vmem>>, vector<18x1x4xf32>
      %c0_101 = arith.constant 0 : index
      %c0_102 = arith.constant 0 : index
      %c0_103 = arith.constant 0 : index
      %83 = vector.load %arg6[%c0_101, %c0_102, %c0_103] : memref<18x18x4xf32, #tpu.memory_space<vmem>>, vector<18x1x4xf32>
      tpu.vector_store %arg6[%c0_101, %c0_102, %c0_103], %82 {strides = array<i32>} : memref<18x18x4xf32, #tpu.memory_space<vmem>>, vector<18x1x4xf32>,
      %c0_104 = arith.constant 0 : index
      %c15_105 = arith.constant 15 : index
      %c0_106 = arith.constant 0 : index
      %84 = vector.load %arg6[%c0_104, %c15_105, %c0_106] : memref<18x18x4xf32, #tpu.memory_space<vmem>>, vector<18x1x4xf32>
      %c0_107 = arith.constant 0 : index
      %c17_108 = arith.constant 17 : index
      %c0_109 = arith.constant 0 : index
      %85 = vector.load %arg6[%c0_107, %c17_108, %c0_109] : memref<18x18x4xf32, #tpu.memory_space<vmem>>, vector<18x1x4xf32>
      tpu.vector_store %arg6[%c0_107, %c17_108, %c0_109], %84 {strides = array<i32>} : memref<18x18x4xf32, #tpu.memory_space<vmem>>, vector<18x1x4xf32>,
      %c0_110 = arith.constant 0 : index
      %c0_111 = arith.constant 0 : index
      %c0_112 = arith.constant 0 : index
      %86 = vector.load %arg6[%c0_110, %c0_111, %c0_112] : memref<18x18x4xf32, #tpu.memory_space<vmem>>, vector<18x16x4xf32>
      %c0_113 = arith.constant 0 : index
      %c0_114 = arith.constant 0 : index
      %c0_115 = arith.constant 0 : index
      %87 = vector.load %arg7[%c0_113, %c0_114, %c0_115] : memref<18x16x12xf32, #tpu.memory_space<vmem>>, vector<18x16x4xf32>
      tpu.vector_store %arg7[%c0_113, %c0_114, %c0_115], %86 {strides = array<i32>} : memref<18x16x12xf32, #tpu.memory_space<vmem>>, vector<18x16x4xf32>,
      %c0_116 = arith.constant 0 : index
      %c1_117 = arith.constant 1 : index
      %c0_118 = arith.constant 0 : index
      %88 = vector.load %arg6[%c0_116, %c1_117, %c0_118] : memref<18x18x4xf32, #tpu.memory_space<vmem>>, vector<18x16x4xf32>
      %c0_119 = arith.constant 0 : index
      %c0_120 = arith.constant 0 : index
      %c4_121 = arith.constant 4 : index
      %89 = vector.load %arg7[%c0_119, %c0_120, %c4_121] : memref<18x16x12xf32, #tpu.memory_space<vmem>>, vector<18x16x4xf32>
      tpu.vector_store %arg7[%c0_119, %c0_120, %c4_121], %88 {strides = array<i32>} : memref<18x16x12xf32, #tpu.memory_space<vmem>>, vector<18x16x4xf32>,
      %c0_122 = arith.constant 0 : index
      %c2_123 = arith.constant 2 : index
      %c0_124 = arith.constant 0 : index
      %90 = vector.load %arg6[%c0_122, %c2_123, %c0_124] : memref<18x18x4xf32, #tpu.memory_space<vmem>>, vector<18x16x4xf32>
      %c0_125 = arith.constant 0 : index
      %c0_126 = arith.constant 0 : index
      %c8_127 = arith.constant 8 : index
      %91 = vector.load %arg7[%c0_125, %c0_126, %c8_127] : memref<18x16x12xf32, #tpu.memory_space<vmem>>, vector<18x16x4xf32>
      tpu.vector_store %arg7[%c0_125, %c0_126, %c8_127], %90 {strides = array<i32>} : memref<18x16x12xf32, #tpu.memory_space<vmem>>, vector<18x16x4xf32>,
      %c2_i32_128 = arith.constant 2 : i32
      %92 = arith.muli %arg8, %c2_i32_128 : i32
      %c1_i32_129 = arith.constant 1 : i32
      %93 = arith.addi %92, %c1_i32_129 : i32
      %c3_i32_130 = arith.constant 3 : i32
      %94 = arith.muli %93, %c3_i32_130 : i32
      %c0_131 = arith.constant 0 : index
      %c0_132 = arith.constant 0 : index
      %c0_133 = arith.constant 0 : index
      %95 = vector.load %arg7[%c0_131, %c0_132, %c0_133] : memref<18x16x12xf32, #tpu.memory_space<vmem>>, vector<16x16x12xf32>
      %96 = vector.shape_cast %95 : vector<16x16x12xf32> to vector<256x12xf32>
      %97 = arith.truncf %96 : vector<256x12xf32> to vector<256x12xbf16>
      %98 = arith.index_cast %94 : i32 to index
      %c0_134 = arith.constant 0 : index
      %c0_135 = arith.constant 0 : index
      %99 = vector.load %arg2[%98, %c0_134, %c0_135] : memref<12x12x4xbf16, #tpu.memory_space<vmem>>, vector<1x12x4xbf16>
      %100 = vector.shape_cast %99 : vector<1x12x4xbf16> to vector<12x4xbf16>
      %cst_136 = arith.constant dense<0.000000e+00> : vector<256x4xf32>
      %101 = tpu.matmul %97, %100, %cst_136 {dimension_numbers = #tpu.dot_dimension_numbers<[1], [0], [0], [1], [0, 0, 1, 1], [], []>} : vector<256x12xbf16>, vector<12x4xbf16>, vector<256x4xf32> -> vector<256x4xf32>
      %c1_137 = arith.constant 1 : index
      %c0_138 = arith.constant 0 : index
      %c0_139 = arith.constant 0 : index
      %102 = vector.load %arg7[%c1_137, %c0_138, %c0_139] : memref<18x16x12xf32, #tpu.memory_space<vmem>>, vector<16x16x12xf32>
      %103 = vector.shape_cast %102 : vector<16x16x12xf32> to vector<256x12xf32>
      %104 = arith.truncf %103 : vector<256x12xf32> to vector<256x12xbf16>
      %c1_i32_140 = arith.constant 1 : i32
      %105 = arith.addi %94, %c1_i32_140 : i32
      %106 = arith.index_cast %105 : i32 to index
      %c0_141 = arith.constant 0 : index
      %c0_142 = arith.constant 0 : index
      %107 = vector.load %arg2[%106, %c0_141, %c0_142] : memref<12x12x4xbf16, #tpu.memory_space<vmem>>, vector<1x12x4xbf16>
      %108 = vector.shape_cast %107 : vector<1x12x4xbf16> to vector<12x4xbf16>
      %cst_143 = arith.constant dense<0.000000e+00> : vector<256x4xf32>
      %109 = tpu.matmul %104, %108, %cst_143 {dimension_numbers = #tpu.dot_dimension_numbers<[1], [0], [0], [1], [0, 0, 1, 1], [], []>} : vector<256x12xbf16>, vector<12x4xbf16>, vector<256x4xf32> -> vector<256x4xf32>
      %110 = arith.addf %101, %109 : vector<256x4xf32>
      %c2_144 = arith.constant 2 : index
      %c0_145 = arith.constant 0 : index
      %c0_146 = arith.constant 0 : index
      %111 = vector.load %arg7[%c2_144, %c0_145, %c0_146] : memref<18x16x12xf32, #tpu.memory_space<vmem>>, vector<16x16x12xf32>
      %112 = vector.shape_cast %111 : vector<16x16x12xf32> to vector<256x12xf32>
      %113 = arith.truncf %112 : vector<256x12xf32> to vector<256x12xbf16>
      %c2_i32_147 = arith.constant 2 : i32
      %114 = arith.addi %94, %c2_i32_147 : i32
      %115 = arith.index_cast %114 : i32 to index
      %c0_148 = arith.constant 0 : index
      %c0_149 = arith.constant 0 : index
      %116 = vector.load %arg2[%115, %c0_148, %c0_149] : memref<12x12x4xbf16, #tpu.memory_space<vmem>>, vector<1x12x4xbf16>
      %117 = vector.shape_cast %116 : vector<1x12x4xbf16> to vector<12x4xbf16>
      %cst_150 = arith.constant dense<0.000000e+00> : vector<256x4xf32>
      %118 = tpu.matmul %113, %117, %cst_150 {dimension_numbers = #tpu.dot_dimension_numbers<[1], [0], [0], [1], [0, 0, 1, 1], [], []>} : vector<256x12xbf16>, vector<12x4xbf16>, vector<256x4xf32> -> vector<256x4xf32>
      %119 = arith.addf %110, %118 : vector<256x4xf32>
      %cst_151 = arith.constant dense<0.000000e+00> : vector<4xf32>
      %120 = vector.multi_reduction <add>, %119, %cst_151 [0] : vector<256x4xf32> to vector<4xf32>
      %121 = vector.shape_cast %120 : vector<4xf32> to vector<1x4xf32>
      %cst_152 = arith.constant 2.560000e+02 : f32
      %122 = vector.broadcast %cst_152 : f32 to vector<1x4xf32>
      %123 = arith.divf %121, %122 : vector<1x4xf32>
      %124 = arith.mulf %119, %119 : vector<256x4xf32>
      %cst_153 = arith.constant dense<0.000000e+00> : vector<4xf32>
      %125 = vector.multi_reduction <add>, %124, %cst_153 [0] : vector<256x4xf32> to vector<4xf32>
      %126 = vector.shape_cast %125 : vector<4xf32> to vector<1x4xf32>
      %cst_154 = arith.constant 2.560000e+02 : f32
      %127 = vector.broadcast %cst_154 : f32 to vector<1x4xf32>
      %128 = arith.divf %126, %127 : vector<1x4xf32>
      %129 = arith.mulf %123, %123 : vector<1x4xf32>
      %130 = arith.subf %128, %129 : vector<1x4xf32>
      %131 = vector.broadcast %123 : vector<1x4xf32> to vector<256x4xf32>
      %132 = arith.subf %119, %131 : vector<256x4xf32>
      %cst_155 = arith.constant 9.99999974E-6 : f32
      %133 = vector.broadcast %cst_155 : f32 to vector<1x4xf32>
      %134 = arith.addf %130, %133 : vector<1x4xf32>
      %135 = math.rsqrt %134 : vector<1x4xf32>
      %136 = vector.broadcast %135 : vector<1x4xf32> to vector<256x4xf32>
      %137 = arith.mulf %132, %136 : vector<256x4xf32>
      %138 = vector.shape_cast %137 : vector<256x4xf32> to vector<16x16x4xf32>
      %c0_156 = arith.constant 0 : index
      %c0_157 = arith.constant 0 : index
      %c0_158 = arith.constant 0 : index
      %139 = vector.load %arg4[%c0_156, %c0_157, %c0_158] : memref<16x16x4xf32, #tpu.memory_space<vmem>>, vector<16x16x4xf32>
      tpu.vector_store %arg4[%c0_156, %c0_157, %c0_158], %138 {strides = array<i32>} : memref<16x16x4xf32, #tpu.memory_space<vmem>>, vector<16x16x4xf32>,
      %c0_159 = arith.constant 0 : index
      %c0_160 = arith.constant 0 : index
      %c0_161 = arith.constant 0 : index
      %140 = vector.load %arg4[%c0_159, %c0_160, %c0_161] : memref<16x16x4xf32, #tpu.memory_space<vmem>>, vector<16x16x4xf32>
      %c0_162 = arith.constant 0 : index
      %c0_163 = arith.constant 0 : index
      %c0_164 = arith.constant 0 : index
      %141 = vector.load %arg5[%c0_162, %c0_163, %c0_164] : memref<16x16x4xf32, #tpu.memory_space<vmem>>, vector<16x16x4xf32>
      %142 = arith.addf %140, %141 : vector<16x16x4xf32>
      %c0_165 = arith.constant 0 : index
      %c0_166 = arith.constant 0 : index
      %c0_167 = arith.constant 0 : index
      %143 = vector.load %arg4[%c0_165, %c0_166, %c0_167] : memref<16x16x4xf32, #tpu.memory_space<vmem>>, vector<16x16x4xf32>
      tpu.vector_store %arg4[%c0_165, %c0_166, %c0_167], %142 {strides = array<i32>} : memref<16x16x4xf32, #tpu.memory_space<vmem>>, vector<16x16x4xf32>,
    }
    %c2_i32_6 = arith.constant 2 : i32
    %c0_7 = arith.constant 0 : index
    %c0_8 = arith.constant 0 : index
    %c0_9 = arith.constant 0 : index
    %4 = vector.load %arg4[%c0_7, %c0_8, %c0_9] : memref<16x16x4xf32, #tpu.memory_space<vmem>>, vector<16x16x4xf32>
    %c0_10 = arith.constant 0 : index
    %c0_11 = arith.constant 0 : index
    %c0_12 = arith.constant 0 : index
    %c0_13 = arith.constant 0 : index
    %5 = vector.load %arg3[%c0_10, %c0_11, %c0_12, %c0_13] : memref<1x16x16x4xf32, #tpu.memory_space<vmem>>, vector<1x16x16x4xf32>
    %6 = vector.shape_cast %5 : vector<1x16x16x4xf32> to vector<16x16x4xf32>
    %7 = vector.shape_cast %4 : vector<16x16x4xf32> to vector<1x16x16x4xf32>
    tpu.vector_store %arg3[%c0_10, %c0_11, %c0_12, %c0_13], %7 {strides = array<i32>} : memref<1x16x16x4xf32, #tpu.memory_space<vmem>>, vector<1x16x16x4xf32>,
    return
  }
  func.func @transform_0(%arg0: i32) -> (i32, i32, i32, i32) {
    %c0_i32 = arith.constant 0 : i32
    %c0_i32_0 = arith.constant 0 : i32
    %c0_i32_1 = arith.constant 0 : i32
    %c0_i32_2 = arith.constant 0 : i32
    return %arg0, %c0_i32, %c0_i32_0, %c0_i32_1 : i32, i32, i32, i32
  }
  func.func @transform_1(%arg0: i32) -> (i32, i32, i32) {
    %c0_i32 = arith.constant 0 : i32
    %c0_i32_0 = arith.constant 0 : i32
    %c0_i32_1 = arith.constant 0 : i32
    %c0_i32_2 = arith.constant 0 : i32
    return %c0_i32, %c0_i32_0, %c0_i32_1 : i32, i32, i32
  }
  func.func @transform_2(%arg0: i32) -> (i32, i32, i32, i32) {
    %c0_i32 = arith.constant 0 : i32
    %c0_i32_0 = arith.constant 0 : i32
    %c0_i32_1 = arith.constant 0 : i32
    %c0_i32_2 = arith.constant 0 : i32
    return %arg0, %c0_i32, %c0_i32_0, %c0_i32_1 : i32, i32, i32, i32
  }
}

</mosaic_0001>

<llo_original>
// kernel: tpu_custom_call.1
$region0: #{tpu_custom_call.1}
  #allocation0 [shape = 'u32[]', space=smem, size = 0x4, offset = 0x4, fixed_abs, tag = 'smem constant byte address 0x4 - core index']
  #allocation1 [shape = 'u32[144,128]{1,0:T(1,128)}', space=vmem, size = 0x12000, scoped, tag = 'internal scratch']
  #allocation2 [shape = 'f32[16,16,4]{2,1,0:T(8,128)}', space=vmem, size = 0x20000, scoped, tag = 'scratch operand']
  #allocation3 [shape = 'f32[16,16,4]{2,1,0:T(8,128)}', space=vmem, size = 0x20000, scoped, tag = 'scratch operand']
  #allocation4 [shape = 'f32[18,18,4]{2,1,0:T(8,128)}', space=vmem, size = 0x36000, scoped, tag = 'scratch operand']
  #allocation5 [shape = 'f32[18,16,12]{2,1,0:T(8,128)}', space=vmem, size = 0x24000, scoped, tag = 'scratch operand']
  %s0 = inlined_call_operand.vmem [shape: f32[2,16,16,4], index: 0, kind: input, shape index: {}]
  %s1 = inlined_call_operand.vmem [shape: bf16[12,12,4], index: 1, kind: input, shape index: {}]
  %s2 = inlined_call_operand.vmem [shape: f32[2,16,16,4], index: 2, kind: output, shape index: {}]
  %s3 = sld [smem:[#allocation0]]
  $region48: #{tpu_custom_call.1} parent=0
    _
  %s5 = ssub.s32 1, %s3
  %s6 = scalar_select 0, %s5, %s3
  loop: start=0, step=1, limit=4
  $region2: #{tpu_custom_call.1} parent=0 // loop_pre_header
    _
  $region3: #{tpu_custom_call.1} parent=0 // loop_header
    %s8 = sphi 0, %s12
    %p9 = scmp.ge.s32.totalorder %s8, 4
    %s18 = sphi 0, %s20
    %s21 = sphi 0, %s18
    %s22 = sphi 0, %s21
    %s38 = sphi 0, %s22
    %s42 = sphi 0, %s42
    %s44 = sphi 0, %s42
    %s45 = sphi 0, %s44
    %s59 = sphi 0, %s45
    %s65 = sphi 0, %s67
    %s68 = sphi 0, %s65
    %s69 = sphi 0, %s68
    %s85 = sphi 0, %s69
  $region4: #{tpu_custom_call.1} parent=0 // loop_header_branch
    %11 = sbr.rel (%p9) target = $region8
  $region5: #{tpu_custom_call.1} parent=0 // loop_body
    %s13 = ssub.s32 %s8, 1
    %s14 = ssub.s32 %s8, 2
    %s15 = sadd.s32 %s8, 1
    %s16 = ssub.s32 %s8, %s15
    %p17 = scmp.eq.s32.totalorder %s16, 0
    %s19 = sadd.s32 %s18, 1
    %s20 = scalar_select %p17, %s18, %s19
    %p23 = pneg %p17
    %p24 = scmp.eq.s32.totalorder %s8, 1
    %p25 = por %p23, %p24
    %p26 = scmp.ne.s32.totalorder %s18, %s21
    %p27 = scmp.eq.s32.totalorder %s8, 0
    %p28 = por %p26, %p27
    %p29 = scmp.ne.s32.totalorder %s18, %s21
    %p30 = scmp.eq.s32.totalorder %s13, 1
    %p31 = por %p29, %p30
    %p32 = scmp.ne.s32.totalorder %s21, %s22
    %p33 = scmp.eq.s32.totalorder %s13, 0
    %p34 = por %p32, %p33
    %p35 = scmp.ne.s32.totalorder %s21, %s22
    %p36 = scmp.eq.s32.totalorder %s14, 1
    %p37 = por %p35, %p36
    %p39 = scmp.ne.s32.totalorder %s22, %s38
    %p40 = scmp.eq.s32.totalorder %s14, 0
    %p41 = por %p39, %p40
    %s43 = sadd.s32 %s42, 1
    %p46 = scmp.eq.s32.totalorder %s8, 1
    %p47 = scmp.ne.s32.totalorder %s42, %s44
    %p48 = scmp.eq.s32.totalorder %s8, 0
    %p49 = por %p47, %p48
    %p50 = scmp.ne.s32.totalorder %s42, %s44
    %p51 = scmp.eq.s32.totalorder %s13, 1
    %p52 = por %p50, %p51
    %p53 = scmp.ne.s32.totalorder %s44, %s45
    %p54 = scmp.eq.s32.totalorder %s13, 0
    %p55 = por %p53, %p54
    %p56 = scmp.ne.s32.totalorder %s44, %s45
    %p57 = scmp.eq.s32.totalorder %s14, 1
    %p58 = por %p56, %p57
    %p60 = scmp.ne.s32.totalorder %s45, %s59
    %p61 = scmp.eq.s32.totalorder %s14, 0
    %p62 = por %p60, %p61
    %s63 = ssub.s32 %s8, %s15
    %p64 = scmp.eq.s32.totalorder %s63, 0
    %s66 = sadd.s32 %s65, 1
    %s67 = scalar_select %p64, %s65, %s66
    %p70 = pneg %p64
    %p71 = scmp.eq.s32.totalorder %s8, 1
    %p72 = por %p70, %p71
    %p73 = scmp.ne.s32.totalorder %s65, %s68
    %p74 = scmp.eq.s32.totalorder %s8, 0
    %p75 = por %p73, %p74
    %p76 = scmp.ne.s32.totalorder %s65, %s68
    %p77 = scmp.eq.s32.totalorder %s13, 1
    %p78 = por %p76, %p77
    %p79 = scmp.ne.s32.totalorder %s68, %s69
    %p80 = scmp.eq.s32.totalorder %s13, 0
    %p81 = por %p79, %p80
    %p82 = scmp.ne.s32.totalorder %s68, %s69
    %p83 = scmp.eq.s32.totalorder %s14, 1
    %p84 = por %p82, %p83
    %p86 = scmp.ne.s32.totalorder %s69, %s85
    %p87 = scmp.eq.s32.totalorder %s14, 0
    %p88 = por %p86, %p87
    %p89 = scmp.le.s32.totalorder 1, %s8
    %p90 = scmp.lt.s32.totalorder %s8, 3
    %p91 = pnand %p89, %p90
    %p92 = pneg %p91
    // Predicated region
    $region9: #{tpu_custom_call.1} parent=5 // pred_check
      _
    $region10: #{tpu_custom_call.1} parent=5 // pred_check_branch
      %94 = sbr.rel (%p91) target = $region12
    $region11: #{tpu_custom_call.1} parent=5 // pred_region
      %s95 = ssub.s32 %s8, 1
      // Predicated region
      $region13: #{tpu_custom_call.1} parent=11 // pred_check
        %p96 = pneg %p55
      $region14: #{tpu_custom_call.1} parent=11 // pred_check_branch
        %98 = sbr.rel (%p96) target = $region16
      $region15: #{tpu_custom_call.1} parent=11 // pred_region
        _
      $region16: #{tpu_custom_call.1} parent=11 // pred_fallthru
        _
    $region12: #{tpu_custom_call.1} parent=5 // pred_fallthru
      _
    %p99 = scmp.lt.s32.totalorder %s8, 2
    // Predicated region
    $region17: #{tpu_custom_call.1} parent=5 // pred_check
      %p100 = pneg %p99
    $region18: #{tpu_custom_call.1} parent=5 // pred_check_branch
      %102 = sbr.rel (%p100) target = $region20
    $region19: #{tpu_custom_call.1} parent=5 // pred_region
      // Predicated region
      $region21: #{tpu_custom_call.1} parent=19 // pred_check
        %p103 = pneg %p28
      $region22: #{tpu_custom_call.1} parent=19 // pred_check_branch
        %105 = sbr.rel (%p103) target = $region24
      $region23: #{tpu_custom_call.1} parent=19 // pred_region
        %p106 = scmp.lt.s32.totalorder %s8, 1
        %s107 = scalar_select %p106, %s8, 1
        %s108 = smul.addr %s107, 32
        %s109 = smul.addr %s108, 8
        %s110 = scalar_lea.vmem %s0, %s109
      $region24: #{tpu_custom_call.1} parent=19 // pred_fallthru
        _
    $region20: #{tpu_custom_call.1} parent=5 // pred_fallthru
      _
    %p111 = scmp.le.s32.totalorder 1, %s8
    %p112 = scmp.lt.s32.totalorder %s8, 3
    %p113 = pnand %p111, %p112
    %p114 = pneg %p113
    // Predicated region
    $region25: #{tpu_custom_call.1} parent=5 // pred_check
      _
    $region26: #{tpu_custom_call.1} parent=5 // pred_check_branch
      %116 = sbr.rel (%p113) target = $region28
    $region27: #{tpu_custom_call.1} parent=5 // pred_region
      %s117 = ssub.s32 %s8, 1
      %p118 = scmp.lt.s32.totalorder %s13, 1
      %s119 = scalar_select %p118, %s13, 1
      %s120 = smul.addr %s119, 32
      %s121 = smul.addr %s120, 8
      %s122 = scalar_lea.vmem %s0, %s121
      %p123 = pneg %p34
      %p124 = pneg %p31
      %p125 = pneg %p55
      %p126 = pneg %p52
      %p127 = pneg %p81
      %p128 = pneg %p78
      %p129 = scmp.lt.s32.totalorder %s13, 1
      %s130 = scalar_select %p129, %s13, 1
      %s131 = smul.addr %s130, 32
      %s132 = smul.addr %s131, 8
      %s133 = scalar_lea.vmem %s2, %s132
      %p134 = scmp.lt.s32.totalorder %s13, 1
      %s135 = scalar_select %p134, %s13, 1
      %s136 = smul.addr %s135, 32
      %s137 = smul.addr %s136, 8
      %s138 = scalar_lea.vmem %s0, %s137
      %p139 = scmp.lt.s32.totalorder %s13, 1
      %s140 = scalar_select %p139, %s13, 1
      %s141 = smul.addr %s140, 32
      %s142 = smul.addr %s141, 8
      %s143 = scalar_lea.vmem %s2, %s142
      %v145 = vld [vmem:[%s138] sm:$0xff]
      %v146 = vld [vmem:[%s138 + $0x8] sm:$0xff]
      %v147 = vld [vmem:[%s138 + $0x10] sm:$0xff]
      %v148 = vld [vmem:[%s138 + $0x18] sm:$0xff]
      %v149 = vld [vmem:[%s138 + $0x20] sm:$0xff]
      %v150 = vld [vmem:[%s138 + $0x28] sm:$0xff]
      %v151 = vld [vmem:[%s138 + $0x30] sm:$0xff]
      %v152 = vld [vmem:[%s138 + $0x38] sm:$0xff]
      %v153 = vld [vmem:[%s138 + $0x40] sm:$0xff]
      %v154 = vld [vmem:[%s138 + $0x48] sm:$0xff]
      %v155 = vld [vmem:[%s138 + $0x50] sm:$0xff]
      %v156 = vld [vmem:[%s138 + $0x58] sm:$0xff]
      %v157 = vld [vmem:[%s138 + $0x60] sm:$0xff]
      %v158 = vld [vmem:[%s138 + $0x68] sm:$0xff]
      %v159 = vld [vmem:[%s138 + $0x70] sm:$0xff]
      %v160 = vld [vmem:[%s138 + $0x78] sm:$0xff]
      %v161 = vld [vmem:[%s138 + $0x80] sm:$0xff]
      %v162 = vld [vmem:[%s138 + $0x88] sm:$0xff]
      %v163 = vld [vmem:[%s138 + $0x90] sm:$0xff]
      %v164 = vld [vmem:[%s138 + $0x98] sm:$0xff]
      %v165 = vld [vmem:[%s138 + $0xa0] sm:$0xff]
      %v166 = vld [vmem:[%s138 + $0xa8] sm:$0xff]
      %v167 = vld [vmem:[%s138 + $0xb0] sm:$0xff]
      %v168 = vld [vmem:[%s138 + $0xb8] sm:$0xff]
      %v169 = vld [vmem:[%s138 + $0xc0] sm:$0xff]
      %v170 = vld [vmem:[%s138 + $0xc8] sm:$0xff]
      %v171 = vld [vmem:[%s138 + $0xd0] sm:$0xff]
      %v172 = vld [vmem:[%s138 + $0xd8] sm:$0xff]
      %v173 = vld [vmem:[%s138 + $0xe0] sm:$0xff]
      %v174 = vld [vmem:[%s138 + $0xe8] sm:$0xff]
      %v175 = vld [vmem:[%s138 + $0xf0] sm:$0xff]
      %v176 = vld [vmem:[%s138 + $0xf8] sm:$0xff]
      %vm177 = vcmask 31744
      %178 = vst.msk [vmem:[#allocation2] sm:$0xff] %vm177, %v145
      %179 = vst.msk [vmem:[#allocation2 + $0x8] sm:$0xff] %vm177, %v146
      %180 = vst.msk [vmem:[#allocation2 + $0x10] sm:$0xff] %vm177, %v147
      %181 = vst.msk [vmem:[#allocation2 + $0x18] sm:$0xff] %vm177, %v148
      %182 = vst.msk [vmem:[#allocation2 + $0x20] sm:$0xff] %vm177, %v149
      %183 = vst.msk [vmem:[#allocation2 + $0x28] sm:$0xff] %vm177, %v150
      %184 = vst.msk [vmem:[#allocation2 + $0x30] sm:$0xff] %vm177, %v151
      %185 = vst.msk [vmem:[#allocation2 + $0x38] sm:$0xff] %vm177, %v152
      %186 = vst.msk [vmem:[#allocation2 + $0x40] sm:$0xff] %vm177, %v153
      %187 = vst.msk [vmem:[#allocation2 + $0x48] sm:$0xff] %vm177, %v154
      %188 = vst.msk [vmem:[#allocation2 + $0x50] sm:$0xff] %vm177, %v155
      %189 = vst.msk [vmem:[#allocation2 + $0x58] sm:$0xff] %vm177, %v156
      %190 = vst.msk [vmem:[#allocation2 + $0x60] sm:$0xff] %vm177, %v157
      %191 = vst.msk [vmem:[#allocation2 + $0x68] sm:$0xff] %vm177, %v158
      %192 = vst.msk [vmem:[#allocation2 + $0x70] sm:$0xff] %vm177, %v159
      %193 = vst.msk [vmem:[#allocation2 + $0x78] sm:$0xff] %vm177, %v160
      %194 = vst.msk [vmem:[#allocation2 + $0x80] sm:$0xff] %vm177, %v161
      %195 = vst.msk [vmem:[#allocation2 + $0x88] sm:$0xff] %vm177, %v162
      %196 = vst.msk [vmem:[#allocation2 + $0x90] sm:$0xff] %vm177, %v163
      %197 = vst.msk [vmem:[#allocation2 + $0x98] sm:$0xff] %vm177, %v164
      %198 = vst.msk [vmem:[#allocation2 + $0xa0] sm:$0xff] %vm177, %v165
      %199 = vst.msk [vmem:[#allocation2 + $0xa8] sm:$0xff] %vm177, %v166
      %200 = vst.msk [vmem:[#allocation2 + $0xb0] sm:$0xff] %vm177, %v167
      %201 = vst.msk [vmem:[#allocation2 + $0xb8] sm:$0xff] %vm177, %v168
      %202 = vst.msk [vmem:[#allocation2 + $0xc0] sm:$0xff] %vm177, %v169
      %203 = vst.msk [vmem:[#allocation2 + $0xc8] sm:$0xff] %vm177, %v170
      %204 = vst.msk [vmem:[#allocation2 + $0xd0] sm:$0xff] %vm177, %v171
      %205 = vst.msk [vmem:[#allocation2 + $0xd8] sm:$0xff] %vm177, %v172
      %206 = vst.msk [vmem:[#allocation2 + $0xe0] sm:$0xff] %vm177, %v173
      %207 = vst.msk [vmem:[#allocation2 + $0xe8] sm:$0xff] %vm177, %v174
      %208 = vst.msk [vmem:[#allocation2 + $0xf0] sm:$0xff] %vm177, %v175
      %209 = vst.msk [vmem:[#allocation2 + $0xf8] sm:$0xff] %vm177, %v176
      loop: start=0, step=1, limit=2
      $region29: #{tpu_custom_call.1} parent=27 // loop_pre_header
        _
      $region30: #{tpu_custom_call.1} parent=27 // loop_header
        %s211 = sphi 0, %s215
        %p212 = scmp.ge.s32.totalorder %s211, 2
      $region31: #{tpu_custom_call.1} parent=27 // loop_header_branch
        %214 = sbr.rel (%p212) target = $region35
      $region32: #{tpu_custom_call.1} parent=27 // loop_body
        %v216 = vld [vmem:[#allocation2] sm:$0xff]
        %v217 = vld [vmem:[#allocation2 + $0x8] sm:$0xff]
        %v218 = vld [vmem:[#allocation2 + $0x10] sm:$0xff]
        %v219 = vld [vmem:[#allocation2 + $0x18] sm:$0xff]
        %v220 = vld [vmem:[#allocation2 + $0x20] sm:$0xff]
        %v221 = vld [vmem:[#allocation2 + $0x28] sm:$0xff]
        %v222 = vld [vmem:[#allocation2 + $0x30] sm:$0xff]
        %v223 = vld [vmem:[#allocation2 + $0x38] sm:$0xff]
        %v224 = vld [vmem:[#allocation2 + $0x40] sm:$0xff]
        %v225 = vld [vmem:[#allocation2 + $0x48] sm:$0xff]
        %v226 = vld [vmem:[#allocation2 + $0x50] sm:$0xff]
        %v227 = vld [vmem:[#allocation2 + $0x58] sm:$0xff]
        %v228 = vld [vmem:[#allocation2 + $0x60] sm:$0xff]
        %v229 = vld [vmem:[#allocation2 + $0x68] sm:$0xff]
        %v230 = vld [vmem:[#allocation2 + $0x70] sm:$0xff]
        %v231 = vld [vmem:[#allocation2 + $0x78] sm:$0xff]
        %v232 = vld [vmem:[#allocation2 + $0x80] sm:$0xff]
        %v233 = vld [vmem:[#allocation2 + $0x88] sm:$0xff]
        %v234 = vld [vmem:[#allocation2 + $0x90] sm:$0xff]
        %v235 = vld [vmem:[#allocation2 + $0x98] sm:$0xff]
        %v236 = vld [vmem:[#allocation2 + $0xa0] sm:$0xff]
        %v237 = vld [vmem:[#allocation2 + $0xa8] sm:$0xff]
        %v238 = vld [vmem:[#allocation2 + $0xb0] sm:$0xff]
        %v239 = vld [vmem:[#allocation2 + $0xb8] sm:$0xff]
        %v240 = vld [vmem:[#allocation2 + $0xc0] sm:$0xff]
        %v241 = vld [vmem:[#allocation2 + $0xc8] sm:$0xff]
        %v242 = vld [vmem:[#allocation2 + $0xd0] sm:$0xff]
        %v243 = vld [vmem:[#allocation2 + $0xd8] sm:$0xff]
        %v244 = vld [vmem:[#allocation2 + $0xe0] sm:$0xff]
        %v245 = vld [vmem:[#allocation2 + $0xe8] sm:$0xff]
        %v246 = vld [vmem:[#allocation2 + $0xf0] sm:$0xff]
        %v247 = vld [vmem:[#allocation2 + $0xf8] sm:$0xff]
        %248 = vst.msk [vmem:[#allocation3] sm:$0xff] %vm177, %v216
        %249 = vst.msk [vmem:[#allocation3 + $0x8] sm:$0xff] %vm177, %v217
        %250 = vst.msk [vmem:[#allocation3 + $0x10] sm:$0xff] %vm177, %v218
        %251 = vst.msk [vmem:[#allocation3 + $0x18] sm:$0xff] %vm177, %v219
        %252 = vst.msk [vmem:[#allocation3 + $0x20] sm:$0xff] %vm177, %v220
        %253 = vst.msk [vmem:[#allocation3 + $0x28] sm:$0xff] %vm177, %v221
        %254 = vst.msk [vmem:[#allocation3 + $0x30] sm:$0xff] %vm177, %v222
        %255 = vst.msk [vmem:[#allocation3 + $0x38] sm:$0xff] %vm177, %v223
        %256 = vst.msk [vmem:[#allocation3 + $0x40] sm:$0xff] %vm177, %v224
        %257 = vst.msk [vmem:[#allocation3 + $0x48] sm:$0xff] %vm177, %v225
        %258 = vst.msk [vmem:[#allocation3 + $0x50] sm:$0xff] %vm177, %v226
        %259 = vst.msk [vmem:[#allocation3 + $0x58] sm:$0xff] %vm177, %v227
        %260 = vst.msk [vmem:[#allocation3 + $0x60] sm:$0xff] %vm177, %v228
        %261 = vst.msk [vmem:[#allocation3 + $0x68] sm:$0xff] %vm177, %v229
        %262 = vst.msk [vmem:[#allocation3 + $0x70] sm:$0xff] %vm177, %v230
        %263 = vst.msk [vmem:[#allocation3 + $0x78] sm:$0xff] %vm177, %v231
        %264 = vst.msk [vmem:[#allocation3 + $0x80] sm:$0xff] %vm177, %v232
        %265 = vst.msk [vmem:[#allocation3 + $0x88] sm:$0xff] %vm177, %v233
        %266 = vst.msk [vmem:[#allocation3 + $0x90] sm:$0xff] %vm177, %v234
        %267 = vst.msk [vmem:[#allocation3 + $0x98] sm:$0xff] %vm177, %v235
        %268 = vst.msk [vmem:[#allocation3 + $0xa0] sm:$0xff] %vm177, %v236
        %269 = vst.msk [vmem:[#allocation3 + $0xa8] sm:$0xff] %vm177, %v237
        %270 = vst.msk [vmem:[#allocation3 + $0xb0] sm:$0xff] %vm177, %v238
        %271 = vst.msk [vmem:[#allocation3 + $0xb8] sm:$0xff] %vm177, %v239
        %272 = vst.msk [vmem:[#allocation3 + $0xc0] sm:$0xff] %vm177, %v240
        %273 = vst.msk [vmem:[#allocation3 + $0xc8] sm:$0xff] %vm177, %v241
        %274 = vst.msk [vmem:[#allocation3 + $0xd0] sm:$0xff] %vm177, %v242
        %275 = vst.msk [vmem:[#allocation3 + $0xd8] sm:$0xff] %vm177, %v243
        %276 = vst.msk [vmem:[#allocation3 + $0xe0] sm:$0xff] %vm177, %v244
        %277 = vst.msk [vmem:[#allocation3 + $0xe8] sm:$0xff] %vm177, %v245
        %278 = vst.msk [vmem:[#allocation3 + $0xf0] sm:$0xff] %vm177, %v246
        %279 = vst.msk [vmem:[#allocation3 + $0xf8] sm:$0xff] %vm177, %v247
        %v280 = vld [vmem:[#allocation2] sm:$0xff]
        %v281 = vld [vmem:[#allocation2 + $0x8] sm:$0xff]
        %v282 = vld [vmem:[#allocation2 + $0x10] sm:$0xff]
        %v283 = vld [vmem:[#allocation2 + $0x18] sm:$0xff]
        %v284 = vld [vmem:[#allocation2 + $0x20] sm:$0xff]
        %v285 = vld [vmem:[#allocation2 + $0x28] sm:$0xff]
        %v286 = vld [vmem:[#allocation2 + $0x30] sm:$0xff]
        %v287 = vld [vmem:[#allocation2 + $0x38] sm:$0xff]
        %v288 = vld [vmem:[#allocation2 + $0x40] sm:$0xff]
        %v289 = vld [vmem:[#allocation2 + $0x48] sm:$0xff]
        %v290 = vld [vmem:[#allocation2 + $0x50] sm:$0xff]
        %v291 = vld [vmem:[#allocation2 + $0x58] sm:$0xff]
        %v292 = vld [vmem:[#allocation2 + $0x60] sm:$0xff]
        %v293 = vld [vmem:[#allocation2 + $0x68] sm:$0xff]
        %v294 = vld [vmem:[#allocation2 + $0x70] sm:$0xff]
        %v295 = vld [vmem:[#allocation2 + $0x78] sm:$0xff]
        %v296 = vld [vmem:[#allocation2 + $0x80] sm:$0xff]
        %v297 = vld [vmem:[#allocation2 + $0x88] sm:$0xff]
        %v298 = vld [vmem:[#allocation2 + $0x90] sm:$0xff]
        %v299 = vld [vmem:[#allocation2 + $0x98] sm:$0xff]
        %v300 = vld [vmem:[#allocation2 + $0xa0] sm:$0xff]
        %v301 = vld [vmem:[#allocation2 + $0xa8] sm:$0xff]
        %v302 = vld [vmem:[#allocation2 + $0xb0] sm:$0xff]
        %v303 = vld [vmem:[#allocation2 + $0xb8] sm:$0xff]
        %v304 = vld [vmem:[#allocation2 + $0xc0] sm:$0xff]
        %v305 = vld [vmem:[#allocation2 + $0xc8] sm:$0xff]
        %v306 = vld [vmem:[#allocation2 + $0xd0] sm:$0xff]
        %v307 = vld [vmem:[#allocation2 + $0xd8] sm:$0xff]
        %v308 = vld [vmem:[#allocation2 + $0xe0] sm:$0xff]
        %v309 = vld [vmem:[#allocation2 + $0xe8] sm:$0xff]
        %v310 = vld [vmem:[#allocation2 + $0xf0] sm:$0xff]
        %v311 = vld [vmem:[#allocation2 + $0xf8] sm:$0xff]
        %s312 = scalar_lea.vmem [#allocation4], 24
        %313 = vst.msk [vmem:[%s312 + $0x1] sm:$0xff] %vm177, %v280
        %314 = vst.msk [vmem:[%s312 + $0x9] sm:$0xff] %vm177, %v281
        %315 = vst.msk [vmem:[%s312 + $0x19] sm:$0xff] %vm177, %v282
        %316 = vst.msk [vmem:[%s312 + $0x21] sm:$0xff] %vm177, %v283
        %317 = vst.msk [vmem:[%s312 + $0x31] sm:$0xff] %vm177, %v284
        %318 = vst.msk [vmem:[%s312 + $0x39] sm:$0xff] %vm177, %v285
        %319 = vst.msk [vmem:[%s312 + $0x49] sm:$0xff] %vm177, %v286
        %320 = vst.msk [vmem:[%s312 + $0x51] sm:$0xff] %vm177, %v287
        %321 = vst.msk [vmem:[%s312 + $0x61] sm:$0xff] %vm177, %v288
        %322 = vst.msk [vmem:[%s312 + $0x69] sm:$0xff] %vm177, %v289
        %323 = vst.msk [vmem:[%s312 + $0x79] sm:$0xff] %vm177, %v290
        %324 = vst.msk [vmem:[%s312 + $0x81] sm:$0xff] %vm177, %v291
        %325 = vst.msk [vmem:[%s312 + $0x91] sm:$0xff] %vm177, %v292
        %326 = vst.msk [vmem:[%s312 + $0x99] sm:$0xff] %vm177, %v293
        %327 = vst.msk [vmem:[%s312 + $0xa9] sm:$0xff] %vm177, %v294
        %328 = vst.msk [vmem:[%s312 + $0xb1] sm:$0xff] %vm177, %v295
        %329 = vst.msk [vmem:[%s312 + $0xc1] sm:$0xff] %vm177, %v296
        %330 = vst.msk [vmem:[%s312 + $0xc9] sm:$0xff] %vm177, %v297
        %331 = vst.msk [vmem:[%s312 + $0xd9] sm:$0xff] %vm177, %v298
        %332 = vst.msk [vmem:[%s312 + $0xe1] sm:$0xff] %vm177, %v299
        %333 = vst.msk [vmem:[%s312 + $0xf1] sm:$0xff] %vm177, %v300
        %334 = vst.msk [vmem:[%s312 + $0xf9] sm:$0xff] %vm177, %v301
        %335 = vst.msk [vmem:[%s312 + $0x109] sm:$0xff] %vm177, %v302
        %336 = vst.msk [vmem:[%s312 + $0x111] sm:$0xff] %vm177, %v303
        %337 = vst.msk [vmem:[%s312 + $0x121] sm:$0xff] %vm177, %v304
        %338 = vst.msk [vmem:[%s312 + $0x129] sm:$0xff] %vm177, %v305
        %339 = vst.msk [vmem:[%s312 + $0x139] sm:$0xff] %vm177, %v306
        %340 = vst.msk [vmem:[%s312 + $0x141] sm:$0xff] %vm177, %v307
        %341 = vst.msk [vmem:[%s312 + $0x151] sm:$0xff] %vm177, %v308
        %342 = vst.msk [vmem:[%s312 + $0x159] sm:$0xff] %vm177, %v309
        %343 = vst.msk [vmem:[%s312 + $0x169] sm:$0xff] %vm177, %v310
        %344 = vst.msk [vmem:[%s312 + $0x171] sm:$0xff] %vm177, %v311
        %345 = vst.msk [vmem:[#allocation4 + $0x1] sm:$0xff] %vm177, %v282
        %346 = vst.msk [vmem:[#allocation4 + $0x9] sm:$0xff] %vm177, %v283
        %s347 = scalar_lea.vmem [#allocation4], 408
        %348 = vst.msk [vmem:[%s347 + $0x1] sm:$0xff] %vm177, %v308
        %349 = vst.msk [vmem:[%s347 + $0x9] sm:$0xff] %vm177, %v309
        %v350 = vld [vmem:[#allocation4 + $0x2] sm:$0x1]
        %v351 = vld [vmem:[#allocation4 + $0x1a] sm:$0x1]
        %v352 = vld [vmem:[#allocation4 + $0x32] sm:$0x1]
        %v353 = vld [vmem:[#allocation4 + $0x4a] sm:$0x1]
        %v354 = vld [vmem:[#allocation4 + $0x62] sm:$0x1]
        %v355 = vld [vmem:[#allocation4 + $0x7a] sm:$0x1]
        %v356 = vld [vmem:[#allocation4 + $0x92] sm:$0x1]
        %v357 = vld [vmem:[#allocation4 + $0xaa] sm:$0x1]
        %v358 = vld [vmem:[#allocation4 + $0xc2] sm:$0x1]
        %v359 = vld [vmem:[#allocation4 + $0xda] sm:$0x1]
        %v360 = vld [vmem:[#allocation4 + $0xf2] sm:$0x1]
        %v361 = vld [vmem:[#allocation4 + $0x10a] sm:$0x1]
        %v362 = vld [vmem:[#allocation4 + $0x122] sm:$0x1]
        %v363 = vld [vmem:[#allocation4 + $0x13a] sm:$0x1]
        %v364 = vld [vmem:[#allocation4 + $0x152] sm:$0x1]
        %v365 = vld [vmem:[#allocation4 + $0x16a] sm:$0x1]
        %v366 = vld [vmem:[#allocation4 + $0x182] sm:$0x1]
        %v367 = vld [vmem:[#allocation4 + $0x19a] sm:$0x1]
        %vm368 = vcmask 24576
        %369 = vst.msk [vmem:[#allocation4] sm:$0x1] %vm368, %v350
        %370 = vst.msk [vmem:[#allocation4 + $0x18] sm:$0x1] %vm368, %v351
        %371 = vst.msk [vmem:[#allocation4 + $0x30] sm:$0x1] %vm368, %v352
        %372 = vst.msk [vmem:[#allocation4 + $0x48] sm:$0x1] %vm368, %v353
        %373 = vst.msk [vmem:[#allocation4 + $0x60] sm:$0x1] %vm368, %v354
        %374 = vst.msk [vmem:[#allocation4 + $0x78] sm:$0x1] %vm368, %v355
        %375 = vst.msk [vmem:[#allocation4 + $0x90] sm:$0x1] %vm368, %v356
        %376 = vst.msk [vmem:[#allocation4 + $0xa8] sm:$0x1] %vm368, %v357
        %377 = vst.msk [vmem:[#allocation4 + $0xc0] sm:$0x1] %vm368, %v358
        %378 = vst.msk [vmem:[#allocation4 + $0xd8] sm:$0x1] %vm368, %v359
        %379 = vst.msk [vmem:[#allocation4 + $0xf0] sm:$0x1] %vm368, %v360
        %380 = vst.msk [vmem:[#allocation4 + $0x108] sm:$0x1] %vm368, %v361
        %381 = vst.msk [vmem:[#allocation4 + $0x120] sm:$0x1] %vm368, %v362
        %382 = vst.msk [vmem:[#allocation4 + $0x138] sm:$0x1] %vm368, %v363
        %383 = vst.msk [vmem:[#allocation4 + $0x150] sm:$0x1] %vm368, %v364
        %384 = vst.msk [vmem:[#allocation4 + $0x168] sm:$0x1] %vm368, %v365
        %385 = vst.msk [vmem:[#allocation4 + $0x180] sm:$0x1] %vm368, %v366
        %386 = vst.msk [vmem:[#allocation4 + $0x198] sm:$0x1] %vm368, %v367
        %v387 = vld [vmem:[#allocation4 + $0xf] sm:$0x1]
        %v388 = vld [vmem:[#allocation4 + $0x27] sm:$0x1]
        %v389 = vld [vmem:[#allocation4 + $0x3f] sm:$0x1]
        %v390 = vld [vmem:[#allocation4 + $0x57] sm:$0x1]
        %v391 = vld [vmem:[#allocation4 + $0x6f] sm:$0x1]
        %v392 = vld [vmem:[#allocation4 + $0x87] sm:$0x1]
        %v393 = vld [vmem:[#allocation4 + $0x9f] sm:$0x1]
        %v394 = vld [vmem:[#allocation4 + $0xb7] sm:$0x1]
        %v395 = vld [vmem:[#allocation4 + $0xcf] sm:$0x1]
        %v396 = vld [vmem:[#allocation4 + $0xe7] sm:$0x1]
        %v397 = vld [vmem:[#allocation4 + $0xff] sm:$0x1]
        %v398 = vld [vmem:[#allocation4 + $0x117] sm:$0x1]
        %v399 = vld [vmem:[#allocation4 + $0x12f] sm:$0x1]
        %v400 = vld [vmem:[#allocation4 + $0x147] sm:$0x1]
        %v401 = vld [vmem:[#allocation4 + $0x15f] sm:$0x1]
        %v402 = vld [vmem:[#allocation4 + $0x177] sm:$0x1]
        %v403 = vld [vmem:[#allocation4 + $0x18f] sm:$0x1]
        %v404 = vld [vmem:[#allocation4 + $0x1a7] sm:$0x1]
        %405 = vst.msk [vmem:[#allocation4 + $0x11] sm:$0x1] %vm368, %v387
        %406 = vst.msk [vmem:[#allocation4 + $0x29] sm:$0x1] %vm368, %v388
        %407 = vst.msk [vmem:[#allocation4 + $0x41] sm:$0x1] %vm368, %v389
        %408 = vst.msk [vmem:[#allocation4 + $0x59] sm:$0x1] %vm368, %v390
        %409 = vst.msk [vmem:[#allocation4 + $0x71] sm:$0x1] %vm368, %v391
        %410 = vst.msk [vmem:[#allocation4 + $0x89] sm:$0x1] %vm368, %v392
        %411 = vst.msk [vmem:[#allocation4 + $0xa1] sm:$0x1] %vm368, %v393
        %412 = vst.msk [vmem:[#allocation4 + $0xb9] sm:$0x1] %vm368, %v394
        %413 = vst.msk [vmem:[#allocation4 + $0xd1] sm:$0x1] %vm368, %v395
        %414 = vst.msk [vmem:[#allocation4 + $0xe9] sm:$0x1] %vm368, %v396
        %415 = vst.msk [vmem:[#allocation4 + $0x101] sm:$0x1] %vm368, %v397
        %416 = vst.msk [vmem:[#allocation4 + $0x119] sm:$0x1] %vm368, %v398
        %417 = vst.msk [vmem:[#allocation4 + $0x131] sm:$0x1] %vm368, %v399
        %418 = vst.msk [vmem:[#allocation4 + $0x149] sm:$0x1] %vm368, %v400
        %419 = vst.msk [vmem:[#allocation4 + $0x161] sm:$0x1] %vm368, %v401
        %420 = vst.msk [vmem:[#allocation4 + $0x179] sm:$0x1] %vm368, %v402
        %421 = vst.msk [vmem:[#allocation4 + $0x191] sm:$0x1] %vm368, %v403
        %422 = vst.msk [vmem:[#allocation4 + $0x1a9] sm:$0x1] %vm368, %v404
        %v423 = vld [vmem:[#allocation4] sm:$0xff]
        %v424 = vld [vmem:[#allocation4 + $0x8] sm:$0xff]
        %v425 = vld [vmem:[#allocation4 + $0x18] sm:$0xff]
        %v426 = vld [vmem:[#allocation4 + $0x20] sm:$0xff]
        %v427 = vld [vmem:[#allocation4 + $0x30] sm:$0xff]
        %v428 = vld [vmem:[#allocation4 + $0x38] sm:$0xff]
        %v429 = vld [vmem:[#allocation4 + $0x48] sm:$0xff]
        %v430 = vld [vmem:[#allocation4 + $0x50] sm:$0xff]
        %v431 = vld [vmem:[#allocation4 + $0x60] sm:$0xff]
        %v432 = vld [vmem:[#allocation4 + $0x68] sm:$0xff]
        %v433 = vld [vmem:[#allocation4 + $0x78] sm:$0xff]
        %v434 = vld [vmem:[#allocation4 + $0x80] sm:$0xff]
        %v435 = vld [vmem:[#allocation4 + $0x90] sm:$0xff]
        %v436 = vld [vmem:[#allocation4 + $0x98] sm:$0xff]
        %v437 = vld [vmem:[#allocation4 + $0xa8] sm:$0xff]
        %v438 = vld [vmem:[#allocation4 + $0xb0] sm:$0xff]
        %v439 = vld [vmem:[#allocation4 + $0xc0] sm:$0xff]
        %v440 = vld [vmem:[#allocation4 + $0xc8] sm:$0xff]
        %v441 = vld [vmem:[#allocation4 + $0xd8] sm:$0xff]
        %v442 = vld [vmem:[#allocation4 + $0xe0] sm:$0xff]
        %v443 = vld [vmem:[#allocation4 + $0xf0] sm:$0xff]
        %v444 = vld [vmem:[#allocation4 + $0xf8] sm:$0xff]
        %v445 = vld [vmem:[#allocation4 + $0x108] sm:$0xff]
        %v446 = vld [vmem:[#allocation4 + $0x110] sm:$0xff]
        %v447 = vld [vmem:[#allocation4 + $0x120] sm:$0xff]
        %v448 = vld [vmem:[#allocation4 + $0x128] sm:$0xff]
        %v449 = vld [vmem:[#allocation4 + $0x138] sm:$0xff]
        %v450 = vld [vmem:[#allocation4 + $0x140] sm:$0xff]
        %v451 = vld [vmem:[#allocation4 + $0x150] sm:$0xff]
        %v452 = vld [vmem:[#allocation4 + $0x158] sm:$0xff]
        %v453 = vld [vmem:[#allocation4 + $0x168] sm:$0xff]
        %v454 = vld [vmem:[#allocation4 + $0x170] sm:$0xff]
        %v455 = vld [vmem:[#allocation4 + $0x180] sm:$0xff]
        %v456 = vld [vmem:[#allocation4 + $0x188] sm:$0xff]
        %v457 = vld [vmem:[#allocation4 + $0x198] sm:$0xff]
        %v458 = vld [vmem:[#allocation4 + $0x1a0] sm:$0xff]
        %459 = vst.msk [vmem:[#allocation5] sm:$0xff] %vm177, %v423
        %460 = vst.msk [vmem:[#allocation5 + $0x8] sm:$0xff] %vm177, %v424
        %461 = vst.msk [vmem:[#allocation5 + $0x10] sm:$0xff] %vm177, %v425
        %462 = vst.msk [vmem:[#allocation5 + $0x18] sm:$0xff] %vm177, %v426
        %463 = vst.msk [vmem:[#allocation5 + $0x20] sm:$0xff] %vm177, %v427
        %464 = vst.msk [vmem:[#allocation5 + $0x28] sm:$0xff] %vm177, %v428
        %465 = vst.msk [vmem:[#allocation5 + $0x30] sm:$0xff] %vm177, %v429
        %466 = vst.msk [vmem:[#allocation5 + $0x38] sm:$0xff] %vm177, %v430
        %467 = vst.msk [vmem:[#allocation5 + $0x40] sm:$0xff] %vm177, %v431
        %468 = vst.msk [vmem:[#allocation5 + $0x48] sm:$0xff] %vm177, %v432
        %469 = vst.msk [vmem:[#allocation5 + $0x50] sm:$0xff] %vm177, %v433
        %470 = vst.msk [vmem:[#allocation5 + $0x58] sm:$0xff] %vm177, %v434
        %471 = vst.msk [vmem:[#allocation5 + $0x60] sm:$0xff] %vm177, %v435
        %472 = vst.msk [vmem:[#allocation5 + $0x68] sm:$0xff] %vm177, %v436
        %473 = vst.msk [vmem:[#allocation5 + $0x70] sm:$0xff] %vm177, %v437
        %474 = vst.msk [vmem:[#allocation5 + $0x78] sm:$0xff] %vm177, %v438
        %475 = vst.msk [vmem:[#allocation5 + $0x80] sm:$0xff] %vm177, %v439
        %476 = vst.msk [vmem:[#allocation5 + $0x88] sm:$0xff] %vm177, %v440
        %477 = vst.msk [vmem:[#allocation5 + $0x90] sm:$0xff] %vm177, %v441
        %478 = vst.msk [vmem:[#allocation5 + $0x98] sm:$0xff] %vm177, %v442
        %479 = vst.msk [vmem:[#allocation5 + $0xa0] sm:$0xff] %vm177, %v443
        %480 = vst.msk [vmem:[#allocation5 + $0xa8] sm:$0xff] %vm177, %v444
        %481 = vst.msk [vmem:[#allocation5 + $0xb0] sm:$0xff] %vm177, %v445
        %482 = vst.msk [vmem:[#allocation5 + $0xb8] sm:$0xff] %vm177, %v446
        %483 = vst.msk [vmem:[#allocation5 + $0xc0] sm:$0xff] %vm177, %v447
        %484 = vst.msk [vmem:[#allocation5 + $0xc8] sm:$0xff] %vm177, %v448
        %485 = vst.msk [vmem:[#allocation5 + $0xd0] sm:$0xff] %vm177, %v449
        %486 = vst.msk [vmem:[#allocation5 + $0xd8] sm:$0xff] %vm177, %v450
        %487 = vst.msk [vmem:[#allocation5 + $0xe0] sm:$0xff] %vm177, %v451
        %488 = vst.msk [vmem:[#allocation5 + $0xe8] sm:$0xff] %vm177, %v452
        %489 = vst.msk [vmem:[#allocation5 + $0xf0] sm:$0xff] %vm177, %v453
        %490 = vst.msk [vmem:[#allocation5 + $0xf8] sm:$0xff] %vm177, %v454
        %491 = vst.msk [vmem:[#allocation5 + $0x100] sm:$0xff] %vm177, %v455
        %492 = vst.msk [vmem:[#allocation5 + $0x108] sm:$0xff] %vm177, %v456
        %493 = vst.msk [vmem:[#allocation5 + $0x110] sm:$0xff] %vm177, %v457
        %494 = vst.msk [vmem:[#allocation5 + $0x118] sm:$0xff] %vm177, %v458
        %v495 = vld [vmem:[#allocation4 + $0x1] sm:$0xff]
        %v496 = vld [vmem:[#allocation4 + $0x9] sm:$0xff]
        %v497 = vld [vmem:[#allocation4 + $0x19] sm:$0xff]
        %v498 = vld [vmem:[#allocation4 + $0x21] sm:$0xff]
        %v499 = vld [vmem:[#allocation4 + $0x31] sm:$0xff]
        %v500 = vld [vmem:[#allocation4 + $0x39] sm:$0xff]
        %v501 = vld [vmem:[#allocation4 + $0x49] sm:$0xff]
        %v502 = vld [vmem:[#allocation4 + $0x51] sm:$0xff]
        %v503 = vld [vmem:[#allocation4 + $0x61] sm:$0xff]
        %v504 = vld [vmem:[#allocation4 + $0x69] sm:$0xff]
        %v505 = vld [vmem:[#allocation4 + $0x79] sm:$0xff]
        %v506 = vld [vmem:[#allocation4 + $0x81] sm:$0xff]
        %v507 = vld [vmem:[#allocation4 + $0x91] sm:$0xff]
        %v508 = vld [vmem:[#allocation4 + $0x99] sm:$0xff]
        %v509 = vld [vmem:[#allocation4 + $0xa9] sm:$0xff]
        %v510 = vld [vmem:[#allocation4 + $0xb1] sm:$0xff]
        %v511 = vld [vmem:[#allocation4 + $0xc1] sm:$0xff]
        %v512 = vld [vmem:[#allocation4 + $0xc9] sm:$0xff]
        %v513 = vld [vmem:[#allocation4 + $0xd9] sm:$0xff]
        %v514 = vld [vmem:[#allocation4 + $0xe1] sm:$0xff]
        %v515 = vld [vmem:[#allocation4 + $0xf1] sm:$0xff]
        %v516 = vld [vmem:[#allocation4 + $0xf9] sm:$0xff]
        %v517 = vld [vmem:[#allocation4 + $0x109] sm:$0xff]
        %v518 = vld [vmem:[#allocation4 + $0x111] sm:$0xff]
        %v519 = vld [vmem:[#allocation4 + $0x121] sm:$0xff]
        %v520 = vld [vmem:[#allocation4 + $0x129] sm:$0xff]
        %v521 = vld [vmem:[#allocation4 + $0x139] sm:$0xff]
        %v522 = vld [vmem:[#allocation4 + $0x141] sm:$0xff]
        %v523 = vld [vmem:[#allocation4 + $0x151] sm:$0xff]
        %v524 = vld [vmem:[#allocation4 + $0x159] sm:$0xff]
        %v525 = vld [vmem:[#allocation4 + $0x169] sm:$0xff]
        %v526 = vld [vmem:[#allocation4 + $0x171] sm:$0xff]
        %v527 = vld [vmem:[#allocation4 + $0x181] sm:$0xff]
        %v528 = vld [vmem:[#allocation4 + $0x189] sm:$0xff]
        %v529 = vld [vmem:[#allocation4 + $0x199] sm:$0xff]
        %v530 = vld [vmem:[#allocation4 + $0x1a1] sm:$0xff]
        %567 = vrot.lane.b32.xlu0 %v495, 4
        %v568 = vpop.permute.xlu0 %567
        %569 = vrot.lane.b32.xlu0 %v496, 4
        %v570 = vpop.permute.xlu0 %569
        %571 = vrot.lane.b32.xlu0 %v497, 4
        %v572 = vpop.permute.xlu0 %571
        %573 = vrot.lane.b32.xlu0 %v498, 4
        %v574 = vpop.permute.xlu0 %573
        %575 = vrot.lane.b32.xlu0 %v499, 4
        %v576 = vpop.permute.xlu0 %575
        %577 = vrot.lane.b32.xlu0 %v500, 4
        %v578 = vpop.permute.xlu0 %577
        %579 = vrot.lane.b32.xlu0 %v501, 4
        %v580 = vpop.permute.xlu0 %579
        %581 = vrot.lane.b32.xlu0 %v502, 4
        %v582 = vpop.permute.xlu0 %581
        %583 = vrot.lane.b32.xlu0 %v503, 4
        %v584 = vpop.permute.xlu0 %583
        %585 = vrot.lane.b32.xlu0 %v504, 4
        %v586 = vpop.permute.xlu0 %585
        %587 = vrot.lane.b32.xlu0 %v505, 4
        %v588 = vpop.permute.xlu0 %587
        %589 = vrot.lane.b32.xlu0 %v506, 4
        %v590 = vpop.permute.xlu0 %589
        %591 = vrot.lane.b32.xlu0 %v507, 4
        %v592 = vpop.permute.xlu0 %591
        %593 = vrot.lane.b32.xlu0 %v508, 4
        %v594 = vpop.permute.xlu0 %593
        %595 = vrot.lane.b32.xlu0 %v509, 4
        %v596 = vpop.permute.xlu0 %595
        %597 = vrot.lane.b32.xlu0 %v510, 4
        %v598 = vpop.permute.xlu0 %597
        %599 = vrot.lane.b32.xlu0 %v511, 4
        %v600 = vpop.permute.xlu0 %599
        %601 = vrot.lane.b32.xlu0 %v512, 4
        %v602 = vpop.permute.xlu0 %601
        %603 = vrot.lane.b32.xlu0 %v513, 4
        %v604 = vpop.permute.xlu0 %603
        %605 = vrot.lane.b32.xlu0 %v514, 4
        %v606 = vpop.permute.xlu0 %605
        %607 = vrot.lane.b32.xlu0 %v515, 4
        %v608 = vpop.permute.xlu0 %607
        %609 = vrot.lane.b32.xlu0 %v516, 4
        %v610 = vpop.permute.xlu0 %609
        %611 = vrot.lane.b32.xlu0 %v517, 4
        %v612 = vpop.permute.xlu0 %611
        %613 = vrot.lane.b32.xlu0 %v518, 4
        %v614 = vpop.permute.xlu0 %613
        %615 = vrot.lane.b32.xlu0 %v519, 4
        %v616 = vpop.permute.xlu0 %615
        %617 = vrot.lane.b32.xlu0 %v520, 4
        %v618 = vpop.permute.xlu0 %617
        %619 = vrot.lane.b32.xlu0 %v521, 4
        %v620 = vpop.permute.xlu0 %619
        %621 = vrot.lane.b32.xlu0 %v522, 4
        %v622 = vpop.permute.xlu0 %621
        %623 = vrot.lane.b32.xlu0 %v523, 4
        %v624 = vpop.permute.xlu0 %623
        %625 = vrot.lane.b32.xlu0 %v524, 4
        %v626 = vpop.permute.xlu0 %625
        %627 = vrot.lane.b32.xlu0 %v525, 4
        %v628 = vpop.permute.xlu0 %627
        %629 = vrot.lane.b32.xlu0 %v526, 4
        %v630 = vpop.permute.xlu0 %629
        %631 = vrot.lane.b32.xlu0 %v527, 4
        %v632 = vpop.permute.xlu0 %631
        %633 = vrot.lane.b32.xlu0 %v528, 4
        %v634 = vpop.permute.xlu0 %633
        %635 = vrot.lane.b32.xlu0 %v529, 4
        %v636 = vpop.permute.xlu0 %635
        %637 = vrot.lane.b32.xlu0 %v530, 4
        %v638 = vpop.permute.xlu0 %637
        %vm675 = vcmask 64544
        %676 = vst.msk [vmem:[#allocation5] sm:$0xff] %vm675, %v568
        %677 = vst.msk [vmem:[#allocation5 + $0x8] sm:$0xff] %vm675, %v570
        %678 = vst.msk [vmem:[#allocation5 + $0x10] sm:$0xff] %vm675, %v572
        %679 = vst.msk [vmem:[#allocation5 + $0x18] sm:$0xff] %vm675, %v574
        %680 = vst.msk [vmem:[#allocation5 + $0x20] sm:$0xff] %vm675, %v576
        %681 = vst.msk [vmem:[#allocation5 + $0x28] sm:$0xff] %vm675, %v578
        %682 = vst.msk [vmem:[#allocation5 + $0x30] sm:$0xff] %vm675, %v580
        %683 = vst.msk [vmem:[#allocation5 + $0x38] sm:$0xff] %vm675, %v582
        %684 = vst.msk [vmem:[#allocation5 + $0x40] sm:$0xff] %vm675, %v584
        %685 = vst.msk [vmem:[#allocation5 + $0x48] sm:$0xff] %vm675, %v586
        %686 = vst.msk [vmem:[#allocation5 + $0x50] sm:$0xff] %vm675, %v588
        %687 = vst.msk [vmem:[#allocation5 + $0x58] sm:$0xff] %vm675, %v590
        %688 = vst.msk [vmem:[#allocation5 + $0x60] sm:$0xff] %vm675, %v592
        %689 = vst.msk [vmem:[#allocation5 + $0x68] sm:$0xff] %vm675, %v594
        %690 = vst.msk [vmem:[#allocation5 + $0x70] sm:$0xff] %vm675, %v596
        %691 = vst.msk [vmem:[#allocation5 + $0x78] sm:$0xff] %vm675, %v598
        %692 = vst.msk [vmem:[#allocation5 + $0x80] sm:$0xff] %vm675, %v600
        %693 = vst.msk [vmem:[#allocation5 + $0x88] sm:$0xff] %vm675, %v602
        %694 = vst.msk [vmem:[#allocation5 + $0x90] sm:$0xff] %vm675, %v604
        %695 = vst.msk [vmem:[#allocation5 + $0x98] sm:$0xff] %vm675, %v606
        %696 = vst.msk [vmem:[#allocation5 + $0xa0] sm:$0xff] %vm675, %v608
        %697 = vst.msk [vmem:[#allocation5 + $0xa8] sm:$0xff] %vm675, %v610
        %698 = vst.msk [vmem:[#allocation5 + $0xb0] sm:$0xff] %vm675, %v612
        %699 = vst.msk [vmem:[#allocation5 + $0xb8] sm:$0xff] %vm675, %v614
        %700 = vst.msk [vmem:[#allocation5 + $0xc0] sm:$0xff] %vm675, %v616
        %701 = vst.msk [vmem:[#allocation5 + $0xc8] sm:$0xff] %vm675, %v618
        %702 = vst.msk [vmem:[#allocation5 + $0xd0] sm:$0xff] %vm675, %v620
        %703 = vst.msk [vmem:[#allocation5 + $0xd8] sm:$0xff] %vm675, %v622
        %704 = vst.msk [vmem:[#allocation5 + $0xe0] sm:$0xff] %vm675, %v624
        %705 = vst.msk [vmem:[#allocation5 + $0xe8] sm:$0xff] %vm675, %v626
        %706 = vst.msk [vmem:[#allocation5 + $0xf0] sm:$0xff] %vm675, %v628
        %707 = vst.msk [vmem:[#allocation5 + $0xf8] sm:$0xff] %vm675, %v630
        %708 = vst.msk [vmem:[#allocation5 + $0x100] sm:$0xff] %vm675, %v632
        %709 = vst.msk [vmem:[#allocation5 + $0x108] sm:$0xff] %vm675, %v634
        %710 = vst.msk [vmem:[#allocation5 + $0x110] sm:$0xff] %vm675, %v636
        %711 = vst.msk [vmem:[#allocation5 + $0x118] sm:$0xff] %vm675, %v638
        %v712 = vld [vmem:[#allocation4 + $0x2] sm:$0xff]
        %v713 = vld [vmem:[#allocation4 + $0xa] sm:$0xff]
        %v714 = vld [vmem:[#allocation4 + $0x1a] sm:$0xff]
        %v715 = vld [vmem:[#allocation4 + $0x22] sm:$0xff]
        %v716 = vld [vmem:[#allocation4 + $0x32] sm:$0xff]
        %v717 = vld [vmem:[#allocation4 + $0x3a] sm:$0xff]
        %v718 = vld [vmem:[#allocation4 + $0x4a] sm:$0xff]
        %v719 = vld [vmem:[#allocation4 + $0x52] sm:$0xff]
        %v720 = vld [vmem:[#allocation4 + $0x62] sm:$0xff]
        %v721 = vld [vmem:[#allocation4 + $0x6a] sm:$0xff]
        %v722 = vld [vmem:[#allocation4 + $0x7a] sm:$0xff]
        %v723 = vld [vmem:[#allocation4 + $0x82] sm:$0xff]
        %v724 = vld [vmem:[#allocation4 + $0x92] sm:$0xff]
        %v725 = vld [vmem:[#allocation4 + $0x9a] sm:$0xff]
        %v726 = vld [vmem:[#allocation4 + $0xaa] sm:$0xff]
        %v727 = vld [vmem:[#allocation4 + $0xb2] sm:$0xff]
        %v728 = vld [vmem:[#allocation4 + $0xc2] sm:$0xff]
        %v729 = vld [vmem:[#allocation4 + $0xca] sm:$0xff]
        %v730 = vld [vmem:[#allocation4 + $0xda] sm:$0xff]
        %v731 = vld [vmem:[#allocation4 + $0xe2] sm:$0xff]
        %v732 = vld [vmem:[#allocation4 + $0xf2] sm:$0xff]
        %v733 = vld [vmem:[#allocation4 + $0xfa] sm:$0xff]
        %v734 = vld [vmem:[#allocation4 + $0x10a] sm:$0xff]
        %v735 = vld [vmem:[#allocation4 + $0x112] sm:$0xff]
        %v736 = vld [vmem:[#allocation4 + $0x122] sm:$0xff]
        %v737 = vld [vmem:[#allocation4 + $0x12a] sm:$0xff]
        %v738 = vld [vmem:[#allocation4 + $0x13a] sm:$0xff]
        %v739 = vld [vmem:[#allocation4 + $0x142] sm:$0xff]
        %v740 = vld [vmem:[#allocation4 + $0x152] sm:$0xff]
        %v741 = vld [vmem:[#allocation4 + $0x15a] sm:$0xff]
        %v742 = vld [vmem:[#allocation4 + $0x16a] sm:$0xff]
        %v743 = vld [vmem:[#allocation4 + $0x172] sm:$0xff]
        %v744 = vld [vmem:[#allocation4 + $0x182] sm:$0xff]
        %v745 = vld [vmem:[#allocation4 + $0x18a] sm:$0xff]
        %v746 = vld [vmem:[#allocation4 + $0x19a] sm:$0xff]
        %v747 = vld [vmem:[#allocation4 + $0x1a2] sm:$0xff]
        %784 = vrot.lane.b32.xlu0 %v712, 8
        %v785 = vpop.permute.xlu0 %784
        %786 = vrot.lane.b32.xlu0 %v713, 8
        %v787 = vpop.permute.xlu0 %786
        %788 = vrot.lane.b32.xlu0 %v714, 8
        %v789 = vpop.permute.xlu0 %788
        %790 = vrot.lane.b32.xlu0 %v715, 8
        %v791 = vpop.permute.xlu0 %790
        %792 = vrot.lane.b32.xlu0 %v716, 8
        %v793 = vpop.permute.xlu0 %792
        %794 = vrot.lane.b32.xlu0 %v717, 8
        %v795 = vpop.permute.xlu0 %794
        %796 = vrot.lane.b32.xlu0 %v718, 8
        %v797 = vpop.permute.xlu0 %796
        %798 = vrot.lane.b32.xlu0 %v719, 8
        %v799 = vpop.permute.xlu0 %798
        %800 = vrot.lane.b32.xlu0 %v720, 8
        %v801 = vpop.permute.xlu0 %800
        %802 = vrot.lane.b32.xlu0 %v721, 8
        %v803 = vpop.permute.xlu0 %802
        %804 = vrot.lane.b32.xlu0 %v722, 8
        %v805 = vpop.permute.xlu0 %804
        %806 = vrot.lane.b32.xlu0 %v723, 8
        %v807 = vpop.permute.xlu0 %806
        %808 = vrot.lane.b32.xlu0 %v724, 8
        %v809 = vpop.permute.xlu0 %808
        %810 = vrot.lane.b32.xlu0 %v725, 8
        %v811 = vpop.permute.xlu0 %810
        %812 = vrot.lane.b32.xlu0 %v726, 8
        %v813 = vpop.permute.xlu0 %812
        %814 = vrot.lane.b32.xlu0 %v727, 8
        %v815 = vpop.permute.xlu0 %814
        %816 = vrot.lane.b32.xlu0 %v728, 8
        %v817 = vpop.permute.xlu0 %816
        %818 = vrot.lane.b32.xlu0 %v729, 8
        %v819 = vpop.permute.xlu0 %818
        %820 = vrot.lane.b32.xlu0 %v730, 8
        %v821 = vpop.permute.xlu0 %820
        %822 = vrot.lane.b32.xlu0 %v731, 8
        %v823 = vpop.permute.xlu0 %822
        %824 = vrot.lane.b32.xlu0 %v732, 8
        %v825 = vpop.permute.xlu0 %824
        %826 = vrot.lane.b32.xlu0 %v733, 8
        %v827 = vpop.permute.xlu0 %826
        %828 = vrot.lane.b32.xlu0 %v734, 8
        %v829 = vpop.permute.xlu0 %828
        %830 = vrot.lane.b32.xlu0 %v735, 8
        %v831 = vpop.permute.xlu0 %830
        %832 = vrot.lane.b32.xlu0 %v736, 8
        %v833 = vpop.permute.xlu0 %832
        %834 = vrot.lane.b32.xlu0 %v737, 8
        %v835 = vpop.permute.xlu0 %834
        %836 = vrot.lane.b32.xlu0 %v738, 8
        %v837 = vpop.permute.xlu0 %836
        %838 = vrot.lane.b32.xlu0 %v739, 8
        %v839 = vpop.permute.xlu0 %838
        %840 = vrot.lane.b32.xlu0 %v740, 8
        %v841 = vpop.permute.xlu0 %840
        %842 = vrot.lane.b32.xlu0 %v741, 8
        %v843 = vpop.permute.xlu0 %842
        %844 = vrot.lane.b32.xlu0 %v742, 8
        %v845 = vpop.permute.xlu0 %844
        %846 = vrot.lane.b32.xlu0 %v743, 8
        %v847 = vpop.permute.xlu0 %846
        %848 = vrot.lane.b32.xlu0 %v744, 8
        %v849 = vpop.permute.xlu0 %848
        %850 = vrot.lane.b32.xlu0 %v745, 8
        %v851 = vpop.permute.xlu0 %850
        %852 = vrot.lane.b32.xlu0 %v746, 8
        %v853 = vpop.permute.xlu0 %852
        %854 = vrot.lane.b32.xlu0 %v747, 8
        %v855 = vpop.permute.xlu0 %854
        %vm892 = vcmask 97344
        %893 = vst.msk [vmem:[#allocation5] sm:$0xff] %vm892, %v785
        %894 = vst.msk [vmem:[#allocation5 + $0x8] sm:$0xff] %vm892, %v787
        %895 = vst.msk [vmem:[#allocation5 + $0x10] sm:$0xff] %vm892, %v789
        %896 = vst.msk [vmem:[#allocation5 + $0x18] sm:$0xff] %vm892, %v791
        %897 = vst.msk [vmem:[#allocation5 + $0x20] sm:$0xff] %vm892, %v793
        %898 = vst.msk [vmem:[#allocation5 + $0x28] sm:$0xff] %vm892, %v795
        %899 = vst.msk [vmem:[#allocation5 + $0x30] sm:$0xff] %vm892, %v797
        %900 = vst.msk [vmem:[#allocation5 + $0x38] sm:$0xff] %vm892, %v799
        %901 = vst.msk [vmem:[#allocation5 + $0x40] sm:$0xff] %vm892, %v801
        %902 = vst.msk [vmem:[#allocation5 + $0x48] sm:$0xff] %vm892, %v803
        %903 = vst.msk [vmem:[#allocation5 + $0x50] sm:$0xff] %vm892, %v805
        %904 = vst.msk [vmem:[#allocation5 + $0x58] sm:$0xff] %vm892, %v807
        %905 = vst.msk [vmem:[#allocation5 + $0x60] sm:$0xff] %vm892, %v809
        %906 = vst.msk [vmem:[#allocation5 + $0x68] sm:$0xff] %vm892, %v811
        %907 = vst.msk [vmem:[#allocation5 + $0x70] sm:$0xff] %vm892, %v813
        %908 = vst.msk [vmem:[#allocation5 + $0x78] sm:$0xff] %vm892, %v815
        %909 = vst.msk [vmem:[#allocation5 + $0x80] sm:$0xff] %vm892, %v817
        %910 = vst.msk [vmem:[#allocation5 + $0x88] sm:$0xff] %vm892, %v819
        %911 = vst.msk [vmem:[#allocation5 + $0x90] sm:$0xff] %vm892, %v821
        %912 = vst.msk [vmem:[#allocation5 + $0x98] sm:$0xff] %vm892, %v823
        %913 = vst.msk [vmem:[#allocation5 + $0xa0] sm:$0xff] %vm892, %v825
        %914 = vst.msk [vmem:[#allocation5 + $0xa8] sm:$0xff] %vm892, %v827
        %915 = vst.msk [vmem:[#allocation5 + $0xb0] sm:$0xff] %vm892, %v829
        %916 = vst.msk [vmem:[#allocation5 + $0xb8] sm:$0xff] %vm892, %v831
        %917 = vst.msk [vmem:[#allocation5 + $0xc0] sm:$0xff] %vm892, %v833
        %918 = vst.msk [vmem:[#allocation5 + $0xc8] sm:$0xff] %vm892, %v835
        %919 = vst.msk [vmem:[#allocation5 + $0xd0] sm:$0xff] %vm892, %v837
        %920 = vst.msk [vmem:[#allocation5 + $0xd8] sm:$0xff] %vm892, %v839
        %921 = vst.msk [vmem:[#allocation5 + $0xe0] sm:$0xff] %vm892, %v841
        %922 = vst.msk [vmem:[#allocation5 + $0xe8] sm:$0xff] %vm892, %v843
        %923 = vst.msk [vmem:[#allocation5 + $0xf0] sm:$0xff] %vm892, %v845
        %924 = vst.msk [vmem:[#allocation5 + $0xf8] sm:$0xff] %vm892, %v847
        %925 = vst.msk [vmem:[#allocation5 + $0x100] sm:$0xff] %vm892, %v849
        %926 = vst.msk [vmem:[#allocation5 + $0x108] sm:$0xff] %vm892, %v851
        %927 = vst.msk [vmem:[#allocation5 + $0x110] sm:$0xff] %vm892, %v853
        %928 = vst.msk [vmem:[#allocation5 + $0x118] sm:$0xff] %vm892, %v855
        %s929 = smul.u32 %s211, 6
        %v930 = vld [vmem:[#allocation5] sm:$0xff]
        %v931 = vld [vmem:[#allocation5 + $0x8] sm:$0xff]
        %v932 = vld [vmem:[#allocation5 + $0x10] sm:$0xff]
        %v933 = vld [vmem:[#allocation5 + $0x18] sm:$0xff]
        %v934 = vld [vmem:[#allocation5 + $0x20] sm:$0xff]
        %v935 = vld [vmem:[#allocation5 + $0x28] sm:$0xff]
        %v936 = vld [vmem:[#allocation5 + $0x30] sm:$0xff]
        %v937 = vld [vmem:[#allocation5 + $0x38] sm:$0xff]
        %v938 = vld [vmem:[#allocation5 + $0x40] sm:$0xff]
        %v939 = vld [vmem:[#allocation5 + $0x48] sm:$0xff]
        %v940 = vld [vmem:[#allocation5 + $0x50] sm:$0xff]
        %v941 = vld [vmem:[#allocation5 + $0x58] sm:$0xff]
        %v942 = vld [vmem:[#allocation5 + $0x60] sm:$0xff]
        %v943 = vld [vmem:[#allocation5 + $0x68] sm:$0xff]
        %v944 = vld [vmem:[#allocation5 + $0x70] sm:$0xff]
        %v945 = vld [vmem:[#allocation5 + $0x78] sm:$0xff]
        %v946 = vld [vmem:[#allocation5 + $0x80] sm:$0xff]
        %v947 = vld [vmem:[#allocation5 + $0x88] sm:$0xff]
        %v948 = vld [vmem:[#allocation5 + $0x90] sm:$0xff]
        %v949 = vld [vmem:[#allocation5 + $0x98] sm:$0xff]
        %v950 = vld [vmem:[#allocation5 + $0xa0] sm:$0xff]
        %v951 = vld [vmem:[#allocation5 + $0xa8] sm:$0xff]
        %v952 = vld [vmem:[#allocation5 + $0xb0] sm:$0xff]
        %v953 = vld [vmem:[#allocation5 + $0xb8] sm:$0xff]
        %v954 = vld [vmem:[#allocation5 + $0xc0] sm:$0xff]
        %v955 = vld [vmem:[#allocation5 + $0xc8] sm:$0xff]
        %v956 = vld [vmem:[#allocation5 + $0xd0] sm:$0xff]
        %v957 = vld [vmem:[#allocation5 + $0xd8] sm:$0xff]
        %v958 = vld [vmem:[#allocation5 + $0xe0] sm:$0xff]
        %v959 = vld [vmem:[#allocation5 + $0xe8] sm:$0xff]
        %v960 = vld [vmem:[#allocation5 + $0xf0] sm:$0xff]
        %v961 = vld [vmem:[#allocation5 + $0xf8] sm:$0xff]
        %v962 = vpack.c.bf16 %v931, %v930
        %v963 = vpack.c.bf16 %v933, %v932
        %v964 = vpack.c.bf16 %v935, %v934
        %v965 = vpack.c.bf16 %v937, %v936
        %v966 = vpack.c.bf16 %v939, %v938
        %v967 = vpack.c.bf16 %v941, %v940
        %v968 = vpack.c.bf16 %v943, %v942
        %v969 = vpack.c.bf16 %v945, %v944
        %v970 = vpack.c.bf16 %v947, %v946
        %v971 = vpack.c.bf16 %v949, %v948
        %v972 = vpack.c.bf16 %v951, %v950
        %v973 = vpack.c.bf16 %v953, %v952
        %v974 = vpack.c.bf16 %v955, %v954
        %v975 = vpack.c.bf16 %v957, %v956
        %v976 = vpack.c.bf16 %v959, %v958
        %v977 = vpack.c.bf16 %v961, %v960
        %s978 = smul.u32 %s929, 2
        %s979 = smul.addr %s978, 4
        %s980 = scalar_lea.vmem %s1, %s979
        %v981 = vld [vmem:[%s980] sm:$0xf]
        %v982 = vld [vmem:[%s980 + $0x4] sm:$0x3]
        %s983 = scalar_lea.vmem [#allocation5], 16
        %v984 = vld [vmem:[%s983] sm:$0xff]
        %v985 = vld [vmem:[%s983 + $0x8] sm:$0xff]
        %v986 = vld [vmem:[%s983 + $0x10] sm:$0xff]
        %v987 = vld [vmem:[%s983 + $0x18] sm:$0xff]
        %v988 = vld [vmem:[%s983 + $0x20] sm:$0xff]
        %v989 = vld [vmem:[%s983 + $0x28] sm:$0xff]
        %v990 = vld [vmem:[%s983 + $0x30] sm:$0xff]
        %v991 = vld [vmem:[%s983 + $0x38] sm:$0xff]
        %v992 = vld [vmem:[%s983 + $0x40] sm:$0xff]
        %v993 = vld [vmem:[%s983 + $0x48] sm:$0xff]
        %v994 = vld [vmem:[%s983 + $0x50] sm:$0xff]
        %v995 = vld [vmem:[%s983 + $0x58] sm:$0xff]
        %v996 = vld [vmem:[%s983 + $0x60] sm:$0xff]
        %v997 = vld [vmem:[%s983 + $0x68] sm:$0xff]
        %v998 = vld [vmem:[%s983 + $0x70] sm:$0xff]
        %v999 = vld [vmem:[%s983 + $0x78] sm:$0xff]
        %v1000 = vld [vmem:[%s983 + $0x80] sm:$0xff]
        %v1001 = vld [vmem:[%s983 + $0x88] sm:$0xff]
        %v1002 = vld [vmem:[%s983 + $0x90] sm:$0xff]
        %v1003 = vld [vmem:[%s983 + $0x98] sm:$0xff]
        %v1004 = vld [vmem:[%s983 + $0xa0] sm:$0xff]
        %v1005 = vld [vmem:[%s983 + $0xa8] sm:$0xff]
        %v1006 = vld [vmem:[%s983 + $0xb0] sm:$0xff]
        %v1007 = vld [vmem:[%s983 + $0xb8] sm:$0xff]
        %v1008 = vld [vmem:[%s983 + $0xc0] sm:$0xff]
        %v1009 = vld [vmem:[%s983 + $0xc8] sm:$0xff]
        %v1010 = vld [vmem:[%s983 + $0xd0] sm:$0xff]
        %v1011 = vld [vmem:[%s983 + $0xd8] sm:$0xff]
        %v1012 = vld [vmem:[%s983 + $0xe0] sm:$0xff]
        %v1013 = vld [vmem:[%s983 + $0xe8] sm:$0xff]
        %v1014 = vld [vmem:[%s983 + $0xf0] sm:$0xff]
        %v1015 = vld [vmem:[%s983 + $0xf8] sm:$0xff]
        %v1016 = vpack.c.bf16 %v985, %v984
        %v1017 = vpack.c.bf16 %v987, %v986
        %v1018 = vpack.c.bf16 %v989, %v988
        %v1019 = vpack.c.bf16 %v991, %v990
        %v1020 = vpack.c.bf16 %v993, %v992
        %v1021 = vpack.c.bf16 %v995, %v994
        %v1022 = vpack.c.bf16 %v997, %v996
        %v1023 = vpack.c.bf16 %v999, %v998
        %v1024 = vpack.c.bf16 %v1001, %v1000
        %v1025 = vpack.c.bf16 %v1003, %v1002
        %v1026 = vpack.c.bf16 %v1005, %v1004
        %v1027 = vpack.c.bf16 %v1007, %v1006
        %v1028 = vpack.c.bf16 %v1009, %v1008
        %v1029 = vpack.c.bf16 %v1011, %v1010
        %v1030 = vpack.c.bf16 %v1013, %v1012
        %v1031 = vpack.c.bf16 %v1015, %v1014
        %s1032 = sadd.s32 %s929, 1
        %s1033 = smul.u32 %s1032, 2
        %s1034 = smul.addr %s1033, 4
        %s1035 = scalar_lea.vmem %s1, %s1034
        %v1036 = vld [vmem:[%s1035] sm:$0xf]
        %v1037 = vld [vmem:[%s1035 + $0x4] sm:$0x3]
        %v1040 = vunpack.c.l.b16 %v1036
        %v1041 = vunpack.c.l.b16 %v1037
        %v1042 = vpack.c.b16 %v1041, %v1040
        %vm1043 = vcmask 97280
        %v1045 = vsel %vm1043, %v1016, 0
        %v1048 = vsel %vm1043, %v1017, 0
        %v1051 = vsel %vm1043, %v1018, 0
        %v1054 = vsel %vm1043, %v1019, 0
        %v1057 = vsel %vm1043, %v1020, 0
        %v1060 = vsel %vm1043, %v1021, 0
        %v1063 = vsel %vm1043, %v1022, 0
        %v1066 = vsel %vm1043, %v1023, 0
        %v1069 = vsel %vm1043, %v1024, 0
        %v1072 = vsel %vm1043, %v1025, 0
        %v1075 = vsel %vm1043, %v1026, 0
        %v1078 = vsel %vm1043, %v1027, 0
        %v1081 = vsel %vm1043, %v1028, 0
        %v1084 = vsel %vm1043, %v1029, 0
        %v1087 = vsel %vm1043, %v1030, 0
        %v1090 = vsel %vm1043, %v1031, 0
        %vm1092 = vcmask 1045504
        %v1094 = vsel %vm1092, %v1042, 0
        %1096 = vmatprep.subr.bf16.mxu0 0
        %1097 = vmatpush1.bf16.msra.mxu0 %v1094
        %1098 = vmatprep.subr.bf16.mxu0 0
        %1099 = vmatpush1.bf16.msra.mxu0 0
        %1100 = vmatprep.subr.bf16.mxu0 0
        %1101 = vmatpush1.bf16.msra.mxu0 0
        %1102 = vmatprep.subr.bf16.mxu0 0
        %1103 = vmatpush1.bf16.msra.mxu0 0
        %1104 = vmatprep.subr.bf16.mxu0 0
        %1105 = vmatpush1.bf16.msra.mxu0 0
        %1106 = vmatprep.subr.bf16.mxu0 0
        %1107 = vmatpush1.bf16.msra.mxu0 0
        %1108 = vmatprep.subr.bf16.mxu0 0
        %1109 = vmatpush1.bf16.msra.mxu0 0
        %1110 = vmatprep.subr.bf16.mxu0 0
        %1111 = vmatpush1.bf16.msra.mxu0 0
        %1112 = vmatprep.subr.bf16.mxu0 0
        %1113 = vmatpush1.bf16.msra.mxu0 0
        %1114 = vmatprep.subr.bf16.mxu0 0
        %1115 = vmatpush1.bf16.msra.mxu0 0
        %1116 = vmatprep.subr.bf16.mxu0 0
        %1117 = vmatpush1.bf16.msra.mxu0 0
        %1118 = vmatprep.subr.bf16.mxu0 0
        %1119 = vmatpush1.bf16.msra.mxu0 0
        %1120 = vmatprep.subr.bf16.mxu0 0
        %1121 = vmatpush1.bf16.msra.mxu0 0
        %1122 = vmatprep.subr.bf16.mxu0 0
        %1123 = vmatpush1.bf16.msra.mxu0 0
        %1124 = vmatprep.subr.bf16.mxu0 0
        %1125 = vmatpush1.bf16.msra.mxu0 0
        %1126 = vmatprep.subr.bf16.mxu0 0
        %1127 = vmatpush1.bf16.msra.mxu0 0
        %1128 = vmatprep.mubr.bf16.mxu0 0
        %1129 = vmatmul.mubr.bf16.gmra.mrb[0].mxu0 %v1045
        %v1130 = vpop.f32.mrb[0].mxu0
        %v1131 = vadd.f32 0.0, %v1130
        %v1132 = vpop.f32.mrb[0].mxu0
        %v1133 = vpop.f32.mrb[0].mxu0
        %v1134 = vadd.f32 0.0, %v1133
        %v1135 = vpop.f32.mrb[0].mxu0
        %1136 = vmatprep.mubr.bf16.mxu0 0
        %1137 = vmatmul.mubr.bf16.gmra.mrb[0].mxu0 %v1048
        %v1138 = vpop.f32.mrb[0].mxu0
        %v1139 = vadd.f32 0.0, %v1138
        %v1140 = vpop.f32.mrb[0].mxu0
        %v1141 = vpop.f32.mrb[0].mxu0
        %v1142 = vadd.f32 0.0, %v1141
        %v1143 = vpop.f32.mrb[0].mxu0
        %1144 = vmatprep.mubr.bf16.mxu0 0
        %1145 = vmatmul.mubr.bf16.gmra.mrb[0].mxu0 %v1051
        %v1146 = vpop.f32.mrb[0].mxu0
        %v1147 = vadd.f32 0.0, %v1146
        %v1148 = vpop.f32.mrb[0].mxu0
        %v1149 = vpop.f32.mrb[0].mxu0
        %v1150 = vadd.f32 0.0, %v1149
        %v1151 = vpop.f32.mrb[0].mxu0
        %1152 = vmatprep.mubr.bf16.mxu0 0
        %1153 = vmatmul.mubr.bf16.gmra.mrb[0].mxu0 %v1054
        %v1154 = vpop.f32.mrb[0].mxu0
        %v1155 = vadd.f32 0.0, %v1154
        %v1156 = vpop.f32.mrb[0].mxu0
        %v1157 = vpop.f32.mrb[0].mxu0
        %v1158 = vadd.f32 0.0, %v1157
        %v1159 = vpop.f32.mrb[0].mxu0
        %1160 = vmatprep.mubr.bf16.mxu0 0
        %1161 = vmatmul.mubr.bf16.gmra.mrb[0].mxu0 %v1057
        %v1162 = vpop.f32.mrb[0].mxu0
        %v1163 = vadd.f32 0.0, %v1162
        %v1164 = vpop.f32.mrb[0].mxu0
        %v1165 = vpop.f32.mrb[0].mxu0
        %v1166 = vadd.f32 0.0, %v1165
        %v1167 = vpop.f32.mrb[0].mxu0
        %1168 = vmatprep.mubr.bf16.mxu0 0
        %1169 = vmatmul.mubr.bf16.gmra.mrb[0].mxu0 %v1060
        %v1170 = vpop.f32.mrb[0].mxu0
        %v1171 = vadd.f32 0.0, %v1170
        %v1172 = vpop.f32.mrb[0].mxu0
        %v1173 = vpop.f32.mrb[0].mxu0
        %v1174 = vadd.f32 0.0, %v1173
        %v1175 = vpop.f32.mrb[0].mxu0
        %1176 = vmatprep.mubr.bf16.mxu0 0
        %1177 = vmatmul.mubr.bf16.gmra.mrb[0].mxu0 %v1063
        %v1178 = vpop.f32.mrb[0].mxu0
        %v1179 = vadd.f32 0.0, %v1178
        %v1180 = vpop.f32.mrb[0].mxu0
        %v1181 = vpop.f32.mrb[0].mxu0
        %v1182 = vadd.f32 0.0, %v1181
        %v1183 = vpop.f32.mrb[0].mxu0
        %1184 = vmatprep.mubr.bf16.mxu0 0
        %1185 = vmatmul.mubr.bf16.gmra.mrb[0].mxu0 %v1066
        %v1186 = vpop.f32.mrb[0].mxu0
        %v1187 = vadd.f32 0.0, %v1186
        %v1188 = vpop.f32.mrb[0].mxu0
        %v1189 = vpop.f32.mrb[0].mxu0
        %v1190 = vadd.f32 0.0, %v1189
        %v1191 = vpop.f32.mrb[0].mxu0
        %1192 = vmatprep.mubr.bf16.mxu0 0
        %1193 = vmatmul.mubr.bf16.gmra.mrb[0].mxu0 %v1069
        %v1194 = vpop.f32.mrb[0].mxu0
        %v1195 = vadd.f32 0.0, %v1194
        %v1196 = vpop.f32.mrb[0].mxu0
        %v1197 = vpop.f32.mrb[0].mxu0
        %v1198 = vadd.f32 0.0, %v1197
        %v1199 = vpop.f32.mrb[0].mxu0
        %1200 = vmatprep.mubr.bf16.mxu0 0
        %1201 = vmatmul.mubr.bf16.gmra.mrb[0].mxu0 %v1072
        %v1202 = vpop.f32.mrb[0].mxu0
        %v1203 = vadd.f32 0.0, %v1202
        %v1204 = vpop.f32.mrb[0].mxu0
        %v1205 = vpop.f32.mrb[0].mxu0
        %v1206 = vadd.f32 0.0, %v1205
        %v1207 = vpop.f32.mrb[0].mxu0
        %1208 = vmatprep.mubr.bf16.mxu0 0
        %1209 = vmatmul.mubr.bf16.gmra.mrb[0].mxu0 %v1075
        %v1210 = vpop.f32.mrb[0].mxu0
        %v1211 = vadd.f32 0.0, %v1210
        %v1212 = vpop.f32.mrb[0].mxu0
        %v1213 = vpop.f32.mrb[0].mxu0
        %v1214 = vadd.f32 0.0, %v1213
        %v1215 = vpop.f32.mrb[0].mxu0
        %1216 = vmatprep.mubr.bf16.mxu0 0
        %1217 = vmatmul.mubr.bf16.gmra.mrb[0].mxu0 %v1078
        %v1218 = vpop.f32.mrb[0].mxu0
        %v1219 = vadd.f32 0.0, %v1218
        %v1220 = vpop.f32.mrb[0].mxu0
        %v1221 = vpop.f32.mrb[0].mxu0
        %v1222 = vadd.f32 0.0, %v1221
        %v1223 = vpop.f32.mrb[0].mxu0
        %1224 = vmatprep.mubr.bf16.mxu0 0
        %1225 = vmatmul.mubr.bf16.gmra.mrb[0].mxu0 %v1081
        %v1226 = vpop.f32.mrb[0].mxu0
        %v1227 = vadd.f32 0.0, %v1226
        %v1228 = vpop.f32.mrb[0].mxu0
        %v1229 = vpop.f32.mrb[0].mxu0
        %v1230 = vadd.f32 0.0, %v1229
        %v1231 = vpop.f32.mrb[0].mxu0
        %1232 = vmatprep.mubr.bf16.mxu0 0
        %1233 = vmatmul.mubr.bf16.gmra.mrb[0].mxu0 %v1084
        %v1234 = vpop.f32.mrb[0].mxu0
        %v1235 = vadd.f32 0.0, %v1234
        %v1236 = vpop.f32.mrb[0].mxu0
        %v1237 = vpop.f32.mrb[0].mxu0
        %v1238 = vadd.f32 0.0, %v1237
        %v1239 = vpop.f32.mrb[0].mxu0
        %1240 = vmatprep.mubr.bf16.mxu0 0
        %1241 = vmatmul.mubr.bf16.gmra.mrb[0].mxu0 %v1087
        %v1242 = vpop.f32.mrb[0].mxu0
        %v1243 = vadd.f32 0.0, %v1242
        %v1244 = vpop.f32.mrb[0].mxu0
        %v1245 = vpop.f32.mrb[0].mxu0
        %v1246 = vadd.f32 0.0, %v1245
        %v1247 = vpop.f32.mrb[0].mxu0
        %1248 = vmatprep.mubr.bf16.mxu0 0
        %1249 = vmatmul.mubr.bf16.gmra.mrb[0].mxu0 %v1090
        %v1250 = vpop.f32.mrb[0].mxu0
        %v1251 = vadd.f32 0.0, %v1250
        %v1252 = vpop.f32.mrb[0].mxu0
        %v1253 = vpop.f32.mrb[0].mxu0
        %v1254 = vadd.f32 0.0, %v1253
        %v1255 = vpop.f32.mrb[0].mxu0
        %1256 = vdwg.mxu0
        %v1259 = vunpack.c.l.b16 %v981
        %v1260 = vunpack.c.l.b16 %v982
        %v1261 = vpack.c.b16 %v1260, %v1259
        %v1263 = vsel %vm1043, %v962, 0
        %v1266 = vsel %vm1043, %v963, 0
        %v1269 = vsel %vm1043, %v964, 0
        %v1272 = vsel %vm1043, %v965, 0
        %v1275 = vsel %vm1043, %v966, 0
        %v1278 = vsel %vm1043, %v967, 0
        %v1281 = vsel %vm1043, %v968, 0
        %v1284 = vsel %vm1043, %v969, 0
        %v1287 = vsel %vm1043, %v970, 0
        %v1290 = vsel %vm1043, %v971, 0
        %v1293 = vsel %vm1043, %v972, 0
        %v1296 = vsel %vm1043, %v973, 0
        %v1299 = vsel %vm1043, %v974, 0
        %v1302 = vsel %vm1043, %v975, 0
        %v1305 = vsel %vm1043, %v976, 0
        %v1308 = vsel %vm1043, %v977, 0
        %v1311 = vsel %vm1092, %v1261, 0
        %1313 = vmatprep.subr.bf16.mxu0 0
        %1314 = vmatpush1.bf16.msra.mxu0 %v1311
        %1315 = vmatprep.subr.bf16.mxu0 0
        %1316 = vmatpush1.bf16.msra.mxu0 0
        %1317 = vmatprep.subr.bf16.mxu0 0
        %1318 = vmatpush1.bf16.msra.mxu0 0
        %1319 = vmatprep.subr.bf16.mxu0 0
        %1320 = vmatpush1.bf16.msra.mxu0 0
        %1321 = vmatprep.subr.bf16.mxu0 0
        %1322 = vmatpush1.bf16.msra.mxu0 0
        %1323 = vmatprep.subr.bf16.mxu0 0
        %1324 = vmatpush1.bf16.msra.mxu0 0
        %1325 = vmatprep.subr.bf16.mxu0 0
        %1326 = vmatpush1.bf16.msra.mxu0 0
        %1327 = vmatprep.subr.bf16.mxu0 0
        %1328 = vmatpush1.bf16.msra.mxu0 0
        %1329 = vmatprep.subr.bf16.mxu0 0
        %1330 = vmatpush1.bf16.msra.mxu0 0
        %1331 = vmatprep.subr.bf16.mxu0 0
        %1332 = vmatpush1.bf16.msra.mxu0 0
        %1333 = vmatprep.subr.bf16.mxu0 0
        %1334 = vmatpush1.bf16.msra.mxu0 0
        %1335 = vmatprep.subr.bf16.mxu0 0
        %1336 = vmatpush1.bf16.msra.mxu0 0
        %1337 = vmatprep.subr.bf16.mxu0 0
        %1338 = vmatpush1.bf16.msra.mxu0 0
        %1339 = vmatprep.subr.bf16.mxu0 0
        %1340 = vmatpush1.bf16.msra.mxu0 0
        %1341 = vmatprep.subr.bf16.mxu0 0
        %1342 = vmatpush1.bf16.msra.mxu0 0
        %1343 = vmatprep.subr.bf16.mxu0 0
        %1344 = vmatpush1.bf16.msra.mxu0 0
        %1345 = vmatprep.mubr.bf16.mxu0 0
        %1346 = vmatmul.mubr.bf16.gmra.mrb[0].mxu0 %v1263
        %v1347 = vpop.f32.mrb[0].mxu0
        %v1348 = vadd.f32 %v1131, %v1347
        %v1349 = vpop.f32.mrb[0].mxu0
        %v1350 = vpop.f32.mrb[0].mxu0
        %v1351 = vadd.f32 %v1134, %v1350
        %v1352 = vpop.f32.mrb[0].mxu0
        %1353 = vmatprep.mubr.bf16.mxu0 0
        %1354 = vmatmul.mubr.bf16.gmra.mrb[0].mxu0 %v1266
        %v1355 = vpop.f32.mrb[0].mxu0
        %v1356 = vadd.f32 %v1139, %v1355
        %v1357 = vpop.f32.mrb[0].mxu0
        %v1358 = vpop.f32.mrb[0].mxu0
        %v1359 = vadd.f32 %v1142, %v1358
        %v1360 = vpop.f32.mrb[0].mxu0
        %1361 = vmatprep.mubr.bf16.mxu0 0
        %1362 = vmatmul.mubr.bf16.gmra.mrb[0].mxu0 %v1269
        %v1363 = vpop.f32.mrb[0].mxu0
        %v1364 = vadd.f32 %v1147, %v1363
        %v1365 = vpop.f32.mrb[0].mxu0
        %v1366 = vpop.f32.mrb[0].mxu0
        %v1367 = vadd.f32 %v1150, %v1366
        %v1368 = vpop.f32.mrb[0].mxu0
        %1369 = vmatprep.mubr.bf16.mxu0 0
        %1370 = vmatmul.mubr.bf16.gmra.mrb[0].mxu0 %v1272
        %v1371 = vpop.f32.mrb[0].mxu0
        %v1372 = vadd.f32 %v1155, %v1371
        %v1373 = vpop.f32.mrb[0].mxu0
        %v1374 = vpop.f32.mrb[0].mxu0
        %v1375 = vadd.f32 %v1158, %v1374
        %v1376 = vpop.f32.mrb[0].mxu0
        %1377 = vmatprep.mubr.bf16.mxu0 0
        %1378 = vmatmul.mubr.bf16.gmra.mrb[0].mxu0 %v1275
        %v1379 = vpop.f32.mrb[0].mxu0
        %v1380 = vadd.f32 %v1163, %v1379
        %v1381 = vpop.f32.mrb[0].mxu0
        %v1382 = vpop.f32.mrb[0].mxu0
        %v1383 = vadd.f32 %v1166, %v1382
        %v1384 = vpop.f32.mrb[0].mxu0
        %1385 = vmatprep.mubr.bf16.mxu0 0
        %1386 = vmatmul.mubr.bf16.gmra.mrb[0].mxu0 %v1278
        %v1387 = vpop.f32.mrb[0].mxu0
        %v1388 = vadd.f32 %v1171, %v1387
        %v1389 = vpop.f32.mrb[0].mxu0
        %v1390 = vpop.f32.mrb[0].mxu0
        %v1391 = vadd.f32 %v1174, %v1390
        %v1392 = vpop.f32.mrb[0].mxu0
        %1393 = vmatprep.mubr.bf16.mxu0 0
        %1394 = vmatmul.mubr.bf16.gmra.mrb[0].mxu0 %v1281
        %v1395 = vpop.f32.mrb[0].mxu0
        %v1396 = vadd.f32 %v1179, %v1395
        %v1397 = vpop.f32.mrb[0].mxu0
        %v1398 = vpop.f32.mrb[0].mxu0
        %v1399 = vadd.f32 %v1182, %v1398
        %v1400 = vpop.f32.mrb[0].mxu0
        %1401 = vmatprep.mubr.bf16.mxu0 0
        %1402 = vmatmul.mubr.bf16.gmra.mrb[0].mxu0 %v1284
        %v1403 = vpop.f32.mrb[0].mxu0
        %v1404 = vadd.f32 %v1187, %v1403
        %v1405 = vpop.f32.mrb[0].mxu0
        %v1406 = vpop.f32.mrb[0].mxu0
        %v1407 = vadd.f32 %v1190, %v1406
        %v1408 = vpop.f32.mrb[0].mxu0
        %1409 = vmatprep.mubr.bf16.mxu0 0
        %1410 = vmatmul.mubr.bf16.gmra.mrb[0].mxu0 %v1287
        %v1411 = vpop.f32.mrb[0].mxu0
        %v1412 = vadd.f32 %v1195, %v1411
        %v1413 = vpop.f32.mrb[0].mxu0
        %v1414 = vpop.f32.mrb[0].mxu0
        %v1415 = vadd.f32 %v1198, %v1414
        %v1416 = vpop.f32.mrb[0].mxu0
        %1417 = vmatprep.mubr.bf16.mxu0 0
        %1418 = vmatmul.mubr.bf16.gmra.mrb[0].mxu0 %v1290
        %v1419 = vpop.f32.mrb[0].mxu0
        %v1420 = vadd.f32 %v1203, %v1419
        %v1421 = vpop.f32.mrb[0].mxu0
        %v1422 = vpop.f32.mrb[0].mxu0
        %v1423 = vadd.f32 %v1206, %v1422
        %v1424 = vpop.f32.mrb[0].mxu0
        %1425 = vmatprep.mubr.bf16.mxu0 0
        %1426 = vmatmul.mubr.bf16.gmra.mrb[0].mxu0 %v1293
        %v1427 = vpop.f32.mrb[0].mxu0
        %v1428 = vadd.f32 %v1211, %v1427
        %v1429 = vpop.f32.mrb[0].mxu0
        %v1430 = vpop.f32.mrb[0].mxu0
        %v1431 = vadd.f32 %v1214, %v1430
        %v1432 = vpop.f32.mrb[0].mxu0
        %1433 = vmatprep.mubr.bf16.mxu0 0
        %1434 = vmatmul.mubr.bf16.gmra.mrb[0].mxu0 %v1296
        %v1435 = vpop.f32.mrb[0].mxu0
        %v1436 = vadd.f32 %v1219, %v1435
        %v1437 = vpop.f32.mrb[0].mxu0
        %v1438 = vpop.f32.mrb[0].mxu0
        %v1439 = vadd.f32 %v1222, %v1438
        %v1440 = vpop.f32.mrb[0].mxu0
        %1441 = vmatprep.mubr.bf16.mxu0 0
        %1442 = vmatmul.mubr.bf16.gmra.mrb[0].mxu0 %v1299
        %v1443 = vpop.f32.mrb[0].mxu0
        %v1444 = vadd.f32 %v1227, %v1443
        %v1445 = vpop.f32.mrb[0].mxu0
        %v1446 = vpop.f32.mrb[0].mxu0
        %v1447 = vadd.f32 %v1230, %v1446
        %v1448 = vpop.f32.mrb[0].mxu0
        %1449 = vmatprep.mubr.bf16.mxu0 0
        %1450 = vmatmul.mubr.bf16.gmra.mrb[0].mxu0 %v1302
        %v1451 = vpop.f32.mrb[0].mxu0
        %v1452 = vadd.f32 %v1235, %v1451
        %v1453 = vpop.f32.mrb[0].mxu0
        %v1454 = vpop.f32.mrb[0].mxu0
        %v1455 = vadd.f32 %v1238, %v1454
        %v1456 = vpop.f32.mrb[0].mxu0
        %1457 = vmatprep.mubr.bf16.mxu0 0
        %1458 = vmatmul.mubr.bf16.gmra.mrb[0].mxu0 %v1305
        %v1459 = vpop.f32.mrb[0].mxu0
        %v1460 = vadd.f32 %v1243, %v1459
        %v1461 = vpop.f32.mrb[0].mxu0
        %v1462 = vpop.f32.mrb[0].mxu0
        %v1463 = vadd.f32 %v1246, %v1462
        %v1464 = vpop.f32.mrb[0].mxu0
        %1465 = vmatprep.mubr.bf16.mxu0 0
        %1466 = vmatmul.mubr.bf16.gmra.mrb[0].mxu0 %v1308
        %v1467 = vpop.f32.mrb[0].mxu0
        %v1468 = vadd.f32 %v1251, %v1467
        %v1469 = vpop.f32.mrb[0].mxu0
        %v1470 = vpop.f32.mrb[0].mxu0
        %v1471 = vadd.f32 %v1254, %v1470
        %v1472 = vpop.f32.mrb[0].mxu0
        %1473 = vdwg.mxu0
        %s1474 = scalar_lea.vmem [#allocation5], 32
        %v1475 = vld [vmem:[%s1474] sm:$0xff]
        %v1476 = vld [vmem:[%s1474 + $0x8] sm:$0xff]
        %v1477 = vld [vmem:[%s1474 + $0x10] sm:$0xff]
        %v1478 = vld [vmem:[%s1474 + $0x18] sm:$0xff]
        %v1479 = vld [vmem:[%s1474 + $0x20] sm:$0xff]
        %v1480 = vld [vmem:[%s1474 + $0x28] sm:$0xff]
        %v1481 = vld [vmem:[%s1474 + $0x30] sm:$0xff]
        %v1482 = vld [vmem:[%s1474 + $0x38] sm:$0xff]
        %v1483 = vld [vmem:[%s1474 + $0x40] sm:$0xff]
        %v1484 = vld [vmem:[%s1474 + $0x48] sm:$0xff]
        %v1485 = vld [vmem:[%s1474 + $0x50] sm:$0xff]
        %v1486 = vld [vmem:[%s1474 + $0x58] sm:$0xff]
        %v1487 = vld [vmem:[%s1474 + $0x60] sm:$0xff]
        %v1488 = vld [vmem:[%s1474 + $0x68] sm:$0xff]
        %v1489 = vld [vmem:[%s1474 + $0x70] sm:$0xff]
        %v1490 = vld [vmem:[%s1474 + $0x78] sm:$0xff]
        %v1491 = vld [vmem:[%s1474 + $0x80] sm:$0xff]
        %v1492 = vld [vmem:[%s1474 + $0x88] sm:$0xff]
        %v1493 = vld [vmem:[%s1474 + $0x90] sm:$0xff]
        %v1494 = vld [vmem:[%s1474 + $0x98] sm:$0xff]
        %v1495 = vld [vmem:[%s1474 + $0xa0] sm:$0xff]
        %v1496 = vld [vmem:[%s1474 + $0xa8] sm:$0xff]
        %v1497 = vld [vmem:[%s1474 + $0xb0] sm:$0xff]
        %v1498 = vld [vmem:[%s1474 + $0xb8] sm:$0xff]
        %v1499 = vld [vmem:[%s1474 + $0xc0] sm:$0xff]
        %v1500 = vld [vmem:[%s1474 + $0xc8] sm:$0xff]
        %v1501 = vld [vmem:[%s1474 + $0xd0] sm:$0xff]
        %v1502 = vld [vmem:[%s1474 + $0xd8] sm:$0xff]
        %v1503 = vld [vmem:[%s1474 + $0xe0] sm:$0xff]
        %v1504 = vld [vmem:[%s1474 + $0xe8] sm:$0xff]
        %v1505 = vld [vmem:[%s1474 + $0xf0] sm:$0xff]
        %v1506 = vld [vmem:[%s1474 + $0xf8] sm:$0xff]
        %v1507 = vpack.c.bf16 %v1476, %v1475
        %v1508 = vpack.c.bf16 %v1478, %v1477
        %v1509 = vpack.c.bf16 %v1480, %v1479
        %v1510 = vpack.c.bf16 %v1482, %v1481
        %v1511 = vpack.c.bf16 %v1484, %v1483
        %v1512 = vpack.c.bf16 %v1486, %v1485
        %v1513 = vpack.c.bf16 %v1488, %v1487
        %v1514 = vpack.c.bf16 %v1490, %v1489
        %v1515 = vpack.c.bf16 %v1492, %v1491
        %v1516 = vpack.c.bf16 %v1494, %v1493
        %v1517 = vpack.c.bf16 %v1496, %v1495
        %v1518 = vpack.c.bf16 %v1498, %v1497
        %v1519 = vpack.c.bf16 %v1500, %v1499
        %v1520 = vpack.c.bf16 %v1502, %v1501
        %v1521 = vpack.c.bf16 %v1504, %v1503
        %v1522 = vpack.c.bf16 %v1506, %v1505
        %s1523 = sadd.s32 %s929, 2
        %s1524 = smul.u32 %s1523, 2
        %s1525 = smul.addr %s1524, 4
        %s1526 = scalar_lea.vmem %s1, %s1525
        %v1527 = vld [vmem:[%s1526] sm:$0xf]
        %v1528 = vld [vmem:[%s1526 + $0x4] sm:$0x3]
        %v1531 = vunpack.c.l.b16 %v1527
        %v1532 = vunpack.c.l.b16 %v1528
        %v1533 = vpack.c.b16 %v1532, %v1531
        %v1535 = vsel %vm1043, %v1507, 0
        %v1538 = vsel %vm1043, %v1508, 0
        %v1541 = vsel %vm1043, %v1509, 0
        %v1544 = vsel %vm1043, %v1510, 0
        %v1547 = vsel %vm1043, %v1511, 0
        %v1550 = vsel %vm1043, %v1512, 0
        %v1553 = vsel %vm1043, %v1513, 0
        %v1556 = vsel %vm1043, %v1514, 0
        %v1559 = vsel %vm1043, %v1515, 0
        %v1562 = vsel %vm1043, %v1516, 0
        %v1565 = vsel %vm1043, %v1517, 0
        %v1568 = vsel %vm1043, %v1518, 0
        %v1571 = vsel %vm1043, %v1519, 0
        %v1574 = vsel %vm1043, %v1520, 0
        %v1577 = vsel %vm1043, %v1521, 0
        %v1580 = vsel %vm1043, %v1522, 0
        %v1583 = vsel %vm1092, %v1533, 0
        %1585 = vmatprep.subr.bf16.mxu0 0
        %1586 = vmatpush1.bf16.msra.mxu0 %v1583
        %1587 = vmatprep.subr.bf16.mxu0 0
        %1588 = vmatpush1.bf16.msra.mxu0 0
        %1589 = vmatprep.subr.bf16.mxu0 0
        %1590 = vmatpush1.bf16.msra.mxu0 0
        %1591 = vmatprep.subr.bf16.mxu0 0
        %1592 = vmatpush1.bf16.msra.mxu0 0
        %1593 = vmatprep.subr.bf16.mxu0 0
        %1594 = vmatpush1.bf16.msra.mxu0 0
        %1595 = vmatprep.subr.bf16.mxu0 0
        %1596 = vmatpush1.bf16.msra.mxu0 0
        %1597 = vmatprep.subr.bf16.mxu0 0
        %1598 = vmatpush1.bf16.msra.mxu0 0
        %1599 = vmatprep.subr.bf16.mxu0 0
        %1600 = vmatpush1.bf16.msra.mxu0 0
        %1601 = vmatprep.subr.bf16.mxu0 0
        %1602 = vmatpush1.bf16.msra.mxu0 0
        %1603 = vmatprep.subr.bf16.mxu0 0
        %1604 = vmatpush1.bf16.msra.mxu0 0
        %1605 = vmatprep.subr.bf16.mxu0 0
        %1606 = vmatpush1.bf16.msra.mxu0 0
        %1607 = vmatprep.subr.bf16.mxu0 0
        %1608 = vmatpush1.bf16.msra.mxu0 0
        %1609 = vmatprep.subr.bf16.mxu0 0
        %1610 = vmatpush1.bf16.msra.mxu0 0
        %1611 = vmatprep.subr.bf16.mxu0 0
        %1612 = vmatpush1.bf16.msra.mxu0 0
        %1613 = vmatprep.subr.bf16.mxu0 0
        %1614 = vmatpush1.bf16.msra.mxu0 0
        %1615 = vmatprep.subr.bf16.mxu0 0
        %1616 = vmatpush1.bf16.msra.mxu0 0
        %1617 = vmatprep.mubr.bf16.mxu0 0
        %1618 = vmatmul.mubr.bf16.gmra.mrb[0].mxu0 %v1535
        %v1619 = vpop.f32.mrb[0].mxu0
        %v1620 = vadd.f32 0.0, %v1619
        %v1621 = vpop.f32.mrb[0].mxu0
        %v1622 = vpop.f32.mrb[0].mxu0
        %v1623 = vadd.f32 0.0, %v1622
        %v1624 = vpop.f32.mrb[0].mxu0
        %1625 = vmatprep.mubr.bf16.mxu0 0
        %1626 = vmatmul.mubr.bf16.gmra.mrb[0].mxu0 %v1538
        %v1627 = vpop.f32.mrb[0].mxu0
        %v1628 = vadd.f32 0.0, %v1627
        %v1629 = vpop.f32.mrb[0].mxu0
        %v1630 = vpop.f32.mrb[0].mxu0
        %v1631 = vadd.f32 0.0, %v1630
        %v1632 = vpop.f32.mrb[0].mxu0
        %1633 = vmatprep.mubr.bf16.mxu0 0
        %1634 = vmatmul.mubr.bf16.gmra.mrb[0].mxu0 %v1541
        %v1635 = vpop.f32.mrb[0].mxu0
        %v1636 = vadd.f32 0.0, %v1635
        %v1637 = vpop.f32.mrb[0].mxu0
        %v1638 = vpop.f32.mrb[0].mxu0
        %v1639 = vadd.f32 0.0, %v1638
        %v1640 = vpop.f32.mrb[0].mxu0
        %1641 = vmatprep.mubr.bf16.mxu0 0
        %1642 = vmatmul.mubr.bf16.gmra.mrb[0].mxu0 %v1544
        %v1643 = vpop.f32.mrb[0].mxu0
        %v1644 = vadd.f32 0.0, %v1643
        %v1645 = vpop.f32.mrb[0].mxu0
        %v1646 = vpop.f32.mrb[0].mxu0
        %v1647 = vadd.f32 0.0, %v1646
        %v1648 = vpop.f32.mrb[0].mxu0
        %1649 = vmatprep.mubr.bf16.mxu0 0
        %1650 = vmatmul.mubr.bf16.gmra.mrb[0].mxu0 %v1547
        %v1651 = vpop.f32.mrb[0].mxu0
        %v1652 = vadd.f32 0.0, %v1651
        %v1653 = vpop.f32.mrb[0].mxu0
        %v1654 = vpop.f32.mrb[0].mxu0
        %v1655 = vadd.f32 0.0, %v1654
        %v1656 = vpop.f32.mrb[0].mxu0
        %1657 = vmatprep.mubr.bf16.mxu0 0
        %1658 = vmatmul.mubr.bf16.gmra.mrb[0].mxu0 %v1550
        %v1659 = vpop.f32.mrb[0].mxu0
        %v1660 = vadd.f32 0.0, %v1659
        %v1661 = vpop.f32.mrb[0].mxu0
        %v1662 = vpop.f32.mrb[0].mxu0
        %v1663 = vadd.f32 0.0, %v1662
        %v1664 = vpop.f32.mrb[0].mxu0
        %1665 = vmatprep.mubr.bf16.mxu0 0
        %1666 = vmatmul.mubr.bf16.gmra.mrb[0].mxu0 %v1553
        %v1667 = vpop.f32.mrb[0].mxu0
        %v1668 = vadd.f32 0.0, %v1667
        %v1669 = vpop.f32.mrb[0].mxu0
        %v1670 = vpop.f32.mrb[0].mxu0
        %v1671 = vadd.f32 0.0, %v1670
        %v1672 = vpop.f32.mrb[0].mxu0
        %1673 = vmatprep.mubr.bf16.mxu0 0
        %1674 = vmatmul.mubr.bf16.gmra.mrb[0].mxu0 %v1556
        %v1675 = vpop.f32.mrb[0].mxu0
        %v1676 = vadd.f32 0.0, %v1675
        %v1677 = vpop.f32.mrb[0].mxu0
        %v1678 = vpop.f32.mrb[0].mxu0
        %v1679 = vadd.f32 0.0, %v1678
        %v1680 = vpop.f32.mrb[0].mxu0
        %1681 = vmatprep.mubr.bf16.mxu0 0
        %1682 = vmatmul.mubr.bf16.gmra.mrb[0].mxu0 %v1559
        %v1683 = vpop.f32.mrb[0].mxu0
        %v1684 = vadd.f32 0.0, %v1683
        %v1685 = vpop.f32.mrb[0].mxu0
        %v1686 = vpop.f32.mrb[0].mxu0
        %v1687 = vadd.f32 0.0, %v1686
        %v1688 = vpop.f32.mrb[0].mxu0
        %1689 = vmatprep.mubr.bf16.mxu0 0
        %1690 = vmatmul.mubr.bf16.gmra.mrb[0].mxu0 %v1562
        %v1691 = vpop.f32.mrb[0].mxu0
        %v1692 = vadd.f32 0.0, %v1691
        %v1693 = vpop.f32.mrb[0].mxu0
        %v1694 = vpop.f32.mrb[0].mxu0
        %v1695 = vadd.f32 0.0, %v1694
        %v1696 = vpop.f32.mrb[0].mxu0
        %1697 = vmatprep.mubr.bf16.mxu0 0
        %1698 = vmatmul.mubr.bf16.gmra.mrb[0].mxu0 %v1565
        %v1699 = vpop.f32.mrb[0].mxu0
        %v1700 = vadd.f32 0.0, %v1699
        %v1701 = vpop.f32.mrb[0].mxu0
        %v1702 = vpop.f32.mrb[0].mxu0
        %v1703 = vadd.f32 0.0, %v1702
        %v1704 = vpop.f32.mrb[0].mxu0
        %1705 = vmatprep.mubr.bf16.mxu0 0
        %1706 = vmatmul.mubr.bf16.gmra.mrb[0].mxu0 %v1568
        %v1707 = vpop.f32.mrb[0].mxu0
        %v1708 = vadd.f32 0.0, %v1707
        %v1709 = vpop.f32.mrb[0].mxu0
        %v1710 = vpop.f32.mrb[0].mxu0
        %v1711 = vadd.f32 0.0, %v1710
        %v1712 = vpop.f32.mrb[0].mxu0
        %1713 = vmatprep.mubr.bf16.mxu0 0
        %1714 = vmatmul.mubr.bf16.gmra.mrb[0].mxu0 %v1571
        %v1715 = vpop.f32.mrb[0].mxu0
        %v1716 = vadd.f32 0.0, %v1715
        %v1717 = vpop.f32.mrb[0].mxu0
        %v1718 = vpop.f32.mrb[0].mxu0
        %v1719 = vadd.f32 0.0, %v1718
        %v1720 = vpop.f32.mrb[0].mxu0
        %1721 = vmatprep.mubr.bf16.mxu0 0
        %1722 = vmatmul.mubr.bf16.gmra.mrb[0].mxu0 %v1574
        %v1723 = vpop.f32.mrb[0].mxu0
        %v1724 = vadd.f32 0.0, %v1723
        %v1725 = vpop.f32.mrb[0].mxu0
        %v1726 = vpop.f32.mrb[0].mxu0
        %v1727 = vadd.f32 0.0, %v1726
        %v1728 = vpop.f32.mrb[0].mxu0
        %1729 = vmatprep.mubr.bf16.mxu0 0
        %1730 = vmatmul.mubr.bf16.gmra.mrb[0].mxu0 %v1577
        %v1731 = vpop.f32.mrb[0].mxu0
        %v1732 = vadd.f32 0.0, %v1731
        %v1733 = vpop.f32.mrb[0].mxu0
        %v1734 = vpop.f32.mrb[0].mxu0
        %v1735 = vadd.f32 0.0, %v1734
        %v1736 = vpop.f32.mrb[0].mxu0
        %1737 = vmatprep.mubr.bf16.mxu0 0
        %1738 = vmatmul.mubr.bf16.gmra.mrb[0].mxu0 %v1580
        %v1739 = vpop.f32.mrb[0].mxu0
        %v1740 = vadd.f32 0.0, %v1739
        %v1741 = vpop.f32.mrb[0].mxu0
        %v1742 = vpop.f32.mrb[0].mxu0
        %v1743 = vadd.f32 0.0, %v1742
        %v1744 = vpop.f32.mrb[0].mxu0
        %1745 = vdwg.mxu0
        %v1746 = vadd.f32 %v1348, %v1620
        %v1747 = vadd.f32 %v1351, %v1623
        %v1748 = vadd.f32 %v1356, %v1628
        %v1749 = vadd.f32 %v1359, %v1631
        %v1750 = vadd.f32 %v1364, %v1636
        %v1751 = vadd.f32 %v1367, %v1639
        %v1752 = vadd.f32 %v1372, %v1644
        %v1753 = vadd.f32 %v1375, %v1647
        %v1754 = vadd.f32 %v1380, %v1652
        %v1755 = vadd.f32 %v1383, %v1655
        %v1756 = vadd.f32 %v1388, %v1660
        %v1757 = vadd.f32 %v1391, %v1663
        %v1758 = vadd.f32 %v1396, %v1668
        %v1759 = vadd.f32 %v1399, %v1671
        %v1760 = vadd.f32 %v1404, %v1676
        %v1761 = vadd.f32 %v1407, %v1679
        %v1762 = vadd.f32 %v1412, %v1684
        %v1763 = vadd.f32 %v1415, %v1687
        %v1764 = vadd.f32 %v1420, %v1692
        %v1765 = vadd.f32 %v1423, %v1695
        %v1766 = vadd.f32 %v1428, %v1700
        %v1767 = vadd.f32 %v1431, %v1703
        %v1768 = vadd.f32 %v1436, %v1708
        %v1769 = vadd.f32 %v1439, %v1711
        %v1770 = vadd.f32 %v1444, %v1716
        %v1771 = vadd.f32 %v1447, %v1719
        %v1772 = vadd.f32 %v1452, %v1724
        %v1773 = vadd.f32 %v1455, %v1727
        %v1774 = vadd.f32 %v1460, %v1732
        %v1775 = vadd.f32 %v1463, %v1735
        %v1776 = vadd.f32 %v1468, %v1740
        %v1777 = vadd.f32 %v1471, %v1743
        %v1778 = vsel %vm177, %v1746, 0.0
        %v1779 = vsel %vm177, %v1747, 0.0
        %v1780 = vadd.f32 %v1778, %v1779
        %v1781 = vsel %vm177, %v1748, 0.0
        %v1782 = vadd.f32 %v1780, %v1781
        %v1783 = vsel %vm177, %v1749, 0.0
        %v1784 = vadd.f32 %v1782, %v1783
        %v1785 = vsel %vm177, %v1750, 0.0
        %v1786 = vadd.f32 %v1784, %v1785
        %v1787 = vsel %vm177, %v1751, 0.0
        %v1788 = vadd.f32 %v1786, %v1787
        %v1789 = vsel %vm177, %v1752, 0.0
        %v1790 = vadd.f32 %v1788, %v1789
        %v1791 = vsel %vm177, %v1753, 0.0
        %v1792 = vadd.f32 %v1790, %v1791
        %v1793 = vsel %vm177, %v1754, 0.0
        %v1794 = vadd.f32 %v1792, %v1793
        %v1795 = vsel %vm177, %v1755, 0.0
        %v1796 = vadd.f32 %v1794, %v1795
        %v1797 = vsel %vm177, %v1756, 0.0
        %v1798 = vadd.f32 %v1796, %v1797
        %v1799 = vsel %vm177, %v1757, 0.0
        %v1800 = vadd.f32 %v1798, %v1799
        %v1801 = vsel %vm177, %v1758, 0.0
        %v1802 = vadd.f32 %v1800, %v1801
        %v1803 = vsel %vm177, %v1759, 0.0
        %v1804 = vadd.f32 %v1802, %v1803
        %v1805 = vsel %vm177, %v1760, 0.0
        %v1806 = vadd.f32 %v1804, %v1805
        %v1807 = vsel %vm177, %v1761, 0.0
        %v1808 = vadd.f32 %v1806, %v1807
        %v1809 = vsel %vm177, %v1762, 0.0
        %v1810 = vadd.f32 %v1808, %v1809
        %v1811 = vsel %vm177, %v1763, 0.0
        %v1812 = vadd.f32 %v1810, %v1811
        %v1813 = vsel %vm177, %v1764, 0.0
        %v1814 = vadd.f32 %v1812, %v1813
        %v1815 = vsel %vm177, %v1765, 0.0
        %v1816 = vadd.f32 %v1814, %v1815
        %v1817 = vsel %vm177, %v1766, 0.0
        %v1818 = vadd.f32 %v1816, %v1817
        %v1819 = vsel %vm177, %v1767, 0.0
        %v1820 = vadd.f32 %v1818, %v1819
        %v1821 = vsel %vm177, %v1768, 0.0
        %v1822 = vadd.f32 %v1820, %v1821
        %v1823 = vsel %vm177, %v1769, 0.0
        %v1824 = vadd.f32 %v1822, %v1823
        %v1825 = vsel %vm177, %v1770, 0.0
        %v1826 = vadd.f32 %v1824, %v1825
        %v1827 = vsel %vm177, %v1771, 0.0
        %v1828 = vadd.f32 %v1826, %v1827
        %v1829 = vsel %vm177, %v1772, 0.0
        %v1830 = vadd.f32 %v1828, %v1829
        %v1831 = vsel %vm177, %v1773, 0.0
        %v1832 = vadd.f32 %v1830, %v1831
        %v1833 = vsel %vm177, %v1774, 0.0
        %v1834 = vadd.f32 %v1832, %v1833
        %v1835 = vsel %vm177, %v1775, 0.0
        %v1836 = vadd.f32 %v1834, %v1835
        %v1837 = vsel %vm177, %v1776, 0.0
        %v1838 = vadd.f32 %v1836, %v1837
        %v1839 = vsel %vm177, %v1777, 0.0
        %v1840 = vadd.f32 %v1838, %v1839
        %v1841 = vrot.slane %v1840, 4
        %v1842 = vadd.f32 %v1840, %v1841
        %v1843 = vrot.slane %v1842, 2
        %v1844 = vadd.f32 %v1842, %v1843
        %v1845 = vrot.slane %v1844, 1
        %v1846 = vadd.f32 %v1844, %v1845
        %v1847 = vrcp.pop 256.0
        %v1848 = vmul.f32 %v1846, %v1847
        %v1849 = vmul.f32 %v1746, %v1746
        %v1850 = vmul.f32 %v1747, %v1747
        %v1851 = vmul.f32 %v1748, %v1748
        %v1852 = vmul.f32 %v1749, %v1749
        %v1853 = vmul.f32 %v1750, %v1750
        %v1854 = vmul.f32 %v1751, %v1751
        %v1855 = vmul.f32 %v1752, %v1752
        %v1856 = vmul.f32 %v1753, %v1753
        %v1857 = vmul.f32 %v1754, %v1754
        %v1858 = vmul.f32 %v1755, %v1755
        %v1859 = vmul.f32 %v1756, %v1756
        %v1860 = vmul.f32 %v1757, %v1757
        %v1861 = vmul.f32 %v1758, %v1758
        %v1862 = vmul.f32 %v1759, %v1759
        %v1863 = vmul.f32 %v1760, %v1760
        %v1864 = vmul.f32 %v1761, %v1761
        %v1865 = vmul.f32 %v1762, %v1762
        %v1866 = vmul.f32 %v1763, %v1763
        %v1867 = vmul.f32 %v1764, %v1764
        %v1868 = vmul.f32 %v1765, %v1765
        %v1869 = vmul.f32 %v1766, %v1766
        %v1870 = vmul.f32 %v1767, %v1767
        %v1871 = vmul.f32 %v1768, %v1768
        %v1872 = vmul.f32 %v1769, %v1769
        %v1873 = vmul.f32 %v1770, %v1770
        %v1874 = vmul.f32 %v1771, %v1771
        %v1875 = vmul.f32 %v1772, %v1772
        %v1876 = vmul.f32 %v1773, %v1773
        %v1877 = vmul.f32 %v1774, %v1774
        %v1878 = vmul.f32 %v1775, %v1775
        %v1879 = vmul.f32 %v1776, %v1776
        %v1880 = vmul.f32 %v1777, %v1777
        %v1881 = vsel %vm177, %v1849, 0.0
        %v1882 = vsel %vm177, %v1850, 0.0
        %v1883 = vadd.f32 %v1881, %v1882
        %v1884 = vsel %vm177, %v1851, 0.0
        %v1885 = vadd.f32 %v1883, %v1884
        %v1886 = vsel %vm177, %v1852, 0.0
        %v1887 = vadd.f32 %v1885, %v1886
        %v1888 = vsel %vm177, %v1853, 0.0
        %v1889 = vadd.f32 %v1887, %v1888
        %v1890 = vsel %vm177, %v1854, 0.0
        %v1891 = vadd.f32 %v1889, %v1890
        %v1892 = vsel %vm177, %v1855, 0.0
        %v1893 = vadd.f32 %v1891, %v1892
        %v1894 = vsel %vm177, %v1856, 0.0
        %v1895 = vadd.f32 %v1893, %v1894
        %v1896 = vsel %vm177, %v1857, 0.0
        %v1897 = vadd.f32 %v1895, %v1896
        %v1898 = vsel %vm177, %v1858, 0.0
        %v1899 = vadd.f32 %v1897, %v1898
        %v1900 = vsel %vm177, %v1859, 0.0
        %v1901 = vadd.f32 %v1899, %v1900
        %v1902 = vsel %vm177, %v1860, 0.0
        %v1903 = vadd.f32 %v1901, %v1902
        %v1904 = vsel %vm177, %v1861, 0.0
        %v1905 = vadd.f32 %v1903, %v1904
        %v1906 = vsel %vm177, %v1862, 0.0
        %v1907 = vadd.f32 %v1905, %v1906
        %v1908 = vsel %vm177, %v1863, 0.0
        %v1909 = vadd.f32 %v1907, %v1908
        %v1910 = vsel %vm177, %v1864, 0.0
        %v1911 = vadd.f32 %v1909, %v1910
        %v1912 = vsel %vm177, %v1865, 0.0
        %v1913 = vadd.f32 %v1911, %v1912
        %v1914 = vsel %vm177, %v1866, 0.0
        %v1915 = vadd.f32 %v1913, %v1914
        %v1916 = vsel %vm177, %v1867, 0.0
        %v1917 = vadd.f32 %v1915, %v1916
        %v1918 = vsel %vm177, %v1868, 0.0
        %v1919 = vadd.f32 %v1917, %v1918
        %v1920 = vsel %vm177, %v1869, 0.0
        %v1921 = vadd.f32 %v1919, %v1920
        %v1922 = vsel %vm177, %v1870, 0.0
        %v1923 = vadd.f32 %v1921, %v1922
        %v1924 = vsel %vm177, %v1871, 0.0
        %v1925 = vadd.f32 %v1923, %v1924
        %v1926 = vsel %vm177, %v1872, 0.0
        %v1927 = vadd.f32 %v1925, %v1926
        %v1928 = vsel %vm177, %v1873, 0.0
        %v1929 = vadd.f32 %v1927, %v1928
        %v1930 = vsel %vm177, %v1874, 0.0
        %v1931 = vadd.f32 %v1929, %v1930
        %v1932 = vsel %vm177, %v1875, 0.0
        %v1933 = vadd.f32 %v1931, %v1932
        %v1934 = vsel %vm177, %v1876, 0.0
        %v1935 = vadd.f32 %v1933, %v1934
        %v1936 = vsel %vm177, %v1877, 0.0
        %v1937 = vadd.f32 %v1935, %v1936
        %v1938 = vsel %vm177, %v1878, 0.0
        %v1939 = vadd.f32 %v1937, %v1938
        %v1940 = vsel %vm177, %v1879, 0.0
        %v1941 = vadd.f32 %v1939, %v1940
        %v1942 = vsel %vm177, %v1880, 0.0
        %v1943 = vadd.f32 %v1941, %v1942
        %v1944 = vrot.slane %v1943, 4
        %v1945 = vadd.f32 %v1943, %v1944
        %v1946 = vrot.slane %v1945, 2
        %v1947 = vadd.f32 %v1945, %v1946
        %v1948 = vrot.slane %v1947, 1
        %v1949 = vadd.f32 %v1947, %v1948
        %v1950 = vmul.f32 %v1949, %v1847
        %v1951 = vmul.f32 %v1848, %v1848
        %v1952 = vsub.f32 %v1950, %v1951
        %v1953 = vsub.f32 %v1746, %v1848
        %v1954 = vsub.f32 %v1747, %v1848
        %v1955 = vsub.f32 %v1748, %v1848
        %v1956 = vsub.f32 %v1749, %v1848
        %v1957 = vsub.f32 %v1750, %v1848
        %v1958 = vsub.f32 %v1751, %v1848
        %v1959 = vsub.f32 %v1752, %v1848
        %v1960 = vsub.f32 %v1753, %v1848
        %v1961 = vsub.f32 %v1754, %v1848
        %v1962 = vsub.f32 %v1755, %v1848
        %v1963 = vsub.f32 %v1756, %v1848
        %v1964 = vsub.f32 %v1757, %v1848
        %v1965 = vsub.f32 %v1758, %v1848
        %v1966 = vsub.f32 %v1759, %v1848
        %v1967 = vsub.f32 %v1760, %v1848
        %v1968 = vsub.f32 %v1761, %v1848
        %v1969 = vsub.f32 %v1762, %v1848
        %v1970 = vsub.f32 %v1763, %v1848
        %v1971 = vsub.f32 %v1764, %v1848
        %v1972 = vsub.f32 %v1765, %v1848
        %v1973 = vsub.f32 %v1766, %v1848
        %v1974 = vsub.f32 %v1767, %v1848
        %v1975 = vsub.f32 %v1768, %v1848
        %v1976 = vsub.f32 %v1769, %v1848
        %v1977 = vsub.f32 %v1770, %v1848
        %v1978 = vsub.f32 %v1771, %v1848
        %v1979 = vsub.f32 %v1772, %v1848
        %v1980 = vsub.f32 %v1773, %v1848
        %v1981 = vsub.f32 %v1774, %v1848
        %v1982 = vsub.f32 %v1775, %v1848
        %v1983 = vsub.f32 %v1776, %v1848
        %v1984 = vsub.f32 %v1777, %v1848
        %v1985 = vadd.f32 %v1952, 1e-05
        %v1986 = vrsqrt.pop %v1985
        %v1987 = vmul.f32 %v1953, %v1986
        %v1988 = vmul.f32 %v1954, %v1986
        %v1989 = vmul.f32 %v1955, %v1986
        %v1990 = vmul.f32 %v1956, %v1986
        %v1991 = vmul.f32 %v1957, %v1986
        %v1992 = vmul.f32 %v1958, %v1986
        %v1993 = vmul.f32 %v1959, %v1986
        %v1994 = vmul.f32 %v1960, %v1986
        %v1995 = vmul.f32 %v1961, %v1986
        %v1996 = vmul.f32 %v1962, %v1986
        %v1997 = vmul.f32 %v1963, %v1986
        %v1998 = vmul.f32 %v1964, %v1986
        %v1999 = vmul.f32 %v1965, %v1986
        %v2000 = vmul.f32 %v1966, %v1986
        %v2001 = vmul.f32 %v1967, %v1986
        %v2002 = vmul.f32 %v1968, %v1986
        %v2003 = vmul.f32 %v1969, %v1986
        %v2004 = vmul.f32 %v1970, %v1986
        %v2005 = vmul.f32 %v1971, %v1986
        %v2006 = vmul.f32 %v1972, %v1986
        %v2007 = vmul.f32 %v1973, %v1986
        %v2008 = vmul.f32 %v1974, %v1986
        %v2009 = vmul.f32 %v1975, %v1986
        %v2010 = vmul.f32 %v1976, %v1986
        %v2011 = vmul.f32 %v1977, %v1986
        %v2012 = vmul.f32 %v1978, %v1986
        %v2013 = vmul.f32 %v1979, %v1986
        %v2014 = vmul.f32 %v1980, %v1986
        %v2015 = vmul.f32 %v1981, %v1986
        %v2016 = vmul.f32 %v1982, %v1986
        %v2017 = vmul.f32 %v1983, %v1986
        %v2018 = vmul.f32 %v1984, %v1986
        %v2019 = vmax.f32 %v1987, 0.0
        %v2020 = vmax.f32 %v1988, 0.0
        %v2021 = vmax.f32 %v1989, 0.0
        %v2022 = vmax.f32 %v1990, 0.0
        %v2023 = vmax.f32 %v1991, 0.0
        %v2024 = vmax.f32 %v1992, 0.0
        %v2025 = vmax.f32 %v1993, 0.0
        %v2026 = vmax.f32 %v1994, 0.0
        %v2027 = vmax.f32 %v1995, 0.0
        %v2028 = vmax.f32 %v1996, 0.0
        %v2029 = vmax.f32 %v1997, 0.0
        %v2030 = vmax.f32 %v1998, 0.0
        %v2031 = vmax.f32 %v1999, 0.0
        %v2032 = vmax.f32 %v2000, 0.0
        %v2033 = vmax.f32 %v2001, 0.0
        %v2034 = vmax.f32 %v2002, 0.0
        %v2035 = vmax.f32 %v2003, 0.0
        %v2036 = vmax.f32 %v2004, 0.0
        %v2037 = vmax.f32 %v2005, 0.0
        %v2038 = vmax.f32 %v2006, 0.0
        %v2039 = vmax.f32 %v2007, 0.0
        %v2040 = vmax.f32 %v2008, 0.0
        %v2041 = vmax.f32 %v2009, 0.0
        %v2042 = vmax.f32 %v2010, 0.0
        %v2043 = vmax.f32 %v2011, 0.0
        %v2044 = vmax.f32 %v2012, 0.0
        %v2045 = vmax.f32 %v2013, 0.0
        %v2046 = vmax.f32 %v2014, 0.0
        %v2047 = vmax.f32 %v2015, 0.0
        %v2048 = vmax.f32 %v2016, 0.0
        %v2049 = vmax.f32 %v2017, 0.0
        %v2050 = vmax.f32 %v2018, 0.0
        %2051 = vst.msk [vmem:[#allocation2] sm:$0xff] %vm177, %v2019
        %2052 = vst.msk [vmem:[#allocation2 + $0x8] sm:$0xff] %vm177, %v2020
        %2053 = vst.msk [vmem:[#allocation2 + $0x10] sm:$0xff] %vm177, %v2021
        %2054 = vst.msk [vmem:[#allocation2 + $0x18] sm:$0xff] %vm177, %v2022
        %2055 = vst.msk [vmem:[#allocation2 + $0x20] sm:$0xff] %vm177, %v2023
        %2056 = vst.msk [vmem:[#allocation2 + $0x28] sm:$0xff] %vm177, %v2024
        %2057 = vst.msk [vmem:[#allocation2 + $0x30] sm:$0xff] %vm177, %v2025
        %2058 = vst.msk [vmem:[#allocation2 + $0x38] sm:$0xff] %vm177, %v2026
        %2059 = vst.msk [vmem:[#allocation2 + $0x40] sm:$0xff] %vm177, %v2027
        %2060 = vst.msk [vmem:[#allocation2 + $0x48] sm:$0xff] %vm177, %v2028
        %2061 = vst.msk [vmem:[#allocation2 + $0x50] sm:$0xff] %vm177, %v2029
        %2062 = vst.msk [vmem:[#allocation2 + $0x58] sm:$0xff] %vm177, %v2030
        %2063 = vst.msk [vmem:[#allocation2 + $0x60] sm:$0xff] %vm177, %v2031
        %2064 = vst.msk [vmem:[#allocation2 + $0x68] sm:$0xff] %vm177, %v2032
        %2065 = vst.msk [vmem:[#allocation2 + $0x70] sm:$0xff] %vm177, %v2033
        %2066 = vst.msk [vmem:[#allocation2 + $0x78] sm:$0xff] %vm177, %v2034
        %2067 = vst.msk [vmem:[#allocation2 + $0x80] sm:$0xff] %vm177, %v2035
        %2068 = vst.msk [vmem:[#allocation2 + $0x88] sm:$0xff] %vm177, %v2036
        %2069 = vst.msk [vmem:[#allocation2 + $0x90] sm:$0xff] %vm177, %v2037
        %2070 = vst.msk [vmem:[#allocation2 + $0x98] sm:$0xff] %vm177, %v2038
        %2071 = vst.msk [vmem:[#allocation2 + $0xa0] sm:$0xff] %vm177, %v2039
        %2072 = vst.msk [vmem:[#allocation2 + $0xa8] sm:$0xff] %vm177, %v2040
        %2073 = vst.msk [vmem:[#allocation2 + $0xb0] sm:$0xff] %vm177, %v2041
        %2074 = vst.msk [vmem:[#allocation2 + $0xb8] sm:$0xff] %vm177, %v2042
        %2075 = vst.msk [vmem:[#allocation2 + $0xc0] sm:$0xff] %vm177, %v2043
        %2076 = vst.msk [vmem:[#allocation2 + $0xc8] sm:$0xff] %vm177, %v2044
        %2077 = vst.msk [vmem:[#allocation2 + $0xd0] sm:$0xff] %vm177, %v2045
        %2078 = vst.msk [vmem:[#allocation2 + $0xd8] sm:$0xff] %vm177, %v2046
        %2079 = vst.msk [vmem:[#allocation2 + $0xe0] sm:$0xff] %vm177, %v2047
        %2080 = vst.msk [vmem:[#allocation2 + $0xe8] sm:$0xff] %vm177, %v2048
        %2081 = vst.msk [vmem:[#allocation2 + $0xf0] sm:$0xff] %vm177, %v2049
        %2082 = vst.msk [vmem:[#allocation2 + $0xf8] sm:$0xff] %vm177, %v2050
        %v2083 = vld [vmem:[#allocation2] sm:$0xff]
        %v2084 = vld [vmem:[#allocation2 + $0x8] sm:$0xff]
        %v2085 = vld [vmem:[#allocation2 + $0x10] sm:$0xff]
        %v2086 = vld [vmem:[#allocation2 + $0x18] sm:$0xff]
        %v2087 = vld [vmem:[#allocation2 + $0x20] sm:$0xff]
        %v2088 = vld [vmem:[#allocation2 + $0x28] sm:$0xff]
        %v2089 = vld [vmem:[#allocation2 + $0x30] sm:$0xff]
        %v2090 = vld [vmem:[#allocation2 + $0x38] sm:$0xff]
        %v2091 = vld [vmem:[#allocation2 + $0x40] sm:$0xff]
        %v2092 = vld [vmem:[#allocation2 + $0x48] sm:$0xff]
        %v2093 = vld [vmem:[#allocation2 + $0x50] sm:$0xff]
        %v2094 = vld [vmem:[#allocation2 + $0x58] sm:$0xff]
        %v2095 = vld [vmem:[#allocation2 + $0x60] sm:$0xff]
        %v2096 = vld [vmem:[#allocation2 + $0x68] sm:$0xff]
        %v2097 = vld [vmem:[#allocation2 + $0x70] sm:$0xff]
        %v2098 = vld [vmem:[#allocation2 + $0x78] sm:$0xff]
        %v2099 = vld [vmem:[#allocation2 + $0x80] sm:$0xff]
        %v2100 = vld [vmem:[#allocation2 + $0x88] sm:$0xff]
        %v2101 = vld [vmem:[#allocation2 + $0x90] sm:$0xff]
        %v2102 = vld [vmem:[#allocation2 + $0x98] sm:$0xff]
        %v2103 = vld [vmem:[#allocation2 + $0xa0] sm:$0xff]
        %v2104 = vld [vmem:[#allocation2 + $0xa8] sm:$0xff]
        %v2105 = vld [vmem:[#allocation2 + $0xb0] sm:$0xff]
        %v2106 = vld [vmem:[#allocation2 + $0xb8] sm:$0xff]
        %v2107 = vld [vmem:[#allocation2 + $0xc0] sm:$0xff]
        %v2108 = vld [vmem:[#allocation2 + $0xc8] sm:$0xff]
        %v2109 = vld [vmem:[#allocation2 + $0xd0] sm:$0xff]
        %v2110 = vld [vmem:[#allocation2 + $0xd8] sm:$0xff]
        %v2111 = vld [vmem:[#allocation2 + $0xe0] sm:$0xff]
        %v2112 = vld [vmem:[#allocation2 + $0xe8] sm:$0xff]
        %v2113 = vld [vmem:[#allocation2 + $0xf0] sm:$0xff]
        %v2114 = vld [vmem:[#allocation2 + $0xf8] sm:$0xff]
        %2115 = vst.msk [vmem:[%s312 + $0x1] sm:$0xff] %vm177, %v2083
        %2116 = vst.msk [vmem:[%s312 + $0x9] sm:$0xff] %vm177, %v2084
        %2117 = vst.msk [vmem:[%s312 + $0x19] sm:$0xff] %vm177, %v2085
        %2118 = vst.msk [vmem:[%s312 + $0x21] sm:$0xff] %vm177, %v2086
        %2119 = vst.msk [vmem:[%s312 + $0x31] sm:$0xff] %vm177, %v2087
        %2120 = vst.msk [vmem:[%s312 + $0x39] sm:$0xff] %vm177, %v2088
        %2121 = vst.msk [vmem:[%s312 + $0x49] sm:$0xff] %vm177, %v2089
        %2122 = vst.msk [vmem:[%s312 + $0x51] sm:$0xff] %vm177, %v2090
        %2123 = vst.msk [vmem:[%s312 + $0x61] sm:$0xff] %vm177, %v2091
        %2124 = vst.msk [vmem:[%s312 + $0x69] sm:$0xff] %vm177, %v2092
        %2125 = vst.msk [vmem:[%s312 + $0x79] sm:$0xff] %vm177, %v2093
        %2126 = vst.msk [vmem:[%s312 + $0x81] sm:$0xff] %vm177, %v2094
        %2127 = vst.msk [vmem:[%s312 + $0x91] sm:$0xff] %vm177, %v2095
        %2128 = vst.msk [vmem:[%s312 + $0x99] sm:$0xff] %vm177, %v2096
        %2129 = vst.msk [vmem:[%s312 + $0xa9] sm:$0xff] %vm177, %v2097
        %2130 = vst.msk [vmem:[%s312 + $0xb1] sm:$0xff] %vm177, %v2098
        %2131 = vst.msk [vmem:[%s312 + $0xc1] sm:$0xff] %vm177, %v2099
        %2132 = vst.msk [vmem:[%s312 + $0xc9] sm:$0xff] %vm177, %v2100
        %2133 = vst.msk [vmem:[%s312 + $0xd9] sm:$0xff] %vm177, %v2101
        %2134 = vst.msk [vmem:[%s312 + $0xe1] sm:$0xff] %vm177, %v2102
        %2135 = vst.msk [vmem:[%s312 + $0xf1] sm:$0xff] %vm177, %v2103
        %2136 = vst.msk [vmem:[%s312 + $0xf9] sm:$0xff] %vm177, %v2104
        %2137 = vst.msk [vmem:[%s312 + $0x109] sm:$0xff] %vm177, %v2105
        %2138 = vst.msk [vmem:[%s312 + $0x111] sm:$0xff] %vm177, %v2106
        %2139 = vst.msk [vmem:[%s312 + $0x121] sm:$0xff] %vm177, %v2107
        %2140 = vst.msk [vmem:[%s312 + $0x129] sm:$0xff] %vm177, %v2108
        %2141 = vst.msk [vmem:[%s312 + $0x139] sm:$0xff] %vm177, %v2109
        %2142 = vst.msk [vmem:[%s312 + $0x141] sm:$0xff] %vm177, %v2110
        %2143 = vst.msk [vmem:[%s312 + $0x151] sm:$0xff] %vm177, %v2111
        %2144 = vst.msk [vmem:[%s312 + $0x159] sm:$0xff] %vm177, %v2112
        %2145 = vst.msk [vmem:[%s312 + $0x169] sm:$0xff] %vm177, %v2113
        %2146 = vst.msk [vmem:[%s312 + $0x171] sm:$0xff] %vm177, %v2114
        %2147 = vst.msk [vmem:[#allocation4 + $0x1] sm:$0xff] %vm177, %v2085
        %2148 = vst.msk [vmem:[#allocation4 + $0x9] sm:$0xff] %vm177, %v2086
        %2149 = vst.msk [vmem:[%s347 + $0x1] sm:$0xff] %vm177, %v2111
        %2150 = vst.msk [vmem:[%s347 + $0x9] sm:$0xff] %vm177, %v2112
        %v2151 = vld [vmem:[#allocation4 + $0x2] sm:$0x1]
        %v2152 = vld [vmem:[#allocation4 + $0x1a] sm:$0x1]
        %v2153 = vld [vmem:[#allocation4 + $0x32] sm:$0x1]
        %v2154 = vld [vmem:[#allocation4 + $0x4a] sm:$0x1]
        %v2155 = vld [vmem:[#allocation4 + $0x62] sm:$0x1]
        %v2156 = vld [vmem:[#allocation4 + $0x7a] sm:$0x1]
        %v2157 = vld [vmem:[#allocation4 + $0x92] sm:$0x1]
        %v2158 = vld [vmem:[#allocation4 + $0xaa] sm:$0x1]
        %v2159 = vld [vmem:[#allocation4 + $0xc2] sm:$0x1]
        %v2160 = vld [vmem:[#allocation4 + $0xda] sm:$0x1]
        %v2161 = vld [vmem:[#allocation4 + $0xf2] sm:$0x1]
        %v2162 = vld [vmem:[#allocation4 + $0x10a] sm:$0x1]
        %v2163 = vld [vmem:[#allocation4 + $0x122] sm:$0x1]
        %v2164 = vld [vmem:[#allocation4 + $0x13a] sm:$0x1]
        %v2165 = vld [vmem:[#allocation4 + $0x152] sm:$0x1]
        %v2166 = vld [vmem:[#allocation4 + $0x16a] sm:$0x1]
        %v2167 = vld [vmem:[#allocation4 + $0x182] sm:$0x1]
        %v2168 = vld [vmem:[#allocation4 + $0x19a] sm:$0x1]
        %2169 = vst.msk [vmem:[#allocation4] sm:$0x1] %vm368, %v2151
        %2170 = vst.msk [vmem:[#allocation4 + $0x18] sm:$0x1] %vm368, %v2152
        %2171 = vst.msk [vmem:[#allocation4 + $0x30] sm:$0x1] %vm368, %v2153
        %2172 = vst.msk [vmem:[#allocation4 + $0x48] sm:$0x1] %vm368, %v2154
        %2173 = vst.msk [vmem:[#allocation4 + $0x60] sm:$0x1] %vm368, %v2155
        %2174 = vst.msk [vmem:[#allocation4 + $0x78] sm:$0x1] %vm368, %v2156
        %2175 = vst.msk [vmem:[#allocation4 + $0x90] sm:$0x1] %vm368, %v2157
        %2176 = vst.msk [vmem:[#allocation4 + $0xa8] sm:$0x1] %vm368, %v2158
        %2177 = vst.msk [vmem:[#allocation4 + $0xc0] sm:$0x1] %vm368, %v2159
        %2178 = vst.msk [vmem:[#allocation4 + $0xd8] sm:$0x1] %vm368, %v2160
        %2179 = vst.msk [vmem:[#allocation4 + $0xf0] sm:$0x1] %vm368, %v2161
        %2180 = vst.msk [vmem:[#allocation4 + $0x108] sm:$0x1] %vm368, %v2162
        %2181 = vst.msk [vmem:[#allocation4 + $0x120] sm:$0x1] %vm368, %v2163
        %2182 = vst.msk [vmem:[#allocation4 + $0x138] sm:$0x1] %vm368, %v2164
        %2183 = vst.msk [vmem:[#allocation4 + $0x150] sm:$0x1] %vm368, %v2165
        %2184 = vst.msk [vmem:[#allocation4 + $0x168] sm:$0x1] %vm368, %v2166
        %2185 = vst.msk [vmem:[#allocation4 + $0x180] sm:$0x1] %vm368, %v2167
        %2186 = vst.msk [vmem:[#allocation4 + $0x198] sm:$0x1] %vm368, %v2168
        %v2187 = vld [vmem:[#allocation4 + $0xf] sm:$0x1]
        %v2188 = vld [vmem:[#allocation4 + $0x27] sm:$0x1]
        %v2189 = vld [vmem:[#allocation4 + $0x3f] sm:$0x1]
        %v2190 = vld [vmem:[#allocation4 + $0x57] sm:$0x1]
        %v2191 = vld [vmem:[#allocation4 + $0x6f] sm:$0x1]
        %v2192 = vld [vmem:[#allocation4 + $0x87] sm:$0x1]
        %v2193 = vld [vmem:[#allocation4 + $0x9f] sm:$0x1]
        %v2194 = vld [vmem:[#allocation4 + $0xb7] sm:$0x1]
        %v2195 = vld [vmem:[#allocation4 + $0xcf] sm:$0x1]
        %v2196 = vld [vmem:[#allocation4 + $0xe7] sm:$0x1]
        %v2197 = vld [vmem:[#allocation4 + $0xff] sm:$0x1]
        %v2198 = vld [vmem:[#allocation4 + $0x117] sm:$0x1]
        %v2199 = vld [vmem:[#allocation4 + $0x12f] sm:$0x1]
        %v2200 = vld [vmem:[#allocation4 + $0x147] sm:$0x1]
        %v2201 = vld [vmem:[#allocation4 + $0x15f] sm:$0x1]
        %v2202 = vld [vmem:[#allocation4 + $0x177] sm:$0x1]
        %v2203 = vld [vmem:[#allocation4 + $0x18f] sm:$0x1]
        %v2204 = vld [vmem:[#allocation4 + $0x1a7] sm:$0x1]
        %2205 = vst.msk [vmem:[#allocation4 + $0x11] sm:$0x1] %vm368, %v2187
        %2206 = vst.msk [vmem:[#allocation4 + $0x29] sm:$0x1] %vm368, %v2188
        %2207 = vst.msk [vmem:[#allocation4 + $0x41] sm:$0x1] %vm368, %v2189
        %2208 = vst.msk [vmem:[#allocation4 + $0x59] sm:$0x1] %vm368, %v2190
        %2209 = vst.msk [vmem:[#allocation4 + $0x71] sm:$0x1] %vm368, %v2191
        %2210 = vst.msk [vmem:[#allocation4 + $0x89] sm:$0x1] %vm368, %v2192
        %2211 = vst.msk [vmem:[#allocation4 + $0xa1] sm:$0x1] %vm368, %v2193
        %2212 = vst.msk [vmem:[#allocation4 + $0xb9] sm:$0x1] %vm368, %v2194
        %2213 = vst.msk [vmem:[#allocation4 + $0xd1] sm:$0x1] %vm368, %v2195
        %2214 = vst.msk [vmem:[#allocation4 + $0xe9] sm:$0x1] %vm368, %v2196
        %2215 = vst.msk [vmem:[#allocation4 + $0x101] sm:$0x1] %vm368, %v2197
        %2216 = vst.msk [vmem:[#allocation4 + $0x119] sm:$0x1] %vm368, %v2198
        %2217 = vst.msk [vmem:[#allocation4 + $0x131] sm:$0x1] %vm368, %v2199
        %2218 = vst.msk [vmem:[#allocation4 + $0x149] sm:$0x1] %vm368, %v2200
        %2219 = vst.msk [vmem:[#allocation4 + $0x161] sm:$0x1] %vm368, %v2201
        %2220 = vst.msk [vmem:[#allocation4 + $0x179] sm:$0x1] %vm368, %v2202
        %2221 = vst.msk [vmem:[#allocation4 + $0x191] sm:$0x1] %vm368, %v2203
        %2222 = vst.msk [vmem:[#allocation4 + $0x1a9] sm:$0x1] %vm368, %v2204
        %v2223 = vld [vmem:[#allocation4] sm:$0xff]
        %v2224 = vld [vmem:[#allocation4 + $0x8] sm:$0xff]
        %v2225 = vld [vmem:[#allocation4 + $0x18] sm:$0xff]
        %v2226 = vld [vmem:[#allocation4 + $0x20] sm:$0xff]
        %v2227 = vld [vmem:[#allocation4 + $0x30] sm:$0xff]
        %v2228 = vld [vmem:[#allocation4 + $0x38] sm:$0xff]
        %v2229 = vld [vmem:[#allocation4 + $0x48] sm:$0xff]
        %v2230 = vld [vmem:[#allocation4 + $0x50] sm:$0xff]
        %v2231 = vld [vmem:[#allocation4 + $0x60] sm:$0xff]
        %v2232 = vld [vmem:[#allocation4 + $0x68] sm:$0xff]
        %v2233 = vld [vmem:[#allocation4 + $0x78] sm:$0xff]
        %v2234 = vld [vmem:[#allocation4 + $0x80] sm:$0xff]
        %v2235 = vld [vmem:[#allocation4 + $0x90] sm:$0xff]
        %v2236 = vld [vmem:[#allocation4 + $0x98] sm:$0xff]
        %v2237 = vld [vmem:[#allocation4 + $0xa8] sm:$0xff]
        %v2238 = vld [vmem:[#allocation4 + $0xb0] sm:$0xff]
        %v2239 = vld [vmem:[#allocation4 + $0xc0] sm:$0xff]
        %v2240 = vld [vmem:[#allocation4 + $0xc8] sm:$0xff]
        %v2241 = vld [vmem:[#allocation4 + $0xd8] sm:$0xff]
        %v2242 = vld [vmem:[#allocation4 + $0xe0] sm:$0xff]
        %v2243 = vld [vmem:[#allocation4 + $0xf0] sm:$0xff]
        %v2244 = vld [vmem:[#allocation4 + $0xf8] sm:$0xff]
        %v2245 = vld [vmem:[#allocation4 + $0x108] sm:$0xff]
        %v2246 = vld [vmem:[#allocation4 + $0x110] sm:$0xff]
        %v2247 = vld [vmem:[#allocation4 + $0x120] sm:$0xff]
        %v2248 = vld [vmem:[#allocation4 + $0x128] sm:$0xff]
        %v2249 = vld [vmem:[#allocation4 + $0x138] sm:$0xff]
        %v2250 = vld [vmem:[#allocation4 + $0x140] sm:$0xff]
        %v2251 = vld [vmem:[#allocation4 + $0x150] sm:$0xff]
        %v2252 = vld [vmem:[#allocation4 + $0x158] sm:$0xff]
        %v2253 = vld [vmem:[#allocation4 + $0x168] sm:$0xff]
        %v2254 = vld [vmem:[#allocation4 + $0x170] sm:$0xff]
        %v2255 = vld [vmem:[#allocation4 + $0x180] sm:$0xff]
        %v2256 = vld [vmem:[#allocation4 + $0x188] sm:$0xff]
        %v2257 = vld [vmem:[#allocation4 + $0x198] sm:$0xff]
        %v2258 = vld [vmem:[#allocation4 + $0x1a0] sm:$0xff]
        %2259 = vst.msk [vmem:[#allocation5] sm:$0xff] %vm177, %v2223
        %2260 = vst.msk [vmem:[#allocation5 + $0x8] sm:$0xff] %vm177, %v2224
        %2261 = vst.msk [vmem:[#allocation5 + $0x10] sm:$0xff] %vm177, %v2225
        %2262 = vst.msk [vmem:[#allocation5 + $0x18] sm:$0xff] %vm177, %v2226
        %2263 = vst.msk [vmem:[#allocation5 + $0x20] sm:$0xff] %vm177, %v2227
        %2264 = vst.msk [vmem:[#allocation5 + $0x28] sm:$0xff] %vm177, %v2228
        %2265 = vst.msk [vmem:[#allocation5 + $0x30] sm:$0xff] %vm177, %v2229
        %2266 = vst.msk [vmem:[#allocation5 + $0x38] sm:$0xff] %vm177, %v2230
        %2267 = vst.msk [vmem:[#allocation5 + $0x40] sm:$0xff] %vm177, %v2231
        %2268 = vst.msk [vmem:[#allocation5 + $0x48] sm:$0xff] %vm177, %v2232
        %2269 = vst.msk [vmem:[#allocation5 + $0x50] sm:$0xff] %vm177, %v2233
        %2270 = vst.msk [vmem:[#allocation5 + $0x58] sm:$0xff] %vm177, %v2234
        %2271 = vst.msk [vmem:[#allocation5 + $0x60] sm:$0xff] %vm177, %v2235
        %2272 = vst.msk [vmem:[#allocation5 + $0x68] sm:$0xff] %vm177, %v2236
        %2273 = vst.msk [vmem:[#allocation5 + $0x70] sm:$0xff] %vm177, %v2237
        %2274 = vst.msk [vmem:[#allocation5 + $0x78] sm:$0xff] %vm177, %v2238
        %2275 = vst.msk [vmem:[#allocation5 + $0x80] sm:$0xff] %vm177, %v2239
        %2276 = vst.msk [vmem:[#allocation5 + $0x88] sm:$0xff] %vm177, %v2240
        %2277 = vst.msk [vmem:[#allocation5 + $0x90] sm:$0xff] %vm177, %v2241
        %2278 = vst.msk [vmem:[#allocation5 + $0x98] sm:$0xff] %vm177, %v2242
        %2279 = vst.msk [vmem:[#allocation5 + $0xa0] sm:$0xff] %vm177, %v2243
        %2280 = vst.msk [vmem:[#allocation5 + $0xa8] sm:$0xff] %vm177, %v2244
        %2281 = vst.msk [vmem:[#allocation5 + $0xb0] sm:$0xff] %vm177, %v2245
        %2282 = vst.msk [vmem:[#allocation5 + $0xb8] sm:$0xff] %vm177, %v2246
        %2283 = vst.msk [vmem:[#allocation5 + $0xc0] sm:$0xff] %vm177, %v2247
        %2284 = vst.msk [vmem:[#allocation5 + $0xc8] sm:$0xff] %vm177, %v2248
        %2285 = vst.msk [vmem:[#allocation5 + $0xd0] sm:$0xff] %vm177, %v2249
        %2286 = vst.msk [vmem:[#allocation5 + $0xd8] sm:$0xff] %vm177, %v2250
        %2287 = vst.msk [vmem:[#allocation5 + $0xe0] sm:$0xff] %vm177, %v2251
        %2288 = vst.msk [vmem:[#allocation5 + $0xe8] sm:$0xff] %vm177, %v2252
        %2289 = vst.msk [vmem:[#allocation5 + $0xf0] sm:$0xff] %vm177, %v2253
        %2290 = vst.msk [vmem:[#allocation5 + $0xf8] sm:$0xff] %vm177, %v2254
        %2291 = vst.msk [vmem:[#allocation5 + $0x100] sm:$0xff] %vm177, %v2255
        %2292 = vst.msk [vmem:[#allocation5 + $0x108] sm:$0xff] %vm177, %v2256
        %2293 = vst.msk [vmem:[#allocation5 + $0x110] sm:$0xff] %vm177, %v2257
        %2294 = vst.msk [vmem:[#allocation5 + $0x118] sm:$0xff] %vm177, %v2258
        %v2295 = vld [vmem:[#allocation4 + $0x1] sm:$0xff]
        %v2296 = vld [vmem:[#allocation4 + $0x9] sm:$0xff]
        %v2297 = vld [vmem:[#allocation4 + $0x19] sm:$0xff]
        %v2298 = vld [vmem:[#allocation4 + $0x21] sm:$0xff]
        %v2299 = vld [vmem:[#allocation4 + $0x31] sm:$0xff]
        %v2300 = vld [vmem:[#allocation4 + $0x39] sm:$0xff]
        %v2301 = vld [vmem:[#allocation4 + $0x49] sm:$0xff]
        %v2302 = vld [vmem:[#allocation4 + $0x51] sm:$0xff]
        %v2303 = vld [vmem:[#allocation4 + $0x61] sm:$0xff]
        %v2304 = vld [vmem:[#allocation4 + $0x69] sm:$0xff]
        %v2305 = vld [vmem:[#allocation4 + $0x79] sm:$0xff]
        %v2306 = vld [vmem:[#allocation4 + $0x81] sm:$0xff]
        %v2307 = vld [vmem:[#allocation4 + $0x91] sm:$0xff]
        %v2308 = vld [vmem:[#allocation4 + $0x99] sm:$0xff]
        %v2309 = vld [vmem:[#allocation4 + $0xa9] sm:$0xff]
        %v2310 = vld [vmem:[#allocation4 + $0xb1] sm:$0xff]
        %v2311 = vld [vmem:[#allocation4 + $0xc1] sm:$0xff]
        %v2312 = vld [vmem:[#allocation4 + $0xc9] sm:$0xff]
        %v2313 = vld [vmem:[#allocation4 + $0xd9] sm:$0xff]
        %v2314 = vld [vmem:[#allocation4 + $0xe1] sm:$0xff]
        %v2315 = vld [vmem:[#allocation4 + $0xf1] sm:$0xff]
        %v2316 = vld [vmem:[#allocation4 + $0xf9] sm:$0xff]
        %v2317 = vld [vmem:[#allocation4 + $0x109] sm:$0xff]
        %v2318 = vld [vmem:[#allocation4 + $0x111] sm:$0xff]
        %v2319 = vld [vmem:[#allocation4 + $0x121] sm:$0xff]
        %v2320 = vld [vmem:[#allocation4 + $0x129] sm:$0xff]
        %v2321 = vld [vmem:[#allocation4 + $0x139] sm:$0xff]
        %v2322 = vld [vmem:[#allocation4 + $0x141] sm:$0xff]
        %v2323 = vld [vmem:[#allocation4 + $0x151] sm:$0xff]
        %v2324 = vld [vmem:[#allocation4 + $0x159] sm:$0xff]
        %v2325 = vld [vmem:[#allocation4 + $0x169] sm:$0xff]
        %v2326 = vld [vmem:[#allocation4 + $0x171] sm:$0xff]
        %v2327 = vld [vmem:[#allocation4 + $0x181] sm:$0xff]
        %v2328 = vld [vmem:[#allocation4 + $0x189] sm:$0xff]
        %v2329 = vld [vmem:[#allocation4 + $0x199] sm:$0xff]
        %v2330 = vld [vmem:[#allocation4 + $0x1a1] sm:$0xff]
        %2367 = vrot.lane.b32.xlu0 %v2295, 4
        %v2368 = vpop.permute.xlu0 %2367
        %2369 = vrot.lane.b32.xlu0 %v2296, 4
        %v2370 = vpop.permute.xlu0 %2369
        %2371 = vrot.lane.b32.xlu0 %v2297, 4
        %v2372 = vpop.permute.xlu0 %2371
        %2373 = vrot.lane.b32.xlu0 %v2298, 4
        %v2374 = vpop.permute.xlu0 %2373
        %2375 = vrot.lane.b32.xlu0 %v2299, 4
        %v2376 = vpop.permute.xlu0 %2375
        %2377 = vrot.lane.b32.xlu0 %v2300, 4
        %v2378 = vpop.permute.xlu0 %2377
        %2379 = vrot.lane.b32.xlu0 %v2301, 4
        %v2380 = vpop.permute.xlu0 %2379
        %2381 = vrot.lane.b32.xlu0 %v2302, 4
        %v2382 = vpop.permute.xlu0 %2381
        %2383 = vrot.lane.b32.xlu0 %v2303, 4
        %v2384 = vpop.permute.xlu0 %2383
        %2385 = vrot.lane.b32.xlu0 %v2304, 4
        %v2386 = vpop.permute.xlu0 %2385
        %2387 = vrot.lane.b32.xlu0 %v2305, 4
        %v2388 = vpop.permute.xlu0 %2387
        %2389 = vrot.lane.b32.xlu0 %v2306, 4
        %v2390 = vpop.permute.xlu0 %2389
        %2391 = vrot.lane.b32.xlu0 %v2307, 4
        %v2392 = vpop.permute.xlu0 %2391
        %2393 = vrot.lane.b32.xlu0 %v2308, 4
        %v2394 = vpop.permute.xlu0 %2393
        %2395 = vrot.lane.b32.xlu0 %v2309, 4
        %v2396 = vpop.permute.xlu0 %2395
        %2397 = vrot.lane.b32.xlu0 %v2310, 4
        %v2398 = vpop.permute.xlu0 %2397
        %2399 = vrot.lane.b32.xlu0 %v2311, 4
        %v2400 = vpop.permute.xlu0 %2399
        %2401 = vrot.lane.b32.xlu0 %v2312, 4
        %v2402 = vpop.permute.xlu0 %2401
        %2403 = vrot.lane.b32.xlu0 %v2313, 4
        %v2404 = vpop.permute.xlu0 %2403
        %2405 = vrot.lane.b32.xlu0 %v2314, 4
        %v2406 = vpop.permute.xlu0 %2405
        %2407 = vrot.lane.b32.xlu0 %v2315, 4
        %v2408 = vpop.permute.xlu0 %2407
        %2409 = vrot.lane.b32.xlu0 %v2316, 4
        %v2410 = vpop.permute.xlu0 %2409
        %2411 = vrot.lane.b32.xlu0 %v2317, 4
        %v2412 = vpop.permute.xlu0 %2411
        %2413 = vrot.lane.b32.xlu0 %v2318, 4
        %v2414 = vpop.permute.xlu0 %2413
        %2415 = vrot.lane.b32.xlu0 %v2319, 4
        %v2416 = vpop.permute.xlu0 %2415
        %2417 = vrot.lane.b32.xlu0 %v2320, 4
        %v2418 = vpop.permute.xlu0 %2417
        %2419 = vrot.lane.b32.xlu0 %v2321, 4
        %v2420 = vpop.permute.xlu0 %2419
        %2421 = vrot.lane.b32.xlu0 %v2322, 4
        %v2422 = vpop.permute.xlu0 %2421
        %2423 = vrot.lane.b32.xlu0 %v2323, 4
        %v2424 = vpop.permute.xlu0 %2423
        %2425 = vrot.lane.b32.xlu0 %v2324, 4
        %v2426 = vpop.permute.xlu0 %2425
        %2427 = vrot.lane.b32.xlu0 %v2325, 4
        %v2428 = vpop.permute.xlu0 %2427
        %2429 = vrot.lane.b32.xlu0 %v2326, 4
        %v2430 = vpop.permute.xlu0 %2429
        %2431 = vrot.lane.b32.xlu0 %v2327, 4
        %v2432 = vpop.permute.xlu0 %2431
        %2433 = vrot.lane.b32.xlu0 %v2328, 4
        %v2434 = vpop.permute.xlu0 %2433
        %2435 = vrot.lane.b32.xlu0 %v2329, 4
        %v2436 = vpop.permute.xlu0 %2435
        %2437 = vrot.lane.b32.xlu0 %v2330, 4
        %v2438 = vpop.permute.xlu0 %2437
        %2475 = vst.msk [vmem:[#allocation5] sm:$0xff] %vm675, %v2368
        %2476 = vst.msk [vmem:[#allocation5 + $0x8] sm:$0xff] %vm675, %v2370
        %2477 = vst.msk [vmem:[#allocation5 + $0x10] sm:$0xff] %vm675, %v2372
        %2478 = vst.msk [vmem:[#allocation5 + $0x18] sm:$0xff] %vm675, %v2374
        %2479 = vst.msk [vmem:[#allocation5 + $0x20] sm:$0xff] %vm675, %v2376
        %2480 = vst.msk [vmem:[#allocation5 + $0x28] sm:$0xff] %vm675, %v2378
        %2481 = vst.msk [vmem:[#allocation5 + $0x30] sm:$0xff] %vm675, %v2380
        %2482 = vst.msk [vmem:[#allocation5 + $0x38] sm:$0xff] %vm675, %v2382
        %2483 = vst.msk [vmem:[#allocation5 + $0x40] sm:$0xff] %vm675, %v2384
        %2484 = vst.msk [vmem:[#allocation5 + $0x48] sm:$0xff] %vm675, %v2386
        %2485 = vst.msk [vmem:[#allocation5 + $0x50] sm:$0xff] %vm675, %v2388
        %2486 = vst.msk [vmem:[#allocation5 + $0x58] sm:$0xff] %vm675, %v2390
        %2487 = vst.msk [vmem:[#allocation5 + $0x60] sm:$0xff] %vm675, %v2392
        %2488 = vst.msk [vmem:[#allocation5 + $0x68] sm:$0xff] %vm675, %v2394
        %2489 = vst.msk [vmem:[#allocation5 + $0x70] sm:$0xff] %vm675, %v2396
        %2490 = vst.msk [vmem:[#allocation5 + $0x78] sm:$0xff] %vm675, %v2398
        %2491 = vst.msk [vmem:[#allocation5 + $0x80] sm:$0xff] %vm675, %v2400
        %2492 = vst.msk [vmem:[#allocation5 + $0x88] sm:$0xff] %vm675, %v2402
        %2493 = vst.msk [vmem:[#allocation5 + $0x90] sm:$0xff] %vm675, %v2404
        %2494 = vst.msk [vmem:[#allocation5 + $0x98] sm:$0xff] %vm675, %v2406
        %2495 = vst.msk [vmem:[#allocation5 + $0xa0] sm:$0xff] %vm675, %v2408
        %2496 = vst.msk [vmem:[#allocation5 + $0xa8] sm:$0xff] %vm675, %v2410
        %2497 = vst.msk [vmem:[#allocation5 + $0xb0] sm:$0xff] %vm675, %v2412
        %2498 = vst.msk [vmem:[#allocation5 + $0xb8] sm:$0xff] %vm675, %v2414
        %2499 = vst.msk [vmem:[#allocation5 + $0xc0] sm:$0xff] %vm675, %v2416
        %2500 = vst.msk [vmem:[#allocation5 + $0xc8] sm:$0xff] %vm675, %v2418
        %2501 = vst.msk [vmem:[#allocation5 + $0xd0] sm:$0xff] %vm675, %v2420
        %2502 = vst.msk [vmem:[#allocation5 + $0xd8] sm:$0xff] %vm675, %v2422
        %2503 = vst.msk [vmem:[#allocation5 + $0xe0] sm:$0xff] %vm675, %v2424
        %2504 = vst.msk [vmem:[#allocation5 + $0xe8] sm:$0xff] %vm675, %v2426
        %2505 = vst.msk [vmem:[#allocation5 + $0xf0] sm:$0xff] %vm675, %v2428
        %2506 = vst.msk [vmem:[#allocation5 + $0xf8] sm:$0xff] %vm675, %v2430
        %2507 = vst.msk [vmem:[#allocation5 + $0x100] sm:$0xff] %vm675, %v2432
        %2508 = vst.msk [vmem:[#allocation5 + $0x108] sm:$0xff] %vm675, %v2434
        %2509 = vst.msk [vmem:[#allocation5 + $0x110] sm:$0xff] %vm675, %v2436
        %2510 = vst.msk [vmem:[#allocation5 + $0x118] sm:$0xff] %vm675, %v2438
        %v2511 = vld [vmem:[#allocation4 + $0x2] sm:$0xff]
        %v2512 = vld [vmem:[#allocation4 + $0xa] sm:$0xff]
        %v2513 = vld [vmem:[#allocation4 + $0x1a] sm:$0xff]
        %v2514 = vld [vmem:[#allocation4 + $0x22] sm:$0xff]
        %v2515 = vld [vmem:[#allocation4 + $0x32] sm:$0xff]
        %v2516 = vld [vmem:[#allocation4 + $0x3a] sm:$0xff]
        %v2517 = vld [vmem:[#allocation4 + $0x4a] sm:$0xff]
        %v2518 = vld [vmem:[#allocation4 + $0x52] sm:$0xff]
        %v2519 = vld [vmem:[#allocation4 + $0x62] sm:$0xff]
        %v2520 = vld [vmem:[#allocation4 + $0x6a] sm:$0xff]
        %v2521 = vld [vmem:[#allocation4 + $0x7a] sm:$0xff]
        %v2522 = vld [vmem:[#allocation4 + $0x82] sm:$0xff]
        %v2523 = vld [vmem:[#allocation4 + $0x92] sm:$0xff]
        %v2524 = vld [vmem:[#allocation4 + $0x9a] sm:$0xff]
        %v2525 = vld [vmem:[#allocation4 + $0xaa] sm:$0xff]
        %v2526 = vld [vmem:[#allocation4 + $0xb2] sm:$0xff]
        %v2527 = vld [vmem:[#allocation4 + $0xc2] sm:$0xff]
        %v2528 = vld [vmem:[#allocation4 + $0xca] sm:$0xff]
        %v2529 = vld [vmem:[#allocation4 + $0xda] sm:$0xff]
        %v2530 = vld [vmem:[#allocation4 + $0xe2] sm:$0xff]
        %v2531 = vld [vmem:[#allocation4 + $0xf2] sm:$0xff]
        %v2532 = vld [vmem:[#allocation4 + $0xfa] sm:$0xff]
        %v2533 = vld [vmem:[#allocation4 + $0x10a] sm:$0xff]
        %v2534 = vld [vmem:[#allocation4 + $0x112] sm:$0xff]
        %v2535 = vld [vmem:[#allocation4 + $0x122] sm:$0xff]
        %v2536 = vld [vmem:[#allocation4 + $0x12a] sm:$0xff]
        %v2537 = vld [vmem:[#allocation4 + $0x13a] sm:$0xff]
        %v2538 = vld [vmem:[#allocation4 + $0x142] sm:$0xff]
        %v2539 = vld [vmem:[#allocation4 + $0x152] sm:$0xff]
        %v2540 = vld [vmem:[#allocation4 + $0x15a] sm:$0xff]
        %v2541 = vld [vmem:[#allocation4 + $0x16a] sm:$0xff]
        %v2542 = vld [vmem:[#allocation4 + $0x172] sm:$0xff]
        %v2543 = vld [vmem:[#allocation4 + $0x182] sm:$0xff]
        %v2544 = vld [vmem:[#allocation4 + $0x18a] sm:$0xff]
        %v2545 = vld [vmem:[#allocation4 + $0x19a] sm:$0xff]
        %v2546 = vld [vmem:[#allocation4 + $0x1a2] sm:$0xff]
        %2583 = vrot.lane.b32.xlu0 %v2511, 8
        %v2584 = vpop.permute.xlu0 %2583
        %2585 = vrot.lane.b32.xlu0 %v2512, 8
        %v2586 = vpop.permute.xlu0 %2585
        %2587 = vrot.lane.b32.xlu0 %v2513, 8
        %v2588 = vpop.permute.xlu0 %2587
        %2589 = vrot.lane.b32.xlu0 %v2514, 8
        %v2590 = vpop.permute.xlu0 %2589
        %2591 = vrot.lane.b32.xlu0 %v2515, 8
        %v2592 = vpop.permute.xlu0 %2591
        %2593 = vrot.lane.b32.xlu0 %v2516, 8
        %v2594 = vpop.permute.xlu0 %2593
        %2595 = vrot.lane.b32.xlu0 %v2517, 8
        %v2596 = vpop.permute.xlu0 %2595
        %2597 = vrot.lane.b32.xlu0 %v2518, 8
        %v2598 = vpop.permute.xlu0 %2597
        %2599 = vrot.lane.b32.xlu0 %v2519, 8
        %v2600 = vpop.permute.xlu0 %2599
        %2601 = vrot.lane.b32.xlu0 %v2520, 8
        %v2602 = vpop.permute.xlu0 %2601
        %2603 = vrot.lane.b32.xlu0 %v2521, 8
        %v2604 = vpop.permute.xlu0 %2603
        %2605 = vrot.lane.b32.xlu0 %v2522, 8
        %v2606 = vpop.permute.xlu0 %2605
        %2607 = vrot.lane.b32.xlu0 %v2523, 8
        %v2608 = vpop.permute.xlu0 %2607
        %2609 = vrot.lane.b32.xlu0 %v2524, 8
        %v2610 = vpop.permute.xlu0 %2609
        %2611 = vrot.lane.b32.xlu0 %v2525, 8
        %v2612 = vpop.permute.xlu0 %2611
        %2613 = vrot.lane.b32.xlu0 %v2526, 8
        %v2614 = vpop.permute.xlu0 %2613
        %2615 = vrot.lane.b32.xlu0 %v2527, 8
        %v2616 = vpop.permute.xlu0 %2615
        %2617 = vrot.lane.b32.xlu0 %v2528, 8
        %v2618 = vpop.permute.xlu0 %2617
        %2619 = vrot.lane.b32.xlu0 %v2529, 8
        %v2620 = vpop.permute.xlu0 %2619
        %2621 = vrot.lane.b32.xlu0 %v2530, 8
        %v2622 = vpop.permute.xlu0 %2621
        %2623 = vrot.lane.b32.xlu0 %v2531, 8
        %v2624 = vpop.permute.xlu0 %2623
        %2625 = vrot.lane.b32.xlu0 %v2532, 8
        %v2626 = vpop.permute.xlu0 %2625
        %2627 = vrot.lane.b32.xlu0 %v2533, 8
        %v2628 = vpop.permute.xlu0 %2627
        %2629 = vrot.lane.b32.xlu0 %v2534, 8
        %v2630 = vpop.permute.xlu0 %2629
        %2631 = vrot.lane.b32.xlu0 %v2535, 8
        %v2632 = vpop.permute.xlu0 %2631
        %2633 = vrot.lane.b32.xlu0 %v2536, 8
        %v2634 = vpop.permute.xlu0 %2633
        %2635 = vrot.lane.b32.xlu0 %v2537, 8
        %v2636 = vpop.permute.xlu0 %2635
        %2637 = vrot.lane.b32.xlu0 %v2538, 8
        %v2638 = vpop.permute.xlu0 %2637
        %2639 = vrot.lane.b32.xlu0 %v2539, 8
        %v2640 = vpop.permute.xlu0 %2639
        %2641 = vrot.lane.b32.xlu0 %v2540, 8
        %v2642 = vpop.permute.xlu0 %2641
        %2643 = vrot.lane.b32.xlu0 %v2541, 8
        %v2644 = vpop.permute.xlu0 %2643
        %2645 = vrot.lane.b32.xlu0 %v2542, 8
        %v2646 = vpop.permute.xlu0 %2645
        %2647 = vrot.lane.b32.xlu0 %v2543, 8
        %v2648 = vpop.permute.xlu0 %2647
        %2649 = vrot.lane.b32.xlu0 %v2544, 8
        %v2650 = vpop.permute.xlu0 %2649
        %2651 = vrot.lane.b32.xlu0 %v2545, 8
        %v2652 = vpop.permute.xlu0 %2651
        %2653 = vrot.lane.b32.xlu0 %v2546, 8
        %v2654 = vpop.permute.xlu0 %2653
        %2691 = vst.msk [vmem:[#allocation5] sm:$0xff] %vm892, %v2584
        %2692 = vst.msk [vmem:[#allocation5 + $0x8] sm:$0xff] %vm892, %v2586
        %2693 = vst.msk [vmem:[#allocation5 + $0x10] sm:$0xff] %vm892, %v2588
        %2694 = vst.msk [vmem:[#allocation5 + $0x18] sm:$0xff] %vm892, %v2590
        %2695 = vst.msk [vmem:[#allocation5 + $0x20] sm:$0xff] %vm892, %v2592
        %2696 = vst.msk [vmem:[#allocation5 + $0x28] sm:$0xff] %vm892, %v2594
        %2697 = vst.msk [vmem:[#allocation5 + $0x30] sm:$0xff] %vm892, %v2596
        %2698 = vst.msk [vmem:[#allocation5 + $0x38] sm:$0xff] %vm892, %v2598
        %2699 = vst.msk [vmem:[#allocation5 + $0x40] sm:$0xff] %vm892, %v2600
        %2700 = vst.msk [vmem:[#allocation5 + $0x48] sm:$0xff] %vm892, %v2602
        %2701 = vst.msk [vmem:[#allocation5 + $0x50] sm:$0xff] %vm892, %v2604
        %2702 = vst.msk [vmem:[#allocation5 + $0x58] sm:$0xff] %vm892, %v2606
        %2703 = vst.msk [vmem:[#allocation5 + $0x60] sm:$0xff] %vm892, %v2608
        %2704 = vst.msk [vmem:[#allocation5 + $0x68] sm:$0xff] %vm892, %v2610
        %2705 = vst.msk [vmem:[#allocation5 + $0x70] sm:$0xff] %vm892, %v2612
        %2706 = vst.msk [vmem:[#allocation5 + $0x78] sm:$0xff] %vm892, %v2614
        %2707 = vst.msk [vmem:[#allocation5 + $0x80] sm:$0xff] %vm892, %v2616
        %2708 = vst.msk [vmem:[#allocation5 + $0x88] sm:$0xff] %vm892, %v2618
        %2709 = vst.msk [vmem:[#allocation5 + $0x90] sm:$0xff] %vm892, %v2620
        %2710 = vst.msk [vmem:[#allocation5 + $0x98] sm:$0xff] %vm892, %v2622
        %2711 = vst.msk [vmem:[#allocation5 + $0xa0] sm:$0xff] %vm892, %v2624
        %2712 = vst.msk [vmem:[#allocation5 + $0xa8] sm:$0xff] %vm892, %v2626
        %2713 = vst.msk [vmem:[#allocation5 + $0xb0] sm:$0xff] %vm892, %v2628
        %2714 = vst.msk [vmem:[#allocation5 + $0xb8] sm:$0xff] %vm892, %v2630
        %2715 = vst.msk [vmem:[#allocation5 + $0xc0] sm:$0xff] %vm892, %v2632
        %2716 = vst.msk [vmem:[#allocation5 + $0xc8] sm:$0xff] %vm892, %v2634
        %2717 = vst.msk [vmem:[#allocation5 + $0xd0] sm:$0xff] %vm892, %v2636
        %2718 = vst.msk [vmem:[#allocation5 + $0xd8] sm:$0xff] %vm892, %v2638
        %2719 = vst.msk [vmem:[#allocation5 + $0xe0] sm:$0xff] %vm892, %v2640
        %2720 = vst.msk [vmem:[#allocation5 + $0xe8] sm:$0xff] %vm892, %v2642
        %2721 = vst.msk [vmem:[#allocation5 + $0xf0] sm:$0xff] %vm892, %v2644
        %2722 = vst.msk [vmem:[#allocation5 + $0xf8] sm:$0xff] %vm892, %v2646
        %2723 = vst.msk [vmem:[#allocation5 + $0x100] sm:$0xff] %vm892, %v2648
        %2724 = vst.msk [vmem:[#allocation5 + $0x108] sm:$0xff] %vm892, %v2650
        %2725 = vst.msk [vmem:[#allocation5 + $0x110] sm:$0xff] %vm892, %v2652
        %2726 = vst.msk [vmem:[#allocation5 + $0x118] sm:$0xff] %vm892, %v2654
        %s2727 = smul.u32 %s211, 2
        %s2728 = sadd.s32 %s2727, 1
        %s2729 = smul.u32 %s2728, 3
        %v2730 = vld [vmem:[#allocation5] sm:$0xff]
        %v2731 = vld [vmem:[#allocation5 + $0x8] sm:$0xff]
        %v2732 = vld [vmem:[#allocation5 + $0x10] sm:$0xff]
        %v2733 = vld [vmem:[#allocation5 + $0x18] sm:$0xff]
        %v2734 = vld [vmem:[#allocation5 + $0x20] sm:$0xff]
        %v2735 = vld [vmem:[#allocation5 + $0x28] sm:$0xff]
        %v2736 = vld [vmem:[#allocation5 + $0x30] sm:$0xff]
        %v2737 = vld [vmem:[#allocation5 + $0x38] sm:$0xff]
        %v2738 = vld [vmem:[#allocation5 + $0x40] sm:$0xff]
        %v2739 = vld [vmem:[#allocation5 + $0x48] sm:$0xff]
        %v2740 = vld [vmem:[#allocation5 + $0x50] sm:$0xff]
        %v2741 = vld [vmem:[#allocation5 + $0x58] sm:$0xff]
        %v2742 = vld [vmem:[#allocation5 + $0x60] sm:$0xff]
        %v2743 = vld [vmem:[#allocation5 + $0x68] sm:$0xff]
        %v2744 = vld [vmem:[#allocation5 + $0x70] sm:$0xff]
        %v2745 = vld [vmem:[#allocation5 + $0x78] sm:$0xff]
        %v2746 = vld [vmem:[#allocation5 + $0x80] sm:$0xff]
        %v2747 = vld [vmem:[#allocation5 + $0x88] sm:$0xff]
        %v2748 = vld [vmem:[#allocation5 + $0x90] sm:$0xff]
        %v2749 = vld [vmem:[#allocation5 + $0x98] sm:$0xff]
        %v2750 = vld [vmem:[#allocation5 + $0xa0] sm:$0xff]
        %v2751 = vld [vmem:[#allocation5 + $0xa8] sm:$0xff]
        %v2752 = vld [vmem:[#allocation5 + $0xb0] sm:$0xff]
        %v2753 = vld [vmem:[#allocation5 + $0xb8] sm:$0xff]
        %v2754 = vld [vmem:[#allocation5 + $0xc0] sm:$0xff]
        %v2755 = vld [vmem:[#allocation5 + $0xc8] sm:$0xff]
        %v2756 = vld [vmem:[#allocation5 + $0xd0] sm:$0xff]
        %v2757 = vld [vmem:[#allocation5 + $0xd8] sm:$0xff]
        %v2758 = vld [vmem:[#allocation5 + $0xe0] sm:$0xff]
        %v2759 = vld [vmem:[#allocation5 + $0xe8] sm:$0xff]
        %v2760 = vld [vmem:[#allocation5 + $0xf0] sm:$0xff]
        %v2761 = vld [vmem:[#allocation5 + $0xf8] sm:$0xff]
        %v2762 = vpack.c.bf16 %v2731, %v2730
        %v2763 = vpack.c.bf16 %v2733, %v2732
        %v2764 = vpack.c.bf16 %v2735, %v2734
        %v2765 = vpack.c.bf16 %v2737, %v2736
        %v2766 = vpack.c.bf16 %v2739, %v2738
        %v2767 = vpack.c.bf16 %v2741, %v2740
        %v2768 = vpack.c.bf16 %v2743, %v2742
        %v2769 = vpack.c.bf16 %v2745, %v2744
        %v2770 = vpack.c.bf16 %v2747, %v2746
        %v2771 = vpack.c.bf16 %v2749, %v2748
        %v2772 = vpack.c.bf16 %v2751, %v2750
        %v2773 = vpack.c.bf16 %v2753, %v2752
        %v2774 = vpack.c.bf16 %v2755, %v2754
        %v2775 = vpack.c.bf16 %v2757, %v2756
        %v2776 = vpack.c.bf16 %v2759, %v2758
        %v2777 = vpack.c.bf16 %v2761, %v2760
        %s2778 = smul.u32 %s2729, 2
        %s2779 = smul.addr %s2778, 4
        %s2780 = scalar_lea.vmem %s1, %s2779
        %v2781 = vld [vmem:[%s2780] sm:$0xf]
        %v2782 = vld [vmem:[%s2780 + $0x4] sm:$0x3]
        %v2783 = vld [vmem:[%s983] sm:$0xff]
        %v2784 = vld [vmem:[%s983 + $0x8] sm:$0xff]
        %v2785 = vld [vmem:[%s983 + $0x10] sm:$0xff]
        %v2786 = vld [vmem:[%s983 + $0x18] sm:$0xff]
        %v2787 = vld [vmem:[%s983 + $0x20] sm:$0xff]
        %v2788 = vld [vmem:[%s983 + $0x28] sm:$0xff]
        %v2789 = vld [vmem:[%s983 + $0x30] sm:$0xff]
        %v2790 = vld [vmem:[%s983 + $0x38] sm:$0xff]
        %v2791 = vld [vmem:[%s983 + $0x40] sm:$0xff]
        %v2792 = vld [vmem:[%s983 + $0x48] sm:$0xff]
        %v2793 = vld [vmem:[%s983 + $0x50] sm:$0xff]
        %v2794 = vld [vmem:[%s983 + $0x58] sm:$0xff]
        %v2795 = vld [vmem:[%s983 + $0x60] sm:$0xff]
        %v2796 = vld [vmem:[%s983 + $0x68] sm:$0xff]
        %v2797 = vld [vmem:[%s983 + $0x70] sm:$0xff]
        %v2798 = vld [vmem:[%s983 + $0x78] sm:$0xff]
        %v2799 = vld [vmem:[%s983 + $0x80] sm:$0xff]
        %v2800 = vld [vmem:[%s983 + $0x88] sm:$0xff]
        %v2801 = vld [vmem:[%s983 + $0x90] sm:$0xff]
        %v2802 = vld [vmem:[%s983 + $0x98] sm:$0xff]
        %v2803 = vld [vmem:[%s983 + $0xa0] sm:$0xff]
        %v2804 = vld [vmem:[%s983 + $0xa8] sm:$0xff]
        %v2805 = vld [vmem:[%s983 + $0xb0] sm:$0xff]
        %v2806 = vld [vmem:[%s983 + $0xb8] sm:$0xff]
        %v2807 = vld [vmem:[%s983 + $0xc0] sm:$0xff]
        %v2808 = vld [vmem:[%s983 + $0xc8] sm:$0xff]
        %v2809 = vld [vmem:[%s983 + $0xd0] sm:$0xff]
        %v2810 = vld [vmem:[%s983 + $0xd8] sm:$0xff]
        %v2811 = vld [vmem:[%s983 + $0xe0] sm:$0xff]
        %v2812 = vld [vmem:[%s983 + $0xe8] sm:$0xff]
        %v2813 = vld [vmem:[%s983 + $0xf0] sm:$0xff]
        %v2814 = vld [vmem:[%s983 + $0xf8] sm:$0xff]
        %v2815 = vpack.c.bf16 %v2784, %v2783
        %v2816 = vpack.c.bf16 %v2786, %v2785
        %v2817 = vpack.c.bf16 %v2788, %v2787
        %v2818 = vpack.c.bf16 %v2790, %v2789
        %v2819 = vpack.c.bf16 %v2792, %v2791
        %v2820 = vpack.c.bf16 %v2794, %v2793
        %v2821 = vpack.c.bf16 %v2796, %v2795
        %v2822 = vpack.c.bf16 %v2798, %v2797
        %v2823 = vpack.c.bf16 %v2800, %v2799
        %v2824 = vpack.c.bf16 %v2802, %v2801
        %v2825 = vpack.c.bf16 %v2804, %v2803
        %v2826 = vpack.c.bf16 %v2806, %v2805
        %v2827 = vpack.c.bf16 %v2808, %v2807
        %v2828 = vpack.c.bf16 %v2810, %v2809
        %v2829 = vpack.c.bf16 %v2812, %v2811
        %v2830 = vpack.c.bf16 %v2814, %v2813
        %s2831 = sadd.s32 %s2729, 1
        %s2832 = smul.u32 %s2831, 2
        %s2833 = smul.addr %s2832, 4
        %s2834 = scalar_lea.vmem %s1, %s2833
        %v2835 = vld [vmem:[%s2834] sm:$0xf]
        %v2836 = vld [vmem:[%s2834 + $0x4] sm:$0x3]
        %v2839 = vunpack.c.l.b16 %v2835
        %v2840 = vunpack.c.l.b16 %v2836
        %v2841 = vpack.c.b16 %v2840, %v2839
        %v2843 = vsel %vm1043, %v2815, 0
        %v2846 = vsel %vm1043, %v2816, 0
        %v2849 = vsel %vm1043, %v2817, 0
        %v2852 = vsel %vm1043, %v2818, 0
        %v2855 = vsel %vm1043, %v2819, 0
        %v2858 = vsel %vm1043, %v2820, 0
        %v2861 = vsel %vm1043, %v2821, 0
        %v2864 = vsel %vm1043, %v2822, 0
        %v2867 = vsel %vm1043, %v2823, 0
        %v2870 = vsel %vm1043, %v2824, 0
        %v2873 = vsel %vm1043, %v2825, 0
        %v2876 = vsel %vm1043, %v2826, 0
        %v2879 = vsel %vm1043, %v2827, 0
        %v2882 = vsel %vm1043, %v2828, 0
        %v2885 = vsel %vm1043, %v2829, 0
        %v2888 = vsel %vm1043, %v2830, 0
        %v2891 = vsel %vm1092, %v2841, 0
        %2893 = vmatprep.subr.bf16.mxu0 0
        %2894 = vmatpush1.bf16.msra.mxu0 %v2891
        %2895 = vmatprep.subr.bf16.mxu0 0
        %2896 = vmatpush1.bf16.msra.mxu0 0
        %2897 = vmatprep.subr.bf16.mxu0 0
        %2898 = vmatpush1.bf16.msra.mxu0 0
        %2899 = vmatprep.subr.bf16.mxu0 0
        %2900 = vmatpush1.bf16.msra.mxu0 0
        %2901 = vmatprep.subr.bf16.mxu0 0
        %2902 = vmatpush1.bf16.msra.mxu0 0
        %2903 = vmatprep.subr.bf16.mxu0 0
        %2904 = vmatpush1.bf16.msra.mxu0 0
        %2905 = vmatprep.subr.bf16.mxu0 0
        %2906 = vmatpush1.bf16.msra.mxu0 0
        %2907 = vmatprep.subr.bf16.mxu0 0
        %2908 = vmatpush1.bf16.msra.mxu0 0
        %2909 = vmatprep.subr.bf16.mxu0 0
        %2910 = vmatpush1.bf16.msra.mxu0 0
        %2911 = vmatprep.subr.bf16.mxu0 0
        %2912 = vmatpush1.bf16.msra.mxu0 0
        %2913 = vmatprep.subr.bf16.mxu0 0
        %2914 = vmatpush1.bf16.msra.mxu0 0
        %2915 = vmatprep.subr.bf16.mxu0 0
        %2916 = vmatpush1.bf16.msra.mxu0 0
        %2917 = vmatprep.subr.bf16.mxu0 0
        %2918 = vmatpush1.bf16.msra.mxu0 0
        %2919 = vmatprep.subr.bf16.mxu0 0
        %2920 = vmatpush1.bf16.msra.mxu0 0
        %2921 = vmatprep.subr.bf16.mxu0 0
        %2922 = vmatpush1.bf16.msra.mxu0 0
        %2923 = vmatprep.subr.bf16.mxu0 0
        %2924 = vmatpush1.bf16.msra.mxu0 0
        %2925 = vmatprep.mubr.bf16.mxu0 0
        %2926 = vmatmul.mubr.bf16.gmra.mrb[0].mxu0 %v2843
        %v2927 = vpop.f32.mrb[0].mxu0
        %v2928 = vadd.f32 0.0, %v2927
        %v2929 = vpop.f32.mrb[0].mxu0
        %v2930 = vpop.f32.mrb[0].mxu0
        %v2931 = vadd.f32 0.0, %v2930
        %v2932 = vpop.f32.mrb[0].mxu0
        %2933 = vmatprep.mubr.bf16.mxu0 0
        %2934 = vmatmul.mubr.bf16.gmra.mrb[0].mxu0 %v2846
        %v2935 = vpop.f32.mrb[0].mxu0
        %v2936 = vadd.f32 0.0, %v2935
        %v2937 = vpop.f32.mrb[0].mxu0
        %v2938 = vpop.f32.mrb[0].mxu0
        %v2939 = vadd.f32 0.0, %v2938
        %v2940 = vpop.f32.mrb[0].mxu0
        %2941 = vmatprep.mubr.bf16.mxu0 0
        %2942 = vmatmul.mubr.bf16.gmra.mrb[0].mxu0 %v2849
        %v2943 = vpop.f32.mrb[0].mxu0
        %v2944 = vadd.f32 0.0, %v2943
        %v2945 = vpop.f32.mrb[0].mxu0
        %v2946 = vpop.f32.mrb[0].mxu0
        %v2947 = vadd.f32 0.0, %v2946
        %v2948 = vpop.f32.mrb[0].mxu0
        %2949 = vmatprep.mubr.bf16.mxu0 0
        %2950 = vmatmul.mubr.bf16.gmra.mrb[0].mxu0 %v2852
        %v2951 = vpop.f32.mrb[0].mxu0
        %v2952 = vadd.f32 0.0, %v2951
        %v2953 = vpop.f32.mrb[0].mxu0
        %v2954 = vpop.f32.mrb[0].mxu0
        %v2955 = vadd.f32 0.0, %v2954
        %v2956 = vpop.f32.mrb[0].mxu0
        %2957 = vmatprep.mubr.bf16.mxu0 0
        %2958 = vmatmul.mubr.bf16.gmra.mrb[0].mxu0 %v2855
        %v2959 = vpop.f32.mrb[0].mxu0
        %v2960 = vadd.f32 0.0, %v2959
        %v2961 = vpop.f32.mrb[0].mxu0
        %v2962 = vpop.f32.mrb[0].mxu0
        %v2963 = vadd.f32 0.0, %v2962
        %v2964 = vpop.f32.mrb[0].mxu0
        %2965 = vmatprep.mubr.bf16.mxu0 0
        %2966 = vmatmul.mubr.bf16.gmra.mrb[0].mxu0 %v2858
        %v2967 = vpop.f32.mrb[0].mxu0
        %v2968 = vadd.f32 0.0, %v2967
        %v2969 = vpop.f32.mrb[0].mxu0
        %v2970 = vpop.f32.mrb[0].mxu0
        %v2971 = vadd.f32 0.0, %v2970
        %v2972 = vpop.f32.mrb[0].mxu0
        %2973 = vmatprep.mubr.bf16.mxu0 0
        %2974 = vmatmul.mubr.bf16.gmra.mrb[0].mxu0 %v2861
        %v2975 = vpop.f32.mrb[0].mxu0
        %v2976 = vadd.f32 0.0, %v2975
        %v2977 = vpop.f32.mrb[0].mxu0
        %v2978 = vpop.f32.mrb[0].mxu0
        %v2979 = vadd.f32 0.0, %v2978
        %v2980 = vpop.f32.mrb[0].mxu0
        %2981 = vmatprep.mubr.bf16.mxu0 0
        %2982 = vmatmul.mubr.bf16.gmra.mrb[0].mxu0 %v2864
        %v2983 = vpop.f32.mrb[0].mxu0
        %v2984 = vadd.f32 0.0, %v2983
        %v2985 = vpop.f32.mrb[0].mxu0
        %v2986 = vpop.f32.mrb[0].mxu0
        %v2987 = vadd.f32 0.0, %v2986
        %v2988 = vpop.f32.mrb[0].mxu0
        %2989 = vmatprep.mubr.bf16.mxu0 0
        %2990 = vmatmul.mubr.bf16.gmra.mrb[0].mxu0 %v2867
        %v2991 = vpop.f32.mrb[0].mxu0
        %v2992 = vadd.f32 0.0, %v2991
        %v2993 = vpop.f32.mrb[0].mxu0
        %v2994 = vpop.f32.mrb[0].mxu0
        %v2995 = vadd.f32 0.0, %v2994
        %v2996 = vpop.f32.mrb[0].mxu0
        %2997 = vmatprep.mubr.bf16.mxu0 0
        %2998 = vmatmul.mubr.bf16.gmra.mrb[0].mxu0 %v2870
        %v2999 = vpop.f32.mrb[0].mxu0
        %v3000 = vadd.f32 0.0, %v2999
        %v3001 = vpop.f32.mrb[0].mxu0
        %v3002 = vpop.f32.mrb[0].mxu0
        %v3003 = vadd.f32 0.0, %v3002
        %v3004 = vpop.f32.mrb[0].mxu0
        %3005 = vmatprep.mubr.bf16.mxu0 0
        %3006 = vmatmul.mubr.bf16.gmra.mrb[0].mxu0 %v2873
        %v3007 = vpop.f32.mrb[0].mxu0
        %v3008 = vadd.f32 0.0, %v3007
        %v3009 = vpop.f32.mrb[0].mxu0
        %v3010 = vpop.f32.mrb[0].mxu0
        %v3011 = vadd.f32 0.0, %v3010
        %v3012 = vpop.f32.mrb[0].mxu0
        %3013 = vmatprep.mubr.bf16.mxu0 0
        %3014 = vmatmul.mubr.bf16.gmra.mrb[0].mxu0 %v2876
        %v3015 = vpop.f32.mrb[0].mxu0
        %v3016 = vadd.f32 0.0, %v3015
        %v3017 = vpop.f32.mrb[0].mxu0
        %v3018 = vpop.f32.mrb[0].mxu0
        %v3019 = vadd.f32 0.0, %v3018
        %v3020 = vpop.f32.mrb[0].mxu0
        %3021 = vmatprep.mubr.bf16.mxu0 0
        %3022 = vmatmul.mubr.bf16.gmra.mrb[0].mxu0 %v2879
        %v3023 = vpop.f32.mrb[0].mxu0
        %v3024 = vadd.f32 0.0, %v3023
        %v3025 = vpop.f32.mrb[0].mxu0
        %v3026 = vpop.f32.mrb[0].mxu0
        %v3027 = vadd.f32 0.0, %v3026
        %v3028 = vpop.f32.mrb[0].mxu0
        %3029 = vmatprep.mubr.bf16.mxu0 0
        %3030 = vmatmul.mubr.bf16.gmra.mrb[0].mxu0 %v2882
        %v3031 = vpop.f32.mrb[0].mxu0
        %v3032 = vadd.f32 0.0, %v3031
        %v3033 = vpop.f32.mrb[0].mxu0
        %v3034 = vpop.f32.mrb[0].mxu0
        %v3035 = vadd.f32 0.0, %v3034
        %v3036 = vpop.f32.mrb[0].mxu0
        %3037 = vmatprep.mubr.bf16.mxu0 0
        %3038 = vmatmul.mubr.bf16.gmra.mrb[0].mxu0 %v2885
        %v3039 = vpop.f32.mrb[0].mxu0
        %v3040 = vadd.f32 0.0, %v3039
        %v3041 = vpop.f32.mrb[0].mxu0
        %v3042 = vpop.f32.mrb[0].mxu0
        %v3043 = vadd.f32 0.0, %v3042
        %v3044 = vpop.f32.mrb[0].mxu0
        %3045 = vmatprep.mubr.bf16.mxu0 0
        %3046 = vmatmul.mubr.bf16.gmra.mrb[0].mxu0 %v2888
        %v3047 = vpop.f32.mrb[0].mxu0
        %v3048 = vadd.f32 0.0, %v3047
        %v3049 = vpop.f32.mrb[0].mxu0
        %v3050 = vpop.f32.mrb[0].mxu0
        %v3051 = vadd.f32 0.0, %v3050
        %v3052 = vpop.f32.mrb[0].mxu0
        %3053 = vdwg.mxu0
        %v3056 = vunpack.c.l.b16 %v2781
        %v3057 = vunpack.c.l.b16 %v2782
        %v3058 = vpack.c.b16 %v3057, %v3056
        %v3060 = vsel %vm1043, %v2762, 0
        %v3063 = vsel %vm1043, %v2763, 0
        %v3066 = vsel %vm1043, %v2764, 0
        %v3069 = vsel %vm1043, %v2765, 0
        %v3072 = vsel %vm1043, %v2766, 0
        %v3075 = vsel %vm1043, %v2767, 0
        %v3078 = vsel %vm1043, %v2768, 0
        %v3081 = vsel %vm1043, %v2769, 0
        %v3084 = vsel %vm1043, %v2770, 0
        %v3087 = vsel %vm1043, %v2771, 0
        %v3090 = vsel %vm1043, %v2772, 0
        %v3093 = vsel %vm1043, %v2773, 0
        %v3096 = vsel %vm1043, %v2774, 0
        %v3099 = vsel %vm1043, %v2775, 0
        %v3102 = vsel %vm1043, %v2776, 0
        %v3105 = vsel %vm1043, %v2777, 0
        %v3108 = vsel %vm1092, %v3058, 0
        %3110 = vmatprep.subr.bf16.mxu0 0
        %3111 = vmatpush1.bf16.msra.mxu0 %v3108
        %3112 = vmatprep.subr.bf16.mxu0 0
        %3113 = vmatpush1.bf16.msra.mxu0 0
        %3114 = vmatprep.subr.bf16.mxu0 0
        %3115 = vmatpush1.bf16.msra.mxu0 0
        %3116 = vmatprep.subr.bf16.mxu0 0
        %3117 = vmatpush1.bf16.msra.mxu0 0
        %3118 = vmatprep.subr.bf16.mxu0 0
        %3119 = vmatpush1.bf16.msra.mxu0 0
        %3120 = vmatprep.subr.bf16.mxu0 0
        %3121 = vmatpush1.bf16.msra.mxu0 0
        %3122 = vmatprep.subr.bf16.mxu0 0
        %3123 = vmatpush1.bf16.msra.mxu0 0
        %3124 = vmatprep.subr.bf16.mxu0 0
        %3125 = vmatpush1.bf16.msra.mxu0 0
        %3126 = vmatprep.subr.bf16.mxu0 0
        %3127 = vmatpush1.bf16.msra.mxu0 0
        %3128 = vmatprep.subr.bf16.mxu0 0
        %3129 = vmatpush1.bf16.msra.mxu0 0
        %3130 = vmatprep.subr.bf16.mxu0 0
        %3131 = vmatpush1.bf16.msra.mxu0 0
        %3132 = vmatprep.subr.bf16.mxu0 0
        %3133 = vmatpush1.bf16.msra.mxu0 0
        %3134 = vmatprep.subr.bf16.mxu0 0
        %3135 = vmatpush1.bf16.msra.mxu0 0
        %3136 = vmatprep.subr.bf16.mxu0 0
        %3137 = vmatpush1.bf16.msra.mxu0 0
        %3138 = vmatprep.subr.bf16.mxu0 0
        %3139 = vmatpush1.bf16.msra.mxu0 0
        %3140 = vmatprep.subr.bf16.mxu0 0
        %3141 = vmatpush1.bf16.msra.mxu0 0
        %3142 = vmatprep.mubr.bf16.mxu0 0
        %3143 = vmatmul.mubr.bf16.gmra.mrb[0].mxu0 %v3060
        %v3144 = vpop.f32.mrb[0].mxu0
        %v3145 = vadd.f32 %v2928, %v3144
        %v3146 = vpop.f32.mrb[0].mxu0
        %v3147 = vpop.f32.mrb[0].mxu0
        %v3148 = vadd.f32 %v2931, %v3147
        %v3149 = vpop.f32.mrb[0].mxu0
        %3150 = vmatprep.mubr.bf16.mxu0 0
        %3151 = vmatmul.mubr.bf16.gmra.mrb[0].mxu0 %v3063
        %v3152 = vpop.f32.mrb[0].mxu0
        %v3153 = vadd.f32 %v2936, %v3152
        %v3154 = vpop.f32.mrb[0].mxu0
        %v3155 = vpop.f32.mrb[0].mxu0
        %v3156 = vadd.f32 %v2939, %v3155
        %v3157 = vpop.f32.mrb[0].mxu0
        %3158 = vmatprep.mubr.bf16.mxu0 0
        %3159 = vmatmul.mubr.bf16.gmra.mrb[0].mxu0 %v3066
        %v3160 = vpop.f32.mrb[0].mxu0
        %v3161 = vadd.f32 %v2944, %v3160
        %v3162 = vpop.f32.mrb[0].mxu0
        %v3163 = vpop.f32.mrb[0].mxu0
        %v3164 = vadd.f32 %v2947, %v3163
        %v3165 = vpop.f32.mrb[0].mxu0
        %3166 = vmatprep.mubr.bf16.mxu0 0
        %3167 = vmatmul.mubr.bf16.gmra.mrb[0].mxu0 %v3069
        %v3168 = vpop.f32.mrb[0].mxu0
        %v3169 = vadd.f32 %v2952, %v3168
        %v3170 = vpop.f32.mrb[0].mxu0
        %v3171 = vpop.f32.mrb[0].mxu0
        %v3172 = vadd.f32 %v2955, %v3171
        %v3173 = vpop.f32.mrb[0].mxu0
        %3174 = vmatprep.mubr.bf16.mxu0 0
        %3175 = vmatmul.mubr.bf16.gmra.mrb[0].mxu0 %v3072
        %v3176 = vpop.f32.mrb[0].mxu0
        %v3177 = vadd.f32 %v2960, %v3176
        %v3178 = vpop.f32.mrb[0].mxu0
        %v3179 = vpop.f32.mrb[0].mxu0
        %v3180 = vadd.f32 %v2963, %v3179
        %v3181 = vpop.f32.mrb[0].mxu0
        %3182 = vmatprep.mubr.bf16.mxu0 0
        %3183 = vmatmul.mubr.bf16.gmra.mrb[0].mxu0 %v3075
        %v3184 = vpop.f32.mrb[0].mxu0
        %v3185 = vadd.f32 %v2968, %v3184
        %v3186 = vpop.f32.mrb[0].mxu0
        %v3187 = vpop.f32.mrb[0].mxu0
        %v3188 = vadd.f32 %v2971, %v3187
        %v3189 = vpop.f32.mrb[0].mxu0
        %3190 = vmatprep.mubr.bf16.mxu0 0
        %3191 = vmatmul.mubr.bf16.gmra.mrb[0].mxu0 %v3078
        %v3192 = vpop.f32.mrb[0].mxu0
        %v3193 = vadd.f32 %v2976, %v3192
        %v3194 = vpop.f32.mrb[0].mxu0
        %v3195 = vpop.f32.mrb[0].mxu0
        %v3196 = vadd.f32 %v2979, %v3195
        %v3197 = vpop.f32.mrb[0].mxu0
        %3198 = vmatprep.mubr.bf16.mxu0 0
        %3199 = vmatmul.mubr.bf16.gmra.mrb[0].mxu0 %v3081
        %v3200 = vpop.f32.mrb[0].mxu0
        %v3201 = vadd.f32 %v2984, %v3200
        %v3202 = vpop.f32.mrb[0].mxu0
        %v3203 = vpop.f32.mrb[0].mxu0
        %v3204 = vadd.f32 %v2987, %v3203
        %v3205 = vpop.f32.mrb[0].mxu0
        %3206 = vmatprep.mubr.bf16.mxu0 0
        %3207 = vmatmul.mubr.bf16.gmra.mrb[0].mxu0 %v3084
        %v3208 = vpop.f32.mrb[0].mxu0
        %v3209 = vadd.f32 %v2992, %v3208
        %v3210 = vpop.f32.mrb[0].mxu0
        %v3211 = vpop.f32.mrb[0].mxu0
        %v3212 = vadd.f32 %v2995, %v3211
        %v3213 = vpop.f32.mrb[0].mxu0
        %3214 = vmatprep.mubr.bf16.mxu0 0
        %3215 = vmatmul.mubr.bf16.gmra.mrb[0].mxu0 %v3087
        %v3216 = vpop.f32.mrb[0].mxu0
        %v3217 = vadd.f32 %v3000, %v3216
        %v3218 = vpop.f32.mrb[0].mxu0
        %v3219 = vpop.f32.mrb[0].mxu0
        %v3220 = vadd.f32 %v3003, %v3219
        %v3221 = vpop.f32.mrb[0].mxu0
        %3222 = vmatprep.mubr.bf16.mxu0 0
        %3223 = vmatmul.mubr.bf16.gmra.mrb[0].mxu0 %v3090
        %v3224 = vpop.f32.mrb[0].mxu0
        %v3225 = vadd.f32 %v3008, %v3224
        %v3226 = vpop.f32.mrb[0].mxu0
        %v3227 = vpop.f32.mrb[0].mxu0
        %v3228 = vadd.f32 %v3011, %v3227
        %v3229 = vpop.f32.mrb[0].mxu0
        %3230 = vmatprep.mubr.bf16.mxu0 0
        %3231 = vmatmul.mubr.bf16.gmra.mrb[0].mxu0 %v3093
        %v3232 = vpop.f32.mrb[0].mxu0
        %v3233 = vadd.f32 %v3016, %v3232
        %v3234 = vpop.f32.mrb[0].mxu0
        %v3235 = vpop.f32.mrb[0].mxu0
        %v3236 = vadd.f32 %v3019, %v3235
        %v3237 = vpop.f32.mrb[0].mxu0
        %3238 = vmatprep.mubr.bf16.mxu0 0
        %3239 = vmatmul.mubr.bf16.gmra.mrb[0].mxu0 %v3096
        %v3240 = vpop.f32.mrb[0].mxu0
        %v3241 = vadd.f32 %v3024, %v3240
        %v3242 = vpop.f32.mrb[0].mxu0
        %v3243 = vpop.f32.mrb[0].mxu0
        %v3244 = vadd.f32 %v3027, %v3243
        %v3245 = vpop.f32.mrb[0].mxu0
        %3246 = vmatprep.mubr.bf16.mxu0 0
        %3247 = vmatmul.mubr.bf16.gmra.mrb[0].mxu0 %v3099
        %v3248 = vpop.f32.mrb[0].mxu0
        %v3249 = vadd.f32 %v3032, %v3248
        %v3250 = vpop.f32.mrb[0].mxu0
        %v3251 = vpop.f32.mrb[0].mxu0
        %v3252 = vadd.f32 %v3035, %v3251
        %v3253 = vpop.f32.mrb[0].mxu0
        %3254 = vmatprep.mubr.bf16.mxu0 0
        %3255 = vmatmul.mubr.bf16.gmra.mrb[0].mxu0 %v3102
        %v3256 = vpop.f32.mrb[0].mxu0
        %v3257 = vadd.f32 %v3040, %v3256
        %v3258 = vpop.f32.mrb[0].mxu0
        %v3259 = vpop.f32.mrb[0].mxu0
        %v3260 = vadd.f32 %v3043, %v3259
        %v3261 = vpop.f32.mrb[0].mxu0
        %3262 = vmatprep.mubr.bf16.mxu0 0
        %3263 = vmatmul.mubr.bf16.gmra.mrb[0].mxu0 %v3105
        %v3264 = vpop.f32.mrb[0].mxu0
        %v3265 = vadd.f32 %v3048, %v3264
        %v3266 = vpop.f32.mrb[0].mxu0
        %v3267 = vpop.f32.mrb[0].mxu0
        %v3268 = vadd.f32 %v3051, %v3267
        %v3269 = vpop.f32.mrb[0].mxu0
        %3270 = vdwg.mxu0
        %v3271 = vld [vmem:[%s1474] sm:$0xff]
        %v3272 = vld [vmem:[%s1474 + $0x8] sm:$0xff]
        %v3273 = vld [vmem:[%s1474 + $0x10] sm:$0xff]
        %v3274 = vld [vmem:[%s1474 + $0x18] sm:$0xff]
        %v3275 = vld [vmem:[%s1474 + $0x20] sm:$0xff]
        %v3276 = vld [vmem:[%s1474 + $0x28] sm:$0xff]
        %v3277 = vld [vmem:[%s1474 + $0x30] sm:$0xff]
        %v3278 = vld [vmem:[%s1474 + $0x38] sm:$0xff]
        %v3279 = vld [vmem:[%s1474 + $0x40] sm:$0xff]
        %v3280 = vld [vmem:[%s1474 + $0x48] sm:$0xff]
        %v3281 = vld [vmem:[%s1474 + $0x50] sm:$0xff]
        %v3282 = vld [vmem:[%s1474 + $0x58] sm:$0xff]
        %v3283 = vld [vmem:[%s1474 + $0x60] sm:$0xff]
        %v3284 = vld [vmem:[%s1474 + $0x68] sm:$0xff]
        %v3285 = vld [vmem:[%s1474 + $0x70] sm:$0xff]
        %v3286 = vld [vmem:[%s1474 + $0x78] sm:$0xff]
        %v3287 = vld [vmem:[%s1474 + $0x80] sm:$0xff]
        %v3288 = vld [vmem:[%s1474 + $0x88] sm:$0xff]
        %v3289 = vld [vmem:[%s1474 + $0x90] sm:$0xff]
        %v3290 = vld [vmem:[%s1474 + $0x98] sm:$0xff]
        %v3291 = vld [vmem:[%s1474 + $0xa0] sm:$0xff]
        %v3292 = vld [vmem:[%s1474 + $0xa8] sm:$0xff]
        %v3293 = vld [vmem:[%s1474 + $0xb0] sm:$0xff]
        %v3294 = vld [vmem:[%s1474 + $0xb8] sm:$0xff]
        %v3295 = vld [vmem:[%s1474 + $0xc0] sm:$0xff]
        %v3296 = vld [vmem:[%s1474 + $0xc8] sm:$0xff]
        %v3297 = vld [vmem:[%s1474 + $0xd0] sm:$0xff]
        %v3298 = vld [vmem:[%s1474 + $0xd8] sm:$0xff]
        %v3299 = vld [vmem:[%s1474 + $0xe0] sm:$0xff]
        %v3300 = vld [vmem:[%s1474 + $0xe8] sm:$0xff]
        %v3301 = vld [vmem:[%s1474 + $0xf0] sm:$0xff]
        %v3302 = vld [vmem:[%s1474 + $0xf8] sm:$0xff]
        %v3303 = vpack.c.bf16 %v3272, %v3271
        %v3304 = vpack.c.bf16 %v3274, %v3273
        %v3305 = vpack.c.bf16 %v3276, %v3275
        %v3306 = vpack.c.bf16 %v3278, %v3277
        %v3307 = vpack.c.bf16 %v3280, %v3279
        %v3308 = vpack.c.bf16 %v3282, %v3281
        %v3309 = vpack.c.bf16 %v3284, %v3283
        %v3310 = vpack.c.bf16 %v3286, %v3285
        %v3311 = vpack.c.bf16 %v3288, %v3287
        %v3312 = vpack.c.bf16 %v3290, %v3289
        %v3313 = vpack.c.bf16 %v3292, %v3291
        %v3314 = vpack.c.bf16 %v3294, %v3293
        %v3315 = vpack.c.bf16 %v3296, %v3295
        %v3316 = vpack.c.bf16 %v3298, %v3297
        %v3317 = vpack.c.bf16 %v3300, %v3299
        %v3318 = vpack.c.bf16 %v3302, %v3301
        %s3319 = sadd.s32 %s2729, 2
        %s3320 = smul.u32 %s3319, 2
        %s3321 = smul.addr %s3320, 4
        %s3322 = scalar_lea.vmem %s1, %s3321
        %v3323 = vld [vmem:[%s3322] sm:$0xf]
        %v3324 = vld [vmem:[%s3322 + $0x4] sm:$0x3]
        %v3327 = vunpack.c.l.b16 %v3323
        %v3328 = vunpack.c.l.b16 %v3324
        %v3329 = vpack.c.b16 %v3328, %v3327
        %v3331 = vsel %vm1043, %v3303, 0
        %v3334 = vsel %vm1043, %v3304, 0
        %v3337 = vsel %vm1043, %v3305, 0
        %v3340 = vsel %vm1043, %v3306, 0
        %v3343 = vsel %vm1043, %v3307, 0
        %v3346 = vsel %vm1043, %v3308, 0
        %v3349 = vsel %vm1043, %v3309, 0
        %v3352 = vsel %vm1043, %v3310, 0
        %v3355 = vsel %vm1043, %v3311, 0
        %v3358 = vsel %vm1043, %v3312, 0
        %v3361 = vsel %vm1043, %v3313, 0
        %v3364 = vsel %vm1043, %v3314, 0
        %v3367 = vsel %vm1043, %v3315, 0
        %v3370 = vsel %vm1043, %v3316, 0
        %v3373 = vsel %vm1043, %v3317, 0
        %v3376 = vsel %vm1043, %v3318, 0
        %v3379 = vsel %vm1092, %v3329, 0
        %3381 = vmatprep.subr.bf16.mxu0 0
        %3382 = vmatpush1.bf16.msra.mxu0 %v3379
        %3383 = vmatprep.subr.bf16.mxu0 0
        %3384 = vmatpush1.bf16.msra.mxu0 0
        %3385 = vmatprep.subr.bf16.mxu0 0
        %3386 = vmatpush1.bf16.msra.mxu0 0
        %3387 = vmatprep.subr.bf16.mxu0 0
        %3388 = vmatpush1.bf16.msra.mxu0 0
        %3389 = vmatprep.subr.bf16.mxu0 0
        %3390 = vmatpush1.bf16.msra.mxu0 0
        %3391 = vmatprep.subr.bf16.mxu0 0
        %3392 = vmatpush1.bf16.msra.mxu0 0
        %3393 = vmatprep.subr.bf16.mxu0 0
        %3394 = vmatpush1.bf16.msra.mxu0 0
        %3395 = vmatprep.subr.bf16.mxu0 0
        %3396 = vmatpush1.bf16.msra.mxu0 0
        %3397 = vmatprep.subr.bf16.mxu0 0
        %3398 = vmatpush1.bf16.msra.mxu0 0
        %3399 = vmatprep.subr.bf16.mxu0 0
        %3400 = vmatpush1.bf16.msra.mxu0 0
        %3401 = vmatprep.subr.bf16.mxu0 0
        %3402 = vmatpush1.bf16.msra.mxu0 0
        %3403 = vmatprep.subr.bf16.mxu0 0
        %3404 = vmatpush1.bf16.msra.mxu0 0
        %3405 = vmatprep.subr.bf16.mxu0 0
        %3406 = vmatpush1.bf16.msra.mxu0 0
        %3407 = vmatprep.subr.bf16.mxu0 0
        %3408 = vmatpush1.bf16.msra.mxu0 0
        %3409 = vmatprep.subr.bf16.mxu0 0
        %3410 = vmatpush1.bf16.msra.mxu0 0
        %3411 = vmatprep.subr.bf16.mxu0 0
        %3412 = vmatpush1.bf16.msra.mxu0 0
        %3413 = vmatprep.mubr.bf16.mxu0 0
        %3414 = vmatmul.mubr.bf16.gmra.mrb[0].mxu0 %v3331
        %v3415 = vpop.f32.mrb[0].mxu0
        %v3416 = vadd.f32 0.0, %v3415
        %v3417 = vpop.f32.mrb[0].mxu0
        %v3418 = vpop.f32.mrb[0].mxu0
        %v3419 = vadd.f32 0.0, %v3418
        %v3420 = vpop.f32.mrb[0].mxu0
        %3421 = vmatprep.mubr.bf16.mxu0 0
        %3422 = vmatmul.mubr.bf16.gmra.mrb[0].mxu0 %v3334
        %v3423 = vpop.f32.mrb[0].mxu0
        %v3424 = vadd.f32 0.0, %v3423
        %v3425 = vpop.f32.mrb[0].mxu0
        %v3426 = vpop.f32.mrb[0].mxu0
        %v3427 = vadd.f32 0.0, %v3426
        %v3428 = vpop.f32.mrb[0].mxu0
        %3429 = vmatprep.mubr.bf16.mxu0 0
        %3430 = vmatmul.mubr.bf16.gmra.mrb[0].mxu0 %v3337
        %v3431 = vpop.f32.mrb[0].mxu0
        %v3432 = vadd.f32 0.0, %v3431
        %v3433 = vpop.f32.mrb[0].mxu0
        %v3434 = vpop.f32.mrb[0].mxu0
        %v3435 = vadd.f32 0.0, %v3434
        %v3436 = vpop.f32.mrb[0].mxu0
        %3437 = vmatprep.mubr.bf16.mxu0 0
        %3438 = vmatmul.mubr.bf16.gmra.mrb[0].mxu0 %v3340
        %v3439 = vpop.f32.mrb[0].mxu0
        %v3440 = vadd.f32 0.0, %v3439
        %v3441 = vpop.f32.mrb[0].mxu0
        %v3442 = vpop.f32.mrb[0].mxu0
        %v3443 = vadd.f32 0.0, %v3442
        %v3444 = vpop.f32.mrb[0].mxu0
        %3445 = vmatprep.mubr.bf16.mxu0 0
        %3446 = vmatmul.mubr.bf16.gmra.mrb[0].mxu0 %v3343
        %v3447 = vpop.f32.mrb[0].mxu0
        %v3448 = vadd.f32 0.0, %v3447
        %v3449 = vpop.f32.mrb[0].mxu0
        %v3450 = vpop.f32.mrb[0].mxu0
        %v3451 = vadd.f32 0.0, %v3450
        %v3452 = vpop.f32.mrb[0].mxu0
        %3453 = vmatprep.mubr.bf16.mxu0 0
        %3454 = vmatmul.mubr.bf16.gmra.mrb[0].mxu0 %v3346
        %v3455 = vpop.f32.mrb[0].mxu0
        %v3456 = vadd.f32 0.0, %v3455
        %v3457 = vpop.f32.mrb[0].mxu0
        %v3458 = vpop.f32.mrb[0].mxu0
        %v3459 = vadd.f32 0.0, %v3458
        %v3460 = vpop.f32.mrb[0].mxu0
        %3461 = vmatprep.mubr.bf16.mxu0 0
        %3462 = vmatmul.mubr.bf16.gmra.mrb[0].mxu0 %v3349
        %v3463 = vpop.f32.mrb[0].mxu0
        %v3464 = vadd.f32 0.0, %v3463
        %v3465 = vpop.f32.mrb[0].mxu0
        %v3466 = vpop.f32.mrb[0].mxu0
        %v3467 = vadd.f32 0.0, %v3466
        %v3468 = vpop.f32.mrb[0].mxu0
        %3469 = vmatprep.mubr.bf16.mxu0 0
        %3470 = vmatmul.mubr.bf16.gmra.mrb[0].mxu0 %v3352
        %v3471 = vpop.f32.mrb[0].mxu0
        %v3472 = vadd.f32 0.0, %v3471
        %v3473 = vpop.f32.mrb[0].mxu0
        %v3474 = vpop.f32.mrb[0].mxu0
        %v3475 = vadd.f32 0.0, %v3474
        %v3476 = vpop.f32.mrb[0].mxu0
        %3477 = vmatprep.mubr.bf16.mxu0 0
        %3478 = vmatmul.mubr.bf16.gmra.mrb[0].mxu0 %v3355
        %v3479 = vpop.f32.mrb[0].mxu0
        %v3480 = vadd.f32 0.0, %v3479
        %v3481 = vpop.f32.mrb[0].mxu0
        %v3482 = vpop.f32.mrb[0].mxu0
        %v3483 = vadd.f32 0.0, %v3482
        %v3484 = vpop.f32.mrb[0].mxu0
        %3485 = vmatprep.mubr.bf16.mxu0 0
        %3486 = vmatmul.mubr.bf16.gmra.mrb[0].mxu0 %v3358
        %v3487 = vpop.f32.mrb[0].mxu0
        %v3488 = vadd.f32 0.0, %v3487
        %v3489 = vpop.f32.mrb[0].mxu0
        %v3490 = vpop.f32.mrb[0].mxu0
        %v3491 = vadd.f32 0.0, %v3490
        %v3492 = vpop.f32.mrb[0].mxu0
        %3493 = vmatprep.mubr.bf16.mxu0 0
        %3494 = vmatmul.mubr.bf16.gmra.mrb[0].mxu0 %v3361
        %v3495 = vpop.f32.mrb[0].mxu0
        %v3496 = vadd.f32 0.0, %v3495
        %v3497 = vpop.f32.mrb[0].mxu0
        %v3498 = vpop.f32.mrb[0].mxu0
        %v3499 = vadd.f32 0.0, %v3498
        %v3500 = vpop.f32.mrb[0].mxu0
        %3501 = vmatprep.mubr.bf16.mxu0 0
        %3502 = vmatmul.mubr.bf16.gmra.mrb[0].mxu0 %v3364
        %v3503 = vpop.f32.mrb[0].mxu0
        %v3504 = vadd.f32 0.0, %v3503
        %v3505 = vpop.f32.mrb[0].mxu0
        %v3506 = vpop.f32.mrb[0].mxu0
        %v3507 = vadd.f32 0.0, %v3506
        %v3508 = vpop.f32.mrb[0].mxu0
        %3509 = vmatprep.mubr.bf16.mxu0 0
        %3510 = vmatmul.mubr.bf16.gmra.mrb[0].mxu0 %v3367
        %v3511 = vpop.f32.mrb[0].mxu0
        %v3512 = vadd.f32 0.0, %v3511
        %v3513 = vpop.f32.mrb[0].mxu0
        %v3514 = vpop.f32.mrb[0].mxu0
        %v3515 = vadd.f32 0.0, %v3514
        %v3516 = vpop.f32.mrb[0].mxu0
        %3517 = vmatprep.mubr.bf16.mxu0 0
        %3518 = vmatmul.mubr.bf16.gmra.mrb[0].mxu0 %v3370
        %v3519 = vpop.f32.mrb[0].mxu0
        %v3520 = vadd.f32 0.0, %v3519
        %v3521 = vpop.f32.mrb[0].mxu0
        %v3522 = vpop.f32.mrb[0].mxu0
        %v3523 = vadd.f32 0.0, %v3522
        %v3524 = vpop.f32.mrb[0].mxu0
        %3525 = vmatprep.mubr.bf16.mxu0 0
        %3526 = vmatmul.mubr.bf16.gmra.mrb[0].mxu0 %v3373
        %v3527 = vpop.f32.mrb[0].mxu0
        %v3528 = vadd.f32 0.0, %v3527
        %v3529 = vpop.f32.mrb[0].mxu0
        %v3530 = vpop.f32.mrb[0].mxu0
        %v3531 = vadd.f32 0.0, %v3530
        %v3532 = vpop.f32.mrb[0].mxu0
        %3533 = vmatprep.mubr.bf16.mxu0 0
        %3534 = vmatmul.mubr.bf16.gmra.mrb[0].mxu0 %v3376
        %v3535 = vpop.f32.mrb[0].mxu0
        %v3536 = vadd.f32 0.0, %v3535
        %v3537 = vpop.f32.mrb[0].mxu0
        %v3538 = vpop.f32.mrb[0].mxu0
        %v3539 = vadd.f32 0.0, %v3538
        %v3540 = vpop.f32.mrb[0].mxu0
        %3541 = vdwg.mxu0
        %v3542 = vadd.f32 %v3145, %v3416
        %v3543 = vadd.f32 %v3148, %v3419
        %v3544 = vadd.f32 %v3153, %v3424
        %v3545 = vadd.f32 %v3156, %v3427
        %v3546 = vadd.f32 %v3161, %v3432
        %v3547 = vadd.f32 %v3164, %v3435
        %v3548 = vadd.f32 %v3169, %v3440
        %v3549 = vadd.f32 %v3172, %v3443
        %v3550 = vadd.f32 %v3177, %v3448
        %v3551 = vadd.f32 %v3180, %v3451
        %v3552 = vadd.f32 %v3185, %v3456
        %v3553 = vadd.f32 %v3188, %v3459
        %v3554 = vadd.f32 %v3193, %v3464
        %v3555 = vadd.f32 %v3196, %v3467
        %v3556 = vadd.f32 %v3201, %v3472
        %v3557 = vadd.f32 %v3204, %v3475
        %v3558 = vadd.f32 %v3209, %v3480
        %v3559 = vadd.f32 %v3212, %v3483
        %v3560 = vadd.f32 %v3217, %v3488
        %v3561 = vadd.f32 %v3220, %v3491
        %v3562 = vadd.f32 %v3225, %v3496
        %v3563 = vadd.f32 %v3228, %v3499
        %v3564 = vadd.f32 %v3233, %v3504
        %v3565 = vadd.f32 %v3236, %v3507
        %v3566 = vadd.f32 %v3241, %v3512
        %v3567 = vadd.f32 %v3244, %v3515
        %v3568 = vadd.f32 %v3249, %v3520
        %v3569 = vadd.f32 %v3252, %v3523
        %v3570 = vadd.f32 %v3257, %v3528
        %v3571 = vadd.f32 %v3260, %v3531
        %v3572 = vadd.f32 %v3265, %v3536
        %v3573 = vadd.f32 %v3268, %v3539
        %v3574 = vsel %vm177, %v3542, 0.0
        %v3575 = vsel %vm177, %v3543, 0.0
        %v3576 = vadd.f32 %v3574, %v3575
        %v3577 = vsel %vm177, %v3544, 0.0
        %v3578 = vadd.f32 %v3576, %v3577
        %v3579 = vsel %vm177, %v3545, 0.0
        %v3580 = vadd.f32 %v3578, %v3579
        %v3581 = vsel %vm177, %v3546, 0.0
        %v3582 = vadd.f32 %v3580, %v3581
        %v3583 = vsel %vm177, %v3547, 0.0
        %v3584 = vadd.f32 %v3582, %v3583
        %v3585 = vsel %vm177, %v3548, 0.0
        %v3586 = vadd.f32 %v3584, %v3585
        %v3587 = vsel %vm177, %v3549, 0.0
        %v3588 = vadd.f32 %v3586, %v3587
        %v3589 = vsel %vm177, %v3550, 0.0
        %v3590 = vadd.f32 %v3588, %v3589
        %v3591 = vsel %vm177, %v3551, 0.0
        %v3592 = vadd.f32 %v3590, %v3591
        %v3593 = vsel %vm177, %v3552, 0.0
        %v3594 = vadd.f32 %v3592, %v3593
        %v3595 = vsel %vm177, %v3553, 0.0
        %v3596 = vadd.f32 %v3594, %v3595
        %v3597 = vsel %vm177, %v3554, 0.0
        %v3598 = vadd.f32 %v3596, %v3597
        %v3599 = vsel %vm177, %v3555, 0.0
        %v3600 = vadd.f32 %v3598, %v3599
        %v3601 = vsel %vm177, %v3556, 0.0
        %v3602 = vadd.f32 %v3600, %v3601
        %v3603 = vsel %vm177, %v3557, 0.0
        %v3604 = vadd.f32 %v3602, %v3603
        %v3605 = vsel %vm177, %v3558, 0.0
        %v3606 = vadd.f32 %v3604, %v3605
        %v3607 = vsel %vm177, %v3559, 0.0
        %v3608 = vadd.f32 %v3606, %v3607
        %v3609 = vsel %vm177, %v3560, 0.0
        %v3610 = vadd.f32 %v3608, %v3609
        %v3611 = vsel %vm177, %v3561, 0.0
        %v3612 = vadd.f32 %v3610, %v3611
        %v3613 = vsel %vm177, %v3562, 0.0
        %v3614 = vadd.f32 %v3612, %v3613
        %v3615 = vsel %vm177, %v3563, 0.0
        %v3616 = vadd.f32 %v3614, %v3615
        %v3617 = vsel %vm177, %v3564, 0.0
        %v3618 = vadd.f32 %v3616, %v3617
        %v3619 = vsel %vm177, %v3565, 0.0
        %v3620 = vadd.f32 %v3618, %v3619
        %v3621 = vsel %vm177, %v3566, 0.0
        %v3622 = vadd.f32 %v3620, %v3621
        %v3623 = vsel %vm177, %v3567, 0.0
        %v3624 = vadd.f32 %v3622, %v3623
        %v3625 = vsel %vm177, %v3568, 0.0
        %v3626 = vadd.f32 %v3624, %v3625
        %v3627 = vsel %vm177, %v3569, 0.0
        %v3628 = vadd.f32 %v3626, %v3627
        %v3629 = vsel %vm177, %v3570, 0.0
        %v3630 = vadd.f32 %v3628, %v3629
        %v3631 = vsel %vm177, %v3571, 0.0
        %v3632 = vadd.f32 %v3630, %v3631
        %v3633 = vsel %vm177, %v3572, 0.0
        %v3634 = vadd.f32 %v3632, %v3633
        %v3635 = vsel %vm177, %v3573, 0.0
        %v3636 = vadd.f32 %v3634, %v3635
        %v3637 = vrot.slane %v3636, 4
        %v3638 = vadd.f32 %v3636, %v3637
        %v3639 = vrot.slane %v3638, 2
        %v3640 = vadd.f32 %v3638, %v3639
        %v3641 = vrot.slane %v3640, 1
        %v3642 = vadd.f32 %v3640, %v3641
        %v3643 = vmul.f32 %v3642, %v1847
        %v3644 = vmul.f32 %v3542, %v3542
        %v3645 = vmul.f32 %v3543, %v3543
        %v3646 = vmul.f32 %v3544, %v3544
        %v3647 = vmul.f32 %v3545, %v3545
        %v3648 = vmul.f32 %v3546, %v3546
        %v3649 = vmul.f32 %v3547, %v3547
        %v3650 = vmul.f32 %v3548, %v3548
        %v3651 = vmul.f32 %v3549, %v3549
        %v3652 = vmul.f32 %v3550, %v3550
        %v3653 = vmul.f32 %v3551, %v3551
        %v3654 = vmul.f32 %v3552, %v3552
        %v3655 = vmul.f32 %v3553, %v3553
        %v3656 = vmul.f32 %v3554, %v3554
        %v3657 = vmul.f32 %v3555, %v3555
        %v3658 = vmul.f32 %v3556, %v3556
        %v3659 = vmul.f32 %v3557, %v3557
        %v3660 = vmul.f32 %v3558, %v3558
        %v3661 = vmul.f32 %v3559, %v3559
        %v3662 = vmul.f32 %v3560, %v3560
        %v3663 = vmul.f32 %v3561, %v3561
        %v3664 = vmul.f32 %v3562, %v3562
        %v3665 = vmul.f32 %v3563, %v3563
        %v3666 = vmul.f32 %v3564, %v3564
        %v3667 = vmul.f32 %v3565, %v3565
        %v3668 = vmul.f32 %v3566, %v3566
        %v3669 = vmul.f32 %v3567, %v3567
        %v3670 = vmul.f32 %v3568, %v3568
        %v3671 = vmul.f32 %v3569, %v3569
        %v3672 = vmul.f32 %v3570, %v3570
        %v3673 = vmul.f32 %v3571, %v3571
        %v3674 = vmul.f32 %v3572, %v3572
        %v3675 = vmul.f32 %v3573, %v3573
        %v3676 = vsel %vm177, %v3644, 0.0
        %v3677 = vsel %vm177, %v3645, 0.0
        %v3678 = vadd.f32 %v3676, %v3677
        %v3679 = vsel %vm177, %v3646, 0.0
        %v3680 = vadd.f32 %v3678, %v3679
        %v3681 = vsel %vm177, %v3647, 0.0
        %v3682 = vadd.f32 %v3680, %v3681
        %v3683 = vsel %vm177, %v3648, 0.0
        %v3684 = vadd.f32 %v3682, %v3683
        %v3685 = vsel %vm177, %v3649, 0.0
        %v3686 = vadd.f32 %v3684, %v3685
        %v3687 = vsel %vm177, %v3650, 0.0
        %v3688 = vadd.f32 %v3686, %v3687
        %v3689 = vsel %vm177, %v3651, 0.0
        %v3690 = vadd.f32 %v3688, %v3689
        %v3691 = vsel %vm177, %v3652, 0.0
        %v3692 = vadd.f32 %v3690, %v3691
        %v3693 = vsel %vm177, %v3653, 0.0
        %v3694 = vadd.f32 %v3692, %v3693
        %v3695 = vsel %vm177, %v3654, 0.0
        %v3696 = vadd.f32 %v3694, %v3695
        %v3697 = vsel %vm177, %v3655, 0.0
        %v3698 = vadd.f32 %v3696, %v3697
        %v3699 = vsel %vm177, %v3656, 0.0
        %v3700 = vadd.f32 %v3698, %v3699
        %v3701 = vsel %vm177, %v3657, 0.0
        %v3702 = vadd.f32 %v3700, %v3701
        %v3703 = vsel %vm177, %v3658, 0.0
        %v3704 = vadd.f32 %v3702, %v3703
        %v3705 = vsel %vm177, %v3659, 0.0
        %v3706 = vadd.f32 %v3704, %v3705
        %v3707 = vsel %vm177, %v3660, 0.0
        %v3708 = vadd.f32 %v3706, %v3707
        %v3709 = vsel %vm177, %v3661, 0.0
        %v3710 = vadd.f32 %v3708, %v3709
        %v3711 = vsel %vm177, %v3662, 0.0
        %v3712 = vadd.f32 %v3710, %v3711
        %v3713 = vsel %vm177, %v3663, 0.0
        %v3714 = vadd.f32 %v3712, %v3713
        %v3715 = vsel %vm177, %v3664, 0.0
        %v3716 = vadd.f32 %v3714, %v3715
        %v3717 = vsel %vm177, %v3665, 0.0
        %v3718 = vadd.f32 %v3716, %v3717
        %v3719 = vsel %vm177, %v3666, 0.0
        %v3720 = vadd.f32 %v3718, %v3719
        %v3721 = vsel %vm177, %v3667, 0.0
        %v3722 = vadd.f32 %v3720, %v3721
        %v3723 = vsel %vm177, %v3668, 0.0
        %v3724 = vadd.f32 %v3722, %v3723
        %v3725 = vsel %vm177, %v3669, 0.0
        %v3726 = vadd.f32 %v3724, %v3725
        %v3727 = vsel %vm177, %v3670, 0.0
        %v3728 = vadd.f32 %v3726, %v3727
        %v3729 = vsel %vm177, %v3671, 0.0
        %v3730 = vadd.f32 %v3728, %v3729
        %v3731 = vsel %vm177, %v3672, 0.0
        %v3732 = vadd.f32 %v3730, %v3731
        %v3733 = vsel %vm177, %v3673, 0.0
        %v3734 = vadd.f32 %v3732, %v3733
        %v3735 = vsel %vm177, %v3674, 0.0
        %v3736 = vadd.f32 %v3734, %v3735
        %v3737 = vsel %vm177, %v3675, 0.0
        %v3738 = vadd.f32 %v3736, %v3737
        %v3739 = vrot.slane %v3738, 4
        %v3740 = vadd.f32 %v3738, %v3739
        %v3741 = vrot.slane %v3740, 2
        %v3742 = vadd.f32 %v3740, %v3741
        %v3743 = vrot.slane %v3742, 1
        %v3744 = vadd.f32 %v3742, %v3743
        %v3745 = vmul.f32 %v3744, %v1847
        %v3746 = vmul.f32 %v3643, %v3643
        %v3747 = vsub.f32 %v3745, %v3746
        %v3748 = vsub.f32 %v3542, %v3643
        %v3749 = vsub.f32 %v3543, %v3643
        %v3750 = vsub.f32 %v3544, %v3643
        %v3751 = vsub.f32 %v3545, %v3643
        %v3752 = vsub.f32 %v3546, %v3643
        %v3753 = vsub.f32 %v3547, %v3643
        %v3754 = vsub.f32 %v3548, %v3643
        %v3755 = vsub.f32 %v3549, %v3643
        %v3756 = vsub.f32 %v3550, %v3643
        %v3757 = vsub.f32 %v3551, %v3643
        %v3758 = vsub.f32 %v3552, %v3643
        %v3759 = vsub.f32 %v3553, %v3643
        %v3760 = vsub.f32 %v3554, %v3643
        %v3761 = vsub.f32 %v3555, %v3643
        %v3762 = vsub.f32 %v3556, %v3643
        %v3763 = vsub.f32 %v3557, %v3643
        %v3764 = vsub.f32 %v3558, %v3643
        %v3765 = vsub.f32 %v3559, %v3643
        %v3766 = vsub.f32 %v3560, %v3643
        %v3767 = vsub.f32 %v3561, %v3643
        %v3768 = vsub.f32 %v3562, %v3643
        %v3769 = vsub.f32 %v3563, %v3643
        %v3770 = vsub.f32 %v3564, %v3643
        %v3771 = vsub.f32 %v3565, %v3643
        %v3772 = vsub.f32 %v3566, %v3643
        %v3773 = vsub.f32 %v3567, %v3643
        %v3774 = vsub.f32 %v3568, %v3643
        %v3775 = vsub.f32 %v3569, %v3643
        %v3776 = vsub.f32 %v3570, %v3643
        %v3777 = vsub.f32 %v3571, %v3643
        %v3778 = vsub.f32 %v3572, %v3643
        %v3779 = vsub.f32 %v3573, %v3643
        %v3780 = vadd.f32 %v3747, 1e-05
        %v3781 = vrsqrt.pop %v3780
        %v3782 = vmul.f32 %v3748, %v3781
        %v3783 = vmul.f32 %v3749, %v3781
        %v3784 = vmul.f32 %v3750, %v3781
        %v3785 = vmul.f32 %v3751, %v3781
        %v3786 = vmul.f32 %v3752, %v3781
        %v3787 = vmul.f32 %v3753, %v3781
        %v3788 = vmul.f32 %v3754, %v3781
        %v3789 = vmul.f32 %v3755, %v3781
        %v3790 = vmul.f32 %v3756, %v3781
        %v3791 = vmul.f32 %v3757, %v3781
        %v3792 = vmul.f32 %v3758, %v3781
        %v3793 = vmul.f32 %v3759, %v3781
        %v3794 = vmul.f32 %v3760, %v3781
        %v3795 = vmul.f32 %v3761, %v3781
        %v3796 = vmul.f32 %v3762, %v3781
        %v3797 = vmul.f32 %v3763, %v3781
        %v3798 = vmul.f32 %v3764, %v3781
        %v3799 = vmul.f32 %v3765, %v3781
        %v3800 = vmul.f32 %v3766, %v3781
        %v3801 = vmul.f32 %v3767, %v3781
        %v3802 = vmul.f32 %v3768, %v3781
        %v3803 = vmul.f32 %v3769, %v3781
        %v3804 = vmul.f32 %v3770, %v3781
        %v3805 = vmul.f32 %v3771, %v3781
        %v3806 = vmul.f32 %v3772, %v3781
        %v3807 = vmul.f32 %v3773, %v3781
        %v3808 = vmul.f32 %v3774, %v3781
        %v3809 = vmul.f32 %v3775, %v3781
        %v3810 = vmul.f32 %v3776, %v3781
        %v3811 = vmul.f32 %v3777, %v3781
        %v3812 = vmul.f32 %v3778, %v3781
        %v3813 = vmul.f32 %v3779, %v3781
        %3814 = vst.msk [vmem:[#allocation2] sm:$0xff] %vm177, %v3782
        %3815 = vst.msk [vmem:[#allocation2 + $0x8] sm:$0xff] %vm177, %v3783
        %3816 = vst.msk [vmem:[#allocation2 + $0x10] sm:$0xff] %vm177, %v3784
        %3817 = vst.msk [vmem:[#allocation2 + $0x18] sm:$0xff] %vm177, %v3785
        %3818 = vst.msk [vmem:[#allocation2 + $0x20] sm:$0xff] %vm177, %v3786
        %3819 = vst.msk [vmem:[#allocation2 + $0x28] sm:$0xff] %vm177, %v3787
        %3820 = vst.msk [vmem:[#allocation2 + $0x30] sm:$0xff] %vm177, %v3788
        %3821 = vst.msk [vmem:[#allocation2 + $0x38] sm:$0xff] %vm177, %v3789
        %3822 = vst.msk [vmem:[#allocation2 + $0x40] sm:$0xff] %vm177, %v3790
        %3823 = vst.msk [vmem:[#allocation2 + $0x48] sm:$0xff] %vm177, %v3791
        %3824 = vst.msk [vmem:[#allocation2 + $0x50] sm:$0xff] %vm177, %v3792
        %3825 = vst.msk [vmem:[#allocation2 + $0x58] sm:$0xff] %vm177, %v3793
        %3826 = vst.msk [vmem:[#allocation2 + $0x60] sm:$0xff] %vm177, %v3794
        %3827 = vst.msk [vmem:[#allocation2 + $0x68] sm:$0xff] %vm177, %v3795
        %3828 = vst.msk [vmem:[#allocation2 + $0x70] sm:$0xff] %vm177, %v3796
        %3829 = vst.msk [vmem:[#allocation2 + $0x78] sm:$0xff] %vm177, %v3797
        %3830 = vst.msk [vmem:[#allocation2 + $0x80] sm:$0xff] %vm177, %v3798
        %3831 = vst.msk [vmem:[#allocation2 + $0x88] sm:$0xff] %vm177, %v3799
        %3832 = vst.msk [vmem:[#allocation2 + $0x90] sm:$0xff] %vm177, %v3800
        %3833 = vst.msk [vmem:[#allocation2 + $0x98] sm:$0xff] %vm177, %v3801
        %3834 = vst.msk [vmem:[#allocation2 + $0xa0] sm:$0xff] %vm177, %v3802
        %3835 = vst.msk [vmem:[#allocation2 + $0xa8] sm:$0xff] %vm177, %v3803
        %3836 = vst.msk [vmem:[#allocation2 + $0xb0] sm:$0xff] %vm177, %v3804
        %3837 = vst.msk [vmem:[#allocation2 + $0xb8] sm:$0xff] %vm177, %v3805
        %3838 = vst.msk [vmem:[#allocation2 + $0xc0] sm:$0xff] %vm177, %v3806
        %3839 = vst.msk [vmem:[#allocation2 + $0xc8] sm:$0xff] %vm177, %v3807
        %3840 = vst.msk [vmem:[#allocation2 + $0xd0] sm:$0xff] %vm177, %v3808
        %3841 = vst.msk [vmem:[#allocation2 + $0xd8] sm:$0xff] %vm177, %v3809
        %3842 = vst.msk [vmem:[#allocation2 + $0xe0] sm:$0xff] %vm177, %v3810
        %3843 = vst.msk [vmem:[#allocation2 + $0xe8] sm:$0xff] %vm177, %v3811
        %3844 = vst.msk [vmem:[#allocation2 + $0xf0] sm:$0xff] %vm177, %v3812
        %3845 = vst.msk [vmem:[#allocation2 + $0xf8] sm:$0xff] %vm177, %v3813
        %v3846 = vld [vmem:[#allocation2] sm:$0xff]
        %v3847 = vld [vmem:[#allocation2 + $0x8] sm:$0xff]
        %v3848 = vld [vmem:[#allocation2 + $0x10] sm:$0xff]
        %v3849 = vld [vmem:[#allocation2 + $0x18] sm:$0xff]
        %v3850 = vld [vmem:[#allocation2 + $0x20] sm:$0xff]
        %v3851 = vld [vmem:[#allocation2 + $0x28] sm:$0xff]
        %v3852 = vld [vmem:[#allocation2 + $0x30] sm:$0xff]
        %v3853 = vld [vmem:[#allocation2 + $0x38] sm:$0xff]
        %v3854 = vld [vmem:[#allocation2 + $0x40] sm:$0xff]
        %v3855 = vld [vmem:[#allocation2 + $0x48] sm:$0xff]
        %v3856 = vld [vmem:[#allocation2 + $0x50] sm:$0xff]
        %v3857 = vld [vmem:[#allocation2 + $0x58] sm:$0xff]
        %v3858 = vld [vmem:[#allocation2 + $0x60] sm:$0xff]
        %v3859 = vld [vmem:[#allocation2 + $0x68] sm:$0xff]
        %v3860 = vld [vmem:[#allocation2 + $0x70] sm:$0xff]
        %v3861 = vld [vmem:[#allocation2 + $0x78] sm:$0xff]
        %v3862 = vld [vmem:[#allocation2 + $0x80] sm:$0xff]
        %v3863 = vld [vmem:[#allocation2 + $0x88] sm:$0xff]
        %v3864 = vld [vmem:[#allocation2 + $0x90] sm:$0xff]
        %v3865 = vld [vmem:[#allocation2 + $0x98] sm:$0xff]
        %v3866 = vld [vmem:[#allocation2 + $0xa0] sm:$0xff]
        %v3867 = vld [vmem:[#allocation2 + $0xa8] sm:$0xff]
        %v3868 = vld [vmem:[#allocation2 + $0xb0] sm:$0xff]
        %v3869 = vld [vmem:[#allocation2 + $0xb8] sm:$0xff]
        %v3870 = vld [vmem:[#allocation2 + $0xc0] sm:$0xff]
        %v3871 = vld [vmem:[#allocation2 + $0xc8] sm:$0xff]
        %v3872 = vld [vmem:[#allocation2 + $0xd0] sm:$0xff]
        %v3873 = vld [vmem:[#allocation2 + $0xd8] sm:$0xff]
        %v3874 = vld [vmem:[#allocation2 + $0xe0] sm:$0xff]
        %v3875 = vld [vmem:[#allocation2 + $0xe8] sm:$0xff]
        %v3876 = vld [vmem:[#allocation2 + $0xf0] sm:$0xff]
        %v3877 = vld [vmem:[#allocation2 + $0xf8] sm:$0xff]
        %v3878 = vld [vmem:[#allocation3] sm:$0xff]
        %v3879 = vld [vmem:[#allocation3 + $0x8] sm:$0xff]
        %v3880 = vld [vmem:[#allocation3 + $0x10] sm:$0xff]
        %v3881 = vld [vmem:[#allocation3 + $0x18] sm:$0xff]
        %v3882 = vld [vmem:[#allocation3 + $0x20] sm:$0xff]
        %v3883 = vld [vmem:[#allocation3 + $0x28] sm:$0xff]
        %v3884 = vld [vmem:[#allocation3 + $0x30] sm:$0xff]
        %v3885 = vld [vmem:[#allocation3 + $0x38] sm:$0xff]
        %v3886 = vld [vmem:[#allocation3 + $0x40] sm:$0xff]
        %v3887 = vld [vmem:[#allocation3 + $0x48] sm:$0xff]
        %v3888 = vld [vmem:[#allocation3 + $0x50] sm:$0xff]
        %v3889 = vld [vmem:[#allocation3 + $0x58] sm:$0xff]
        %v3890 = vld [vmem:[#allocation3 + $0x60] sm:$0xff]
        %v3891 = vld [vmem:[#allocation3 + $0x68] sm:$0xff]
        %v3892 = vld [vmem:[#allocation3 + $0x70] sm:$0xff]
        %v3893 = vld [vmem:[#allocation3 + $0x78] sm:$0xff]
        %v3894 = vld [vmem:[#allocation3 + $0x80] sm:$0xff]
        %v3895 = vld [vmem:[#allocation3 + $0x88] sm:$0xff]
        %v3896 = vld [vmem:[#allocation3 + $0x90] sm:$0xff]
        %v3897 = vld [vmem:[#allocation3 + $0x98] sm:$0xff]
        %v3898 = vld [vmem:[#allocation3 + $0xa0] sm:$0xff]
        %v3899 = vld [vmem:[#allocation3 + $0xa8] sm:$0xff]
        %v3900 = vld [vmem:[#allocation3 + $0xb0] sm:$0xff]
        %v3901 = vld [vmem:[#allocation3 + $0xb8] sm:$0xff]
        %v3902 = vld [vmem:[#allocation3 + $0xc0] sm:$0xff]
        %v3903 = vld [vmem:[#allocation3 + $0xc8] sm:$0xff]
        %v3904 = vld [vmem:[#allocation3 + $0xd0] sm:$0xff]
        %v3905 = vld [vmem:[#allocation3 + $0xd8] sm:$0xff]
        %v3906 = vld [vmem:[#allocation3 + $0xe0] sm:$0xff]
        %v3907 = vld [vmem:[#allocation3 + $0xe8] sm:$0xff]
        %v3908 = vld [vmem:[#allocation3 + $0xf0] sm:$0xff]
        %v3909 = vld [vmem:[#allocation3 + $0xf8] sm:$0xff]
        %v3910 = vadd.f32 %v3846, %v3878
        %v3911 = vadd.f32 %v3847, %v3879
        %v3912 = vadd.f32 %v3848, %v3880
        %v3913 = vadd.f32 %v3849, %v3881
        %v3914 = vadd.f32 %v3850, %v3882
        %v3915 = vadd.f32 %v3851, %v3883
        %v3916 = vadd.f32 %v3852, %v3884
        %v3917 = vadd.f32 %v3853, %v3885
        %v3918 = vadd.f32 %v3854, %v3886
        %v3919 = vadd.f32 %v3855, %v3887
        %v3920 = vadd.f32 %v3856, %v3888
        %v3921 = vadd.f32 %v3857, %v3889
        %v3922 = vadd.f32 %v3858, %v3890
        %v3923 = vadd.f32 %v3859, %v3891
        %v3924 = vadd.f32 %v3860, %v3892
        %v3925 = vadd.f32 %v3861, %v3893
        %v3926 = vadd.f32 %v3862, %v3894
        %v3927 = vadd.f32 %v3863, %v3895
        %v3928 = vadd.f32 %v3864, %v3896
        %v3929 = vadd.f32 %v3865, %v3897
        %v3930 = vadd.f32 %v3866, %v3898
        %v3931 = vadd.f32 %v3867, %v3899
        %v3932 = vadd.f32 %v3868, %v3900
        %v3933 = vadd.f32 %v3869, %v3901
        %v3934 = vadd.f32 %v3870, %v3902
        %v3935 = vadd.f32 %v3871, %v3903
        %v3936 = vadd.f32 %v3872, %v3904
        %v3937 = vadd.f32 %v3873, %v3905
        %v3938 = vadd.f32 %v3874, %v3906
        %v3939 = vadd.f32 %v3875, %v3907
        %v3940 = vadd.f32 %v3876, %v3908
        %v3941 = vadd.f32 %v3877, %v3909
        %3942 = vst.msk [vmem:[#allocation2] sm:$0xff] %vm177, %v3910
        %3943 = vst.msk [vmem:[#allocation2 + $0x8] sm:$0xff] %vm177, %v3911
        %3944 = vst.msk [vmem:[#allocation2 + $0x10] sm:$0xff] %vm177, %v3912
        %3945 = vst.msk [vmem:[#allocation2 + $0x18] sm:$0xff] %vm177, %v3913
        %3946 = vst.msk [vmem:[#allocation2 + $0x20] sm:$0xff] %vm177, %v3914
        %3947 = vst.msk [vmem:[#allocation2 + $0x28] sm:$0xff] %vm177, %v3915
        %3948 = vst.msk [vmem:[#allocation2 + $0x30] sm:$0xff] %vm177, %v3916
        %3949 = vst.msk [vmem:[#allocation2 + $0x38] sm:$0xff] %vm177, %v3917
        %3950 = vst.msk [vmem:[#allocation2 + $0x40] sm:$0xff] %vm177, %v3918
        %3951 = vst.msk [vmem:[#allocation2 + $0x48] sm:$0xff] %vm177, %v3919
        %3952 = vst.msk [vmem:[#allocation2 + $0x50] sm:$0xff] %vm177, %v3920
        %3953 = vst.msk [vmem:[#allocation2 + $0x58] sm:$0xff] %vm177, %v3921
        %3954 = vst.msk [vmem:[#allocation2 + $0x60] sm:$0xff] %vm177, %v3922
        %3955 = vst.msk [vmem:[#allocation2 + $0x68] sm:$0xff] %vm177, %v3923
        %3956 = vst.msk [vmem:[#allocation2 + $0x70] sm:$0xff] %vm177, %v3924
        %3957 = vst.msk [vmem:[#allocation2 + $0x78] sm:$0xff] %vm177, %v3925
        %3958 = vst.msk [vmem:[#allocation2 + $0x80] sm:$0xff] %vm177, %v3926
        %3959 = vst.msk [vmem:[#allocation2 + $0x88] sm:$0xff] %vm177, %v3927
        %3960 = vst.msk [vmem:[#allocation2 + $0x90] sm:$0xff] %vm177, %v3928
        %3961 = vst.msk [vmem:[#allocation2 + $0x98] sm:$0xff] %vm177, %v3929
        %3962 = vst.msk [vmem:[#allocation2 + $0xa0] sm:$0xff] %vm177, %v3930
        %3963 = vst.msk [vmem:[#allocation2 + $0xa8] sm:$0xff] %vm177, %v3931
        %3964 = vst.msk [vmem:[#allocation2 + $0xb0] sm:$0xff] %vm177, %v3932
        %3965 = vst.msk [vmem:[#allocation2 + $0xb8] sm:$0xff] %vm177, %v3933
        %3966 = vst.msk [vmem:[#allocation2 + $0xc0] sm:$0xff] %vm177, %v3934
        %3967 = vst.msk [vmem:[#allocation2 + $0xc8] sm:$0xff] %vm177, %v3935
        %3968 = vst.msk [vmem:[#allocation2 + $0xd0] sm:$0xff] %vm177, %v3936
        %3969 = vst.msk [vmem:[#allocation2 + $0xd8] sm:$0xff] %vm177, %v3937
        %3970 = vst.msk [vmem:[#allocation2 + $0xe0] sm:$0xff] %vm177, %v3938
        %3971 = vst.msk [vmem:[#allocation2 + $0xe8] sm:$0xff] %vm177, %v3939
        %3972 = vst.msk [vmem:[#allocation2 + $0xf0] sm:$0xff] %vm177, %v3940
        %3973 = vst.msk [vmem:[#allocation2 + $0xf8] sm:$0xff] %vm177, %v3941
      $region33: #{tpu_custom_call.1} parent=27 // loop_footer
        %s215 = sadd.s32 1, %s211
      $region34: #{tpu_custom_call.1} parent=27 // loop_footer_branch
        %210 = sbr.rel target = $region30
      $region35: #{tpu_custom_call.1} parent=27 // loop_exit
        _
      %v3974 = vld [vmem:[#allocation2] sm:$0xff]
      %v3975 = vld [vmem:[#allocation2 + $0x8] sm:$0xff]
      %v3976 = vld [vmem:[#allocation2 + $0x10] sm:$0xff]
      %v3977 = vld [vmem:[#allocation2 + $0x18] sm:$0xff]
      %v3978 = vld [vmem:[#allocation2 + $0x20] sm:$0xff]
      %v3979 = vld [vmem:[#allocation2 + $0x28] sm:$0xff]
      %v3980 = vld [vmem:[#allocation2 + $0x30] sm:$0xff]
      %v3981 = vld [vmem:[#allocation2 + $0x38] sm:$0xff]
      %v3982 = vld [vmem:[#allocation2 + $0x40] sm:$0xff]
      %v3983 = vld [vmem:[#allocation2 + $0x48] sm:$0xff]
      %v3984 = vld [vmem:[#allocation2 + $0x50] sm:$0xff]
      %v3985 = vld [vmem:[#allocation2 + $0x58] sm:$0xff]
      %v3986 = vld [vmem:[#allocation2 + $0x60] sm:$0xff]
      %v3987 = vld [vmem:[#allocation2 + $0x68] sm:$0xff]
      %v3988 = vld [vmem:[#allocation2 + $0x70] sm:$0xff]
      %v3989 = vld [vmem:[#allocation2 + $0x78] sm:$0xff]
      %v3990 = vld [vmem:[#allocation2 + $0x80] sm:$0xff]
      %v3991 = vld [vmem:[#allocation2 + $0x88] sm:$0xff]
      %v3992 = vld [vmem:[#allocation2 + $0x90] sm:$0xff]
      %v3993 = vld [vmem:[#allocation2 + $0x98] sm:$0xff]
      %v3994 = vld [vmem:[#allocation2 + $0xa0] sm:$0xff]
      %v3995 = vld [vmem:[#allocation2 + $0xa8] sm:$0xff]
      %v3996 = vld [vmem:[#allocation2 + $0xb0] sm:$0xff]
      %v3997 = vld [vmem:[#allocation2 + $0xb8] sm:$0xff]
      %v3998 = vld [vmem:[#allocation2 + $0xc0] sm:$0xff]
      %v3999 = vld [vmem:[#allocation2 + $0xc8] sm:$0xff]
      %v4000 = vld [vmem:[#allocation2 + $0xd0] sm:$0xff]
      %v4001 = vld [vmem:[#allocation2 + $0xd8] sm:$0xff]
      %v4002 = vld [vmem:[#allocation2 + $0xe0] sm:$0xff]
      %v4003 = vld [vmem:[#allocation2 + $0xe8] sm:$0xff]
      %v4004 = vld [vmem:[#allocation2 + $0xf0] sm:$0xff]
      %v4005 = vld [vmem:[#allocation2 + $0xf8] sm:$0xff]
      %4006 = vst.msk [vmem:[%s143] sm:$0xff] %vm177, %v3974
      %4007 = vst.msk [vmem:[%s143 + $0x8] sm:$0xff] %vm177, %v3975
      %4008 = vst.msk [vmem:[%s143 + $0x10] sm:$0xff] %vm177, %v3976
      %4009 = vst.msk [vmem:[%s143 + $0x18] sm:$0xff] %vm177, %v3977
      %4010 = vst.msk [vmem:[%s143 + $0x20] sm:$0xff] %vm177, %v3978
      %4011 = vst.msk [vmem:[%s143 + $0x28] sm:$0xff] %vm177, %v3979
      %4012 = vst.msk [vmem:[%s143 + $0x30] sm:$0xff] %vm177, %v3980
      %4013 = vst.msk [vmem:[%s143 + $0x38] sm:$0xff] %vm177, %v3981
      %4014 = vst.msk [vmem:[%s143 + $0x40] sm:$0xff] %vm177, %v3982
      %4015 = vst.msk [vmem:[%s143 + $0x48] sm:$0xff] %vm177, %v3983
      %4016 = vst.msk [vmem:[%s143 + $0x50] sm:$0xff] %vm177, %v3984
      %4017 = vst.msk [vmem:[%s143 + $0x58] sm:$0xff] %vm177, %v3985
      %4018 = vst.msk [vmem:[%s143 + $0x60] sm:$0xff] %vm177, %v3986
      %4019 = vst.msk [vmem:[%s143 + $0x68] sm:$0xff] %vm177, %v3987
      %4020 = vst.msk [vmem:[%s143 + $0x70] sm:$0xff] %vm177, %v3988
      %4021 = vst.msk [vmem:[%s143 + $0x78] sm:$0xff] %vm177, %v3989
      %4022 = vst.msk [vmem:[%s143 + $0x80] sm:$0xff] %vm177, %v3990
      %4023 = vst.msk [vmem:[%s143 + $0x88] sm:$0xff] %vm177, %v3991
      %4024 = vst.msk [vmem:[%s143 + $0x90] sm:$0xff] %vm177, %v3992
      %4025 = vst.msk [vmem:[%s143 + $0x98] sm:$0xff] %vm177, %v3993
      %4026 = vst.msk [vmem:[%s143 + $0xa0] sm:$0xff] %vm177, %v3994
      %4027 = vst.msk [vmem:[%s143 + $0xa8] sm:$0xff] %vm177, %v3995
      %4028 = vst.msk [vmem:[%s143 + $0xb0] sm:$0xff] %vm177, %v3996
      %4029 = vst.msk [vmem:[%s143 + $0xb8] sm:$0xff] %vm177, %v3997
      %4030 = vst.msk [vmem:[%s143 + $0xc0] sm:$0xff] %vm177, %v3998
      %4031 = vst.msk [vmem:[%s143 + $0xc8] sm:$0xff] %vm177, %v3999
      %4032 = vst.msk [vmem:[%s143 + $0xd0] sm:$0xff] %vm177, %v4000
      %4033 = vst.msk [vmem:[%s143 + $0xd8] sm:$0xff] %vm177, %v4001
      %4034 = vst.msk [vmem:[%s143 + $0xe0] sm:$0xff] %vm177, %v4002
      %4035 = vst.msk [vmem:[%s143 + $0xe8] sm:$0xff] %vm177, %v4003
      %4036 = vst.msk [vmem:[%s143 + $0xf0] sm:$0xff] %vm177, %v4004
      %4037 = vst.msk [vmem:[%s143 + $0xf8] sm:$0xff] %vm177, %v4005
      %p4038 = scmp.lt.s32.totalorder %s13, 1
      %s4039 = scalar_select %p4038, %s13, 1
      %s4040 = smul.addr %s4039, 32
      %s4041 = smul.addr %s4040, 8
      %s4042 = scalar_lea.vmem %s2, %s4041
      // Predicated region
      $region36: #{tpu_custom_call.1} parent=27 // pred_check
        %p4043 = pneg %p78
      $region37: #{tpu_custom_call.1} parent=27 // pred_check_branch
        %4045 = sbr.rel (%p4043) target = $region39
      $region38: #{tpu_custom_call.1} parent=27 // pred_region
        _
      $region39: #{tpu_custom_call.1} parent=27 // pred_fallthru
        _
    $region28: #{tpu_custom_call.1} parent=5 // pred_fallthru
      _
    %p4046 = scmp.le.s32.totalorder 2, %s8
    // Predicated region
    $region40: #{tpu_custom_call.1} parent=5 // pred_check
      %p4047 = pneg %p4046
    $region41: #{tpu_custom_call.1} parent=5 // pred_check_branch
      %4049 = sbr.rel (%p4047) target = $region43
    $region42: #{tpu_custom_call.1} parent=5 // pred_region
      %s4050 = ssub.s32 %s8, 2
      // Predicated region
      $region44: #{tpu_custom_call.1} parent=42 // pred_check
        %p4051 = pneg %p84
      $region45: #{tpu_custom_call.1} parent=42 // pred_check_branch
        %4053 = sbr.rel (%p4051) target = $region47
      $region46: #{tpu_custom_call.1} parent=42 // pred_region
        %p4054 = scmp.lt.s32.totalorder %s14, 1
        %s4055 = scalar_select %p4054, %s14, 1
        %s4056 = smul.addr %s4055, 32
        %s4057 = smul.addr %s4056, 8
        %s4058 = scalar_lea.vmem %s2, %s4057
      $region47: #{tpu_custom_call.1} parent=42 // pred_fallthru
        _
    $region43: #{tpu_custom_call.1} parent=5 // pred_fallthru
      _
  $region6: #{tpu_custom_call.1} parent=0 // loop_footer
    %s12 = sadd.s32 1, %s8
  $region7: #{tpu_custom_call.1} parent=0 // loop_footer_branch
    %7 = sbr.rel target = $region3
  $region8: #{tpu_custom_call.1} parent=0 // loop_exit
    _

</llo_original>
